<compile_context>
chip_gen: v5e
topology: v5e:2x2
jax: 0.10.0
libtpu: 0.0.40
codegen_flags: <defaults>
</compile_context>

<pallas_src>
import jax
import jax.numpy as jnp
from jax import lax
from jax.experimental import pallas as pl
from jax.experimental.pallas import tpu as pltpu

# --- small, deterministic hyperparameters (structure matches TextCNN.__init__) ---
N_VOCAB      = 50
HID_DIM      = 32
OUT_DIM      = 14
NUM_FILTERS  = 32
FILTER_SIZES = (2, 4, 6, 8, 10, 16, 24)
BATCH        = 2
SEQ_LEN      = 32                      # must be >= max(FILTER_SIZES)


def _round_up(x, m):
    return (x + m - 1) // m * m


MAX_K      = max(FILTER_SIZES)                                   # 24
N_GROUPS   = len(FILTER_SIZES)                                   # 7
FEAT_DIM   = NUM_FILTERS * N_GROUPS                              # 224
LANE_BLOCK = _round_up(FEAT_DIM, 128)                            # 256 (lane-aligned block)
N_STACK    = MAX_K * LANE_BLOCK                                  # 6144 (wide matmul N)
VOCAB_PAD  = _round_up(N_VOCAB, 128)                             # 128 (MXU-deep K)
OUT_PAD    = 128                                                 # lane-dense FC output
ROWS       = BATCH * SEQ_LEN                                     # 64  (batch folded into M)
R_PAD      = _round_up(ROWS + MAX_K, 8)                          # 88  (extra rows => no OOB)
NEG_INF    = -1e30


def _textcnn_kernel(ids_ref, ew_ref, mask_ref, cbias_ref, fcw_ref, fcb_ref, out_ref):
    # ---- embedding gather folded into one bf16 MXU pass (K = 128 fills MXU depth) ----
    onehot = (ids_ref[...] ==
              lax.broadcasted_iota(jnp.int32, (R_PAD, VOCAB_PAD), 1)
              ).astype(jnp.bfloat16)                              # (88, 128), exact in bf16
    z = jnp.dot(onehot, ew_ref[...],
                preferred_element_type=jnp.float32)               # (88, 6144) f32

    # ---- conv for ALL 7 filter groups at once: lane-aligned, sublane-shift-only adds ----
    # s[row, j*32+f] = sum_i z[row+i, i*256 + j*32 + f]; taps i >= k_j have zero columns.
    s = z[0:ROWS, 0:LANE_BLOCK]
    for i in range(1, MAX_K):
        s = s + z[i:i + ROWS, i * LANE_BLOCK:(i + 1) * LANE_BLOCK]
    # -inf on invalid window starts (sequence tail per group + batch-boundary straddle)
    s = s + mask_ref[...]                                         # (64, 256)

    # ---- max over time per batch; bias + ReLU hoisted past the pool (exact) ----
    pooled = jnp.concatenate(
        [jnp.max(s[b * SEQ_LEN:(b + 1) * SEQ_LEN], axis=0, keepdims=True)
         for b in range(BATCH)], axis=0)                          # (B, 256)
    feat = jnp.maximum(pooled + cbias_ref[...], 0.0)              # (B, 256)

    # ---- single FC dot (was 7 tiny dots), lane-dense (B, 128) store ----
    out_ref[...] = jnp.dot(feat, fcw_ref[...],
                           preferred_element_type=jnp.float32) + fcb_ref[...]


def init_params(key):
    """Torch-layout parameters (same structure as the nn.Module)."""
    params = {}
    keys = jax.random.split(key, 3 + 2 * len(FILTER_SIZES))
    emb = 0.1 * jax.random.normal(keys[0], (N_VOCAB, HID_DIM), jnp.float32)
    emb = emb.at[N_VOCAB - 1].set(0.0)                 # padding_idx = n_vocab - 1
    params["embedding"] = emb
    for i, k in enumerate(FILTER_SIZES):
        params[f"conv{k}_w"] = 0.1 * jax.random.normal(
            keys[1 + 2 * i], (NUM_FILTERS, 1, k, HID_DIM), jnp.float32)
        params[f"conv{k}_b"] = 0.01 * jax.random.normal(
            keys[2 + 2 * i], (NUM_FILTERS,), jnp.float32)
    params["fc_w"] = 0.1 * jax.random.normal(
        keys[-2], (OUT_DIM, NUM_FILTERS * len(FILTER_SIZES)), jnp.float32)
    params["fc_b"] = 0.01 * jax.random.normal(keys[-1], (OUT_DIM,), jnp.float32)
    return params


def pack_params(params):
    """One-time torch->TPU repacking (done at init, NOT per forward call)."""
    F = NUM_FILTERS
    # uniform-shift, lane-aligned weight stack: column (i*256 + j*32 + f) = w_j[f, 0, i, :]
    w_stack = jnp.zeros((HID_DIM, N_STACK), jnp.float32)
    for j, k in enumerate(FILTER_SIZES):
        w = params[f"conv{k}_w"][:, 0]                             # (F, k, H)
        for i in range(k):
            col = i * LANE_BLOCK + j * F
            w_stack = w_stack.at[:, col:col + F].set(w[:, i, :].T)
    # fold the embedding table into the matmul weights: EW = emb_pad(128,H) @ w_stack
    emb_pad = jnp.zeros((VOCAB_PAD, HID_DIM), jnp.float32).at[:N_VOCAB].set(params["embedding"])
    ew = (emb_pad @ w_stack).astype(jnp.bfloat16)                  # (128, 6144); pad row stays 0

    # time-validity mask, tiled over the folded batch: 0 = valid window start, -1e30 = invalid
    m = jnp.zeros((SEQ_LEN, LANE_BLOCK), jnp.float32)
    for j, k in enumerate(FILTER_SIZES):
        m = m.at[SEQ_LEN - k + 1:, j * F:(j + 1) * F].set(NEG_INF)
    mask = jnp.tile(m, (BATCH, 1))                                 # (B*L, 256)

    cbias = jnp.zeros((1, LANE_BLOCK), jnp.float32)
    for j, k in enumerate(FILTER_SIZES):
        cbias = cbias.at[0, j * F:(j + 1) * F].set(params[f"conv{k}_b"])

    fc_w = jnp.zeros((LANE_BLOCK, OUT_PAD), jnp.float32)
    fc_w = fc_w.at[:FEAT_DIM, :OUT_DIM].set(jnp.transpose(params["fc_w"]))
    fc_b = jnp.zeros((1, OUT_PAD), jnp.float32).at[0, :OUT_DIM].set(params["fc_b"])
    return {"ew": ew, "mask": mask, "cbias": cbias, "fc_w": fc_w, "fc_b": fc_b}


@jax.jit
def textcnn_forward(token_ids, packed):
    # Raw int32 ids go straight into the kernel (no XLA gather, no (B,L,H) HBM round trip).
    # Rows [ROWS, R_PAD) get id = -1 -> all-zero one-hot row -> zero Z row.
    ids = jnp.full((R_PAD, 1), -1, jnp.int32)
    ids = ids.at[:ROWS, 0].set(token_ids.reshape(ROWS).astype(jnp.int32))

    vmem = pl.BlockSpec(memory_space=pltpu.MemorySpace.VMEM)       # whole arrays in VMEM
    out = pl.pallas_call(
        _textcnn_kernel,
        out_shape=jax.ShapeDtypeStruct((BATCH, OUT_PAD), jnp.float32),
        in_specs=[vmem] * 6,
        out_specs=vmem,
    )(ids, packed["ew"], packed["mask"], packed["cbias"], packed["fc_w"], packed["fc_b"])
    # TODO(synk): nn.Dropout omitted (inference identity; train-mode RNG mask not modeled).
    return out[:, :OUT_DIM]


def textcnn_reference(token_ids, params):
    """Pure-JAX f32 reference mirroring the PyTorch forward (pre-hoist formulation)."""
    emb = params["embedding"][token_ids].astype(jnp.float32)       # (B, L, H)
    feats = []
    for k in FILTER_SIZES:
        w = params[f"conv{k}_w"]                                   # (F, 1, k, H)
        b = params[f"conv{k}_b"]
        l_out = SEQ_LEN - k + 1
        acc = jnp.zeros((BATCH, l_out, NUM_FILTERS), jnp.float32)
        for i in range(k):
            acc = acc + jnp.einsum("blh,fh->blf", emb[:, i:i + l_out, :], w[:, 0, i, :])
        acc = jax.nn.relu(acc + b[None, None, :])
        feats.append(jnp.max(acc, axis=1))
    feat = jnp.concatenate(feats, axis=-1)                         # (B, 7*F)
    return feat @ params["fc_w"].T + params["fc_b"]


if __name__ == "__main__":
    key = jax.random.PRNGKey(0)
    pkey, xkey = jax.random.split(key)
    params = init_params(pkey)
    packed = pack_params(params)
    x = jax.random.randint(xkey, (BATCH, SEQ_LEN), 0, N_VOCAB, dtype=jnp.int32)

    out = jax.block_until_ready(textcnn_forward(x, packed))
    assert out.shape == (BATCH, OUT_DIM) and out.dtype == jnp.float32

    ref = textcnn_reference(x, params)
    # bf16 conv weights (f32 accumulation) -> slightly looser tolerance than pure f32
    assert jnp.allclose(out, ref, atol=5e-3, rtol=5e-3), "mismatch vs pure-JAX reference"
    print("KERNEL_OK")
</pallas_src>

<mosaic_0001>
module attributes {stable_mosaic.version = 11 : i64} {
  func.func @_textcnn_kernel(%arg0: memref<88x1xi32, #tpu.memory_space<vmem>>, %arg1: memref<128x6144xbf16, #tpu.memory_space<vmem>>, %arg2: memref<64x256xf32, #tpu.memory_space<vmem>>, %arg3: memref<1x256xf32, #tpu.memory_space<vmem>>, %arg4: memref<256x128xf32, #tpu.memory_space<vmem>>, %arg5: memref<1x128xf32, #tpu.memory_space<vmem>>, %arg6: memref<2x128xf32, #tpu.memory_space<vmem>>) attributes {dimension_semantics = [], scalar_prefetch = 0 : i64, scratch_operands = 0 : i64, tpu.core_type = #tpu.core_type<tc>} {
    %c0 = arith.constant 0 : index
    %c0_0 = arith.constant 0 : index
    %0 = vector.load %arg0[%c0, %c0_0] : memref<88x1xi32, #tpu.memory_space<vmem>>, vector<88x1xi32>
    %1 = tpu.iota {dimensions = array<i32: 1>} : vector<88x128xi32>
    %2 = vector.broadcast %0 : vector<88x1xi32> to vector<88x128xi32>
    %3 = arith.cmpi eq, %2, %1 : vector<88x128xi32>
    %4 = arith.extui %3 : vector<88x128xi1> to vector<88x128xi32>
    %5 = arith.sitofp %4 : vector<88x128xi32> to vector<88x128xf32>
    %6 = arith.truncf %5 : vector<88x128xf32> to vector<88x128xbf16>
    %c0_1 = arith.constant 0 : index
    %c0_2 = arith.constant 0 : index
    %7 = vector.load %arg1[%c0_1, %c0_2] : memref<128x6144xbf16, #tpu.memory_space<vmem>>, vector<128x6144xbf16>
    %cst = arith.constant dense<0.000000e+00> : vector<88x6144xf32>
    %8 = tpu.matmul %6, %7, %cst {dimension_numbers = #tpu.dot_dimension_numbers<[1], [0], [0], [1], [0, 0, 1, 1], [], []>} : vector<88x128xbf16>, vector<128x6144xbf16>, vector<88x6144xf32> -> vector<88x6144xf32>
    %9 = vector.extract_strided_slice %8 {offsets = [0, 0], sizes = [64, 256], strides = [1, 1]} : vector<88x6144xf32> to vector<64x256xf32>
    %10 = vector.extract_strided_slice %8 {offsets = [1, 256], sizes = [64, 256], strides = [1, 1]} : vector<88x6144xf32> to vector<64x256xf32>
    %11 = arith.addf %9, %10 : vector<64x256xf32>
    %12 = vector.extract_strided_slice %8 {offsets = [2, 512], sizes = [64, 256], strides = [1, 1]} : vector<88x6144xf32> to vector<64x256xf32>
    %13 = arith.addf %11, %12 : vector<64x256xf32>
    %14 = vector.extract_strided_slice %8 {offsets = [3, 768], sizes = [64, 256], strides = [1, 1]} : vector<88x6144xf32> to vector<64x256xf32>
    %15 = arith.addf %13, %14 : vector<64x256xf32>
    %16 = vector.extract_strided_slice %8 {offsets = [4, 1024], sizes = [64, 256], strides = [1, 1]} : vector<88x6144xf32> to vector<64x256xf32>
    %17 = arith.addf %15, %16 : vector<64x256xf32>
    %18 = vector.extract_strided_slice %8 {offsets = [5, 1280], sizes = [64, 256], strides = [1, 1]} : vector<88x6144xf32> to vector<64x256xf32>
    %19 = arith.addf %17, %18 : vector<64x256xf32>
    %20 = vector.extract_strided_slice %8 {offsets = [6, 1536], sizes = [64, 256], strides = [1, 1]} : vector<88x6144xf32> to vector<64x256xf32>
    %21 = arith.addf %19, %20 : vector<64x256xf32>
    %22 = vector.extract_strided_slice %8 {offsets = [7, 1792], sizes = [64, 256], strides = [1, 1]} : vector<88x6144xf32> to vector<64x256xf32>
    %23 = arith.addf %21, %22 : vector<64x256xf32>
    %24 = vector.extract_strided_slice %8 {offsets = [8, 2048], sizes = [64, 256], strides = [1, 1]} : vector<88x6144xf32> to vector<64x256xf32>
    %25 = arith.addf %23, %24 : vector<64x256xf32>
    %26 = vector.extract_strided_slice %8 {offsets = [9, 2304], sizes = [64, 256], strides = [1, 1]} : vector<88x6144xf32> to vector<64x256xf32>
    %27 = arith.addf %25, %26 : vector<64x256xf32>
    %28 = vector.extract_strided_slice %8 {offsets = [10, 2560], sizes = [64, 256], strides = [1, 1]} : vector<88x6144xf32> to vector<64x256xf32>
    %29 = arith.addf %27, %28 : vector<64x256xf32>
    %30 = vector.extract_strided_slice %8 {offsets = [11, 2816], sizes = [64, 256], strides = [1, 1]} : vector<88x6144xf32> to vector<64x256xf32>
    %31 = arith.addf %29, %30 : vector<64x256xf32>
    %32 = vector.extract_strided_slice %8 {offsets = [12, 3072], sizes = [64, 256], strides = [1, 1]} : vector<88x6144xf32> to vector<64x256xf32>
    %33 = arith.addf %31, %32 : vector<64x256xf32>
    %34 = vector.extract_strided_slice %8 {offsets = [13, 3328], sizes = [64, 256], strides = [1, 1]} : vector<88x6144xf32> to vector<64x256xf32>
    %35 = arith.addf %33, %34 : vector<64x256xf32>
    %36 = vector.extract_strided_slice %8 {offsets = [14, 3584], sizes = [64, 256], strides = [1, 1]} : vector<88x6144xf32> to vector<64x256xf32>
    %37 = arith.addf %35, %36 : vector<64x256xf32>
    %38 = vector.extract_strided_slice %8 {offsets = [15, 3840], sizes = [64, 256], strides = [1, 1]} : vector<88x6144xf32> to vector<64x256xf32>
    %39 = arith.addf %37, %38 : vector<64x256xf32>
    %40 = vector.extract_strided_slice %8 {offsets = [16, 4096], sizes = [64, 256], strides = [1, 1]} : vector<88x6144xf32> to vector<64x256xf32>
    %41 = arith.addf %39, %40 : vector<64x256xf32>
    %42 = vector.extract_strided_slice %8 {offsets = [17, 4352], sizes = [64, 256], strides = [1, 1]} : vector<88x6144xf32> to vector<64x256xf32>
    %43 = arith.addf %41, %42 : vector<64x256xf32>
    %44 = vector.extract_strided_slice %8 {offsets = [18, 4608], sizes = [64, 256], strides = [1, 1]} : vector<88x6144xf32> to vector<64x256xf32>
    %45 = arith.addf %43, %44 : vector<64x256xf32>
    %46 = vector.extract_strided_slice %8 {offsets = [19, 4864], sizes = [64, 256], strides = [1, 1]} : vector<88x6144xf32> to vector<64x256xf32>
    %47 = arith.addf %45, %46 : vector<64x256xf32>
    %48 = vector.extract_strided_slice %8 {offsets = [20, 5120], sizes = [64, 256], strides = [1, 1]} : vector<88x6144xf32> to vector<64x256xf32>
    %49 = arith.addf %47, %48 : vector<64x256xf32>
    %50 = vector.extract_strided_slice %8 {offsets = [21, 5376], sizes = [64, 256], strides = [1, 1]} : vector<88x6144xf32> to vector<64x256xf32>
    %51 = arith.addf %49, %50 : vector<64x256xf32>
    %52 = vector.extract_strided_slice %8 {offsets = [22, 5632], sizes = [64, 256], strides = [1, 1]} : vector<88x6144xf32> to vector<64x256xf32>
    %53 = arith.addf %51, %52 : vector<64x256xf32>
    %54 = vector.extract_strided_slice %8 {offsets = [23, 5888], sizes = [64, 256], strides = [1, 1]} : vector<88x6144xf32> to vector<64x256xf32>
    %55 = arith.addf %53, %54 : vector<64x256xf32>
    %c0_3 = arith.constant 0 : index
    %c0_4 = arith.constant 0 : index
    %56 = vector.load %arg2[%c0_3, %c0_4] : memref<64x256xf32, #tpu.memory_space<vmem>>, vector<64x256xf32>
    %57 = arith.addf %55, %56 : vector<64x256xf32>
    %58 = vector.extract_strided_slice %57 {offsets = [0, 0], sizes = [32, 256], strides = [1, 1]} : vector<64x256xf32> to vector<32x256xf32>
    %cst_5 = arith.constant dense<0xFF800000> : vector<256xf32>
    %59 = vector.multi_reduction <maximumf>, %58, %cst_5 [0] : vector<32x256xf32> to vector<256xf32>
    %60 = vector.shape_cast %59 : vector<256xf32> to vector<1x256xf32>
    %61 = vector.extract_strided_slice %57 {offsets = [32, 0], sizes = [32, 256], strides = [1, 1]} : vector<64x256xf32> to vector<32x256xf32>
    %cst_6 = arith.constant dense<0xFF800000> : vector<256xf32>
    %62 = vector.multi_reduction <maximumf>, %61, %cst_6 [0] : vector<32x256xf32> to vector<256xf32>
    %63 = vector.shape_cast %62 : vector<256xf32> to vector<1x256xf32>
    %64 = tpu.concatenate %60, %63 in 0 : vector<1x256xf32>, vector<1x256xf32> -> vector<2x256xf32>
    %c0_7 = arith.constant 0 : index
    %c0_8 = arith.constant 0 : index
    %65 = vector.load %arg3[%c0_7, %c0_8] : memref<1x256xf32, #tpu.memory_space<vmem>>, vector<1x256xf32>
    %66 = vector.broadcast %65 : vector<1x256xf32> to vector<2x256xf32>
    %67 = arith.addf %64, %66 : vector<2x256xf32>
    %cst_9 = arith.constant 0.000000e+00 : f32
    %68 = vector.broadcast %cst_9 : f32 to vector<2x256xf32>
    %69 = arith.maximumf %67, %68 : vector<2x256xf32>
    %c0_10 = arith.constant 0 : index
    %c0_11 = arith.constant 0 : index
    %70 = vector.load %arg4[%c0_10, %c0_11] : memref<256x128xf32, #tpu.memory_space<vmem>>, vector<256x128xf32>
    %cst_12 = arith.constant dense<0.000000e+00> : vector<2x128xf32>
    %71 = tpu.matmul %69, %70, %cst_12 {dimension_numbers = #tpu.dot_dimension_numbers<[1], [0], [0], [1], [0, 0, 1, 1], [], []>} : vector<2x256xf32>, vector<256x128xf32>, vector<2x128xf32> -> vector<2x128xf32>
    %c0_13 = arith.constant 0 : index
    %c0_14 = arith.constant 0 : index
    %72 = vector.load %arg5[%c0_13, %c0_14] : memref<1x128xf32, #tpu.memory_space<vmem>>, vector<1x128xf32>
    %73 = vector.broadcast %72 : vector<1x128xf32> to vector<2x128xf32>
    %74 = arith.addf %71, %73 : vector<2x128xf32>
    %c0_15 = arith.constant 0 : index
    %c0_16 = arith.constant 0 : index
    %75 = vector.load %arg6[%c0_15, %c0_16] : memref<2x128xf32, #tpu.memory_space<vmem>>, vector<2x128xf32>
    tpu.vector_store %arg6[%c0_15, %c0_16], %74 {strides = array<i32>} : memref<2x128xf32, #tpu.memory_space<vmem>>, vector<2x128xf32>,
    return
  }
}

</mosaic_0001>

<llo_original>
// kernel: textcnn_forward.1
$region0: #{textcnn_forward.1}
  #allocation0 [shape = 'u32[]', space=smem, size = 0x4, offset = 0x4, fixed_abs, tag = 'smem constant byte address 0x4 - core index']
  #allocation1 [shape = 'u32[72,128]{1,0:T(1,128)}', space=vmem, size = 0x9000, scoped, tag = 'internal scratch']
  %s0 = inlined_call_operand.vmem [shape: s32[88,1], index: 0, kind: input, shape index: {}]
  %s1 = inlined_call_operand.hbm [shape: bf16[128,6144], index: 1, kind: input, shape index: {}]
  %s2 = inlined_call_operand.hbm [shape: f32[64,256], index: 2, kind: input, shape index: {}]
  %s3 = inlined_call_operand.hbm [shape: f32[1,256], index: 3, kind: input, shape index: {}]
  %s4 = inlined_call_operand.hbm [shape: f32[256,128], index: 4, kind: input, shape index: {}]
  %s5 = inlined_call_operand.hbm [shape: f32[1,128], index: 5, kind: input, shape index: {}]
  %s6 = inlined_call_operand.hbm [shape: f32[2,128], index: 6, kind: output, shape index: {}]
  %s7 = sld [smem:[#allocation0]]
  $region54: #{textcnn_forward.1} parent=0
    _
  %s9 = ssub.s32 1, %s7
  %s10 = scalar_select 0, %s9, %s7
  $region1: #{textcnn_forward.1} parent=0
    #allocation2 [shape = 'u8[1572864]{0}', space=vmem, size = 0x180000, scoped, tag = 'input window, operand 1, single buffered']
    #allocation3 [shape = 's32[1]{0}', space=sflag, size = 0x4, scoped, tag = 'scoped memory for textcnn_forward.1']
    #allocation4 [shape = 's32[1]{0}', space=sflag, size = 0x4, scoped, tag = 'scoped memory for textcnn_forward.1']
    #allocation5 [shape = 'u8[65536]{0}', space=vmem, size = 0x10000, scoped, tag = 'input window, operand 2, single buffered']
    #allocation6 [shape = 's32[1]{0}', space=sflag, size = 0x4, scoped, tag = 'scoped memory for textcnn_forward.1']
    #allocation7 [shape = 'u8[1024]{0}', space=vmem, size = 0x400, scoped, tag = 'input window, operand 3, single buffered']
    #allocation8 [shape = 'u8[131072]{0}', space=vmem, size = 0x20000, scoped, tag = 'input window, operand 4, single buffered']
    #allocation9 [shape = 's32[1]{0}', space=sflag, size = 0x4, scoped, tag = 'scoped memory for textcnn_forward.1']
    #allocation10 [shape = 'u8[512]{0}', space=vmem, size = 0x400, scoped, tag = 'input window, operand 5, single buffered']
    #allocation11 [shape = 'u8[1024]{0}', space=vmem, size = 0x400, scoped, tag = 'output window, operand 0, single buffered']
    %11 = vsyncpa [#allocation3], 0
    %12 = vsyncpa [#allocation6], 0
    %13 = vsyncpa [#allocation9], 0
    %14 = vsyncpa [#allocation4], 0
    // Predicated region
    $region2: #{textcnn_forward.1} parent=1 // pred_check
      _
    $region3: #{textcnn_forward.1} parent=1 // pred_check_branch
      %16 = sbr.rel (0) target = $region5
    $region4: #{textcnn_forward.1} parent=1 // pred_region
      _
    $region5: #{textcnn_forward.1} parent=1 // pred_fallthru
      _
    // Predicated region
    $region6: #{textcnn_forward.1} parent=1 // pred_check
      _
    $region7: #{textcnn_forward.1} parent=1 // pred_check_branch
      %18 = sbr.rel (0) target = $region9
    $region8: #{textcnn_forward.1} parent=1 // pred_region
      %20 = vsyncadd [#allocation3], 0
      %s21 = sshll.u32 %s1, 4
      %s22 = int_to_ptr.hbm [resolvable:$true] %s21
      %s23 = sshll.u32 [#allocation2], 4
      %s24 = int_to_ptr.vmem [resolvable:$true] %s23
      %29 = dma.hbm_to_vmem [thread:$0]  %s22, 49152, %s24, [#allocation3], 3072, 3072, 192
    $region9: #{textcnn_forward.1} parent=1 // pred_fallthru
      _
    // Predicated region
    $region10: #{textcnn_forward.1} parent=1 // pred_check
      _
    $region11: #{textcnn_forward.1} parent=1 // pred_check_branch
      %31 = sbr.rel (0) target = $region13
    $region12: #{textcnn_forward.1} parent=1 // pred_region
      %33 = vsyncadd [#allocation6], 0
      %s34 = sshll.u32 %s2, 4
      %s35 = int_to_ptr.hbm [resolvable:$true] %s34
      %s36 = sshll.u32 [#allocation5], 4
      %s37 = int_to_ptr.vmem [resolvable:$true] %s36
      %42 = dma.hbm_to_vmem [thread:$0]  %s35, 2048, %s37, [#allocation6], 256, 256, 16
    $region13: #{textcnn_forward.1} parent=1 // pred_fallthru
      _
    // Predicated region
    $region14: #{textcnn_forward.1} parent=1 // pred_check
      _
    $region15: #{textcnn_forward.1} parent=1 // pred_check_branch
      %44 = sbr.rel (0) target = $region17
    $region16: #{textcnn_forward.1} parent=1 // pred_region
      %46 = vsyncadd [#allocation6], 0
      %s48 = sshll.u32 %s3, 4
      %s49 = int_to_ptr.hbm [resolvable:$true] %s48
      %s50 = sshll.u32 [#allocation7], 4
      %s51 = int_to_ptr.vmem [resolvable:$true] %s50
      %53 = dma.hbm_to_vmem [thread:$0]  %s49, 32, %s51, [#allocation6]
    $region17: #{textcnn_forward.1} parent=1 // pred_fallthru
      _
    // Predicated region
    $region18: #{textcnn_forward.1} parent=1 // pred_check
      _
    $region19: #{textcnn_forward.1} parent=1 // pred_check_branch
      %55 = sbr.rel (0) target = $region21
    $region20: #{textcnn_forward.1} parent=1 // pred_region
      %57 = vsyncadd [#allocation9], 0
      %s58 = sshll.u32 %s4, 4
      %s59 = int_to_ptr.hbm [resolvable:$true] %s58
      %s60 = sshll.u32 [#allocation8], 4
      %s61 = int_to_ptr.vmem [resolvable:$true] %s60
      %66 = dma.hbm_to_vmem [thread:$0]  %s59, 4096, %s61, [#allocation9], 128, 128, 8
    $region21: #{textcnn_forward.1} parent=1 // pred_fallthru
      _
    // Predicated region
    $region22: #{textcnn_forward.1} parent=1 // pred_check
      _
    $region23: #{textcnn_forward.1} parent=1 // pred_check_branch
      %68 = sbr.rel (0) target = $region25
    $region24: #{textcnn_forward.1} parent=1 // pred_region
      %70 = vsyncadd [#allocation9], 0
      %s72 = sshll.u32 %s5, 4
      %s73 = int_to_ptr.hbm [resolvable:$true] %s72
      %s74 = sshll.u32 [#allocation10], 4
      %s75 = int_to_ptr.vmem [resolvable:$true] %s74
      %77 = dma.hbm_to_vmem [thread:$0]  %s73, 16, %s75, [#allocation9]
    $region25: #{textcnn_forward.1} parent=1 // pred_fallthru
      _
    // Predicated region
    $region26: #{textcnn_forward.1} parent=1 // pred_check
      _
    $region27: #{textcnn_forward.1} parent=1 // pred_check_branch
      %79 = sbr.rel (0) target = $region29
    $region28: #{textcnn_forward.1} parent=1 // pred_region
      %81 = dma.done [#allocation3], 49152
    $region29: #{textcnn_forward.1} parent=1 // pred_fallthru
      _
    // Predicated region
    $region30: #{textcnn_forward.1} parent=1 // pred_check
      _
    $region31: #{textcnn_forward.1} parent=1 // pred_check_branch
      %83 = sbr.rel (0) target = $region33
    $region32: #{textcnn_forward.1} parent=1 // pred_region
      %85 = dma.done [#allocation6], 2048
    $region33: #{textcnn_forward.1} parent=1 // pred_fallthru
      _
    // Predicated region
    $region34: #{textcnn_forward.1} parent=1 // pred_check
      _
    $region35: #{textcnn_forward.1} parent=1 // pred_check_branch
      %87 = sbr.rel (0) target = $region37
    $region36: #{textcnn_forward.1} parent=1 // pred_region
      %89 = dma.done [#allocation6], 32
    $region37: #{textcnn_forward.1} parent=1 // pred_fallthru
      _
    // Predicated region
    $region38: #{textcnn_forward.1} parent=1 // pred_check
      _
    $region39: #{textcnn_forward.1} parent=1 // pred_check_branch
      %91 = sbr.rel (0) target = $region41
    $region40: #{textcnn_forward.1} parent=1 // pred_region
      %93 = dma.done [#allocation9], 4096
    $region41: #{textcnn_forward.1} parent=1 // pred_fallthru
      _
    // Predicated region
    $region42: #{textcnn_forward.1} parent=1 // pred_check
      _
    $region43: #{textcnn_forward.1} parent=1 // pred_check_branch
      %95 = sbr.rel (0) target = $region45
    $region44: #{textcnn_forward.1} parent=1 // pred_region
      %97 = dma.done [#allocation9], 16
    $region45: #{textcnn_forward.1} parent=1 // pred_fallthru
      _
    %v98 = vld [vmem:[%s0] sm:$0xff]
    %v99 = vld [vmem:[%s0 + $0x8] sm:$0xff]
    %v100 = vld [vmem:[%s0 + $0x10] sm:$0xff]
    %v101 = vld [vmem:[%s0 + $0x18] sm:$0xff]
    %v102 = vld [vmem:[%s0 + $0x20] sm:$0xff]
    %v103 = vld [vmem:[%s0 + $0x28] sm:$0xff]
    %v104 = vld [vmem:[%s0 + $0x30] sm:$0xff]
    %v105 = vld [vmem:[%s0 + $0x38] sm:$0xff]
    %v106 = vld [vmem:[%s0 + $0x40] sm:$0xff]
    %v107 = vld [vmem:[%s0 + $0x48] sm:$0xff]
    %v108 = vld [vmem:[%s0 + $0x50] sm:$0xff]
    %v109 = vlaneseq
    %v110 = vand.u32 %v109, 127
    %111 = vset.pattern.permute.xlu0 0
    %112 = vperm.xlu0 %111, %v98
    %v113 = vpop.permute.xlu0 %112
    %114 = vset.pattern.permute.xlu0 0
    %115 = vperm.xlu0 %114, %v99
    %v116 = vpop.permute.xlu0 %115
    %117 = vset.pattern.permute.xlu0 0
    %118 = vperm.xlu0 %117, %v100
    %v119 = vpop.permute.xlu0 %118
    %120 = vset.pattern.permute.xlu0 0
    %121 = vperm.xlu0 %120, %v101
    %v122 = vpop.permute.xlu0 %121
    %123 = vset.pattern.permute.xlu0 0
    %124 = vperm.xlu0 %123, %v102
    %v125 = vpop.permute.xlu0 %124
    %126 = vset.pattern.permute.xlu0 0
    %127 = vperm.xlu0 %126, %v103
    %v128 = vpop.permute.xlu0 %127
    %129 = vset.pattern.permute.xlu0 0
    %130 = vperm.xlu0 %129, %v104
    %v131 = vpop.permute.xlu0 %130
    %132 = vset.pattern.permute.xlu0 0
    %133 = vperm.xlu0 %132, %v105
    %v134 = vpop.permute.xlu0 %133
    %135 = vset.pattern.permute.xlu0 0
    %136 = vperm.xlu0 %135, %v106
    %v137 = vpop.permute.xlu0 %136
    %138 = vset.pattern.permute.xlu0 0
    %139 = vperm.xlu0 %138, %v107
    %v140 = vpop.permute.xlu0 %139
    %141 = vset.pattern.permute.xlu0 0
    %142 = vperm.xlu0 %141, %v108
    %v143 = vpop.permute.xlu0 %142
    %vm144 = vcmp.eq.s32.totalorder %v113, %v110
    %vm145 = vcmp.eq.s32.totalorder %v116, %v110
    %vm146 = vcmp.eq.s32.totalorder %v119, %v110
    %vm147 = vcmp.eq.s32.totalorder %v122, %v110
    %vm148 = vcmp.eq.s32.totalorder %v125, %v110
    %vm149 = vcmp.eq.s32.totalorder %v128, %v110
    %vm150 = vcmp.eq.s32.totalorder %v131, %v110
    %vm151 = vcmp.eq.s32.totalorder %v134, %v110
    %vm152 = vcmp.eq.s32.totalorder %v137, %v110
    %vm153 = vcmp.eq.s32.totalorder %v140, %v110
    %vm154 = vcmp.eq.s32.totalorder %v143, %v110
    %v155 = vsel %vm144, 1, 0
    %v156 = vsel %vm145, 1, 0
    %v157 = vsel %vm146, 1, 0
    %v158 = vsel %vm147, 1, 0
    %v159 = vsel %vm148, 1, 0
    %v160 = vsel %vm149, 1, 0
    %v161 = vsel %vm150, 1, 0
    %v162 = vsel %vm151, 1, 0
    %v163 = vsel %vm152, 1, 0
    %v164 = vsel %vm153, 1, 0
    %v165 = vsel %vm154, 1, 0
    %v166 = vcvt.s32.f32 %v155
    %v167 = vcvt.s32.f32 %v156
    %v168 = vcvt.s32.f32 %v157
    %v169 = vcvt.s32.f32 %v158
    %v170 = vcvt.s32.f32 %v159
    %v171 = vcvt.s32.f32 %v160
    %v172 = vcvt.s32.f32 %v161
    %v173 = vcvt.s32.f32 %v162
    %v174 = vcvt.s32.f32 %v163
    %v175 = vcvt.s32.f32 %v164
    %v176 = vcvt.s32.f32 %v165
    %v177 = vpack.c.bf16 %v167, %v166
    %v178 = vpack.c.bf16 %v169, %v168
    %v179 = vpack.c.bf16 %v171, %v170
    %v180 = vpack.c.bf16 %v173, %v172
    %v181 = vpack.c.bf16 %v175, %v174
    %v182 = vpack.c.bf16 %v176, %v176
    %v183 = vld [vmem:[#allocation2] sm:$0xff]
    %v184 = vld [vmem:[#allocation2 + $0x8] sm:$0xff]
    %v185 = vld [vmem:[#allocation2 + $0x10] sm:$0xff]
    %v186 = vld [vmem:[#allocation2 + $0x18] sm:$0xff]
    %v187 = vld [vmem:[#allocation2 + $0x20] sm:$0xff]
    %v188 = vld [vmem:[#allocation2 + $0x28] sm:$0xff]
    %v189 = vld [vmem:[#allocation2 + $0x30] sm:$0xff]
    %v190 = vld [vmem:[#allocation2 + $0x38] sm:$0xff]
    %v191 = vld [vmem:[#allocation2 + $0x40] sm:$0xff]
    %v192 = vld [vmem:[#allocation2 + $0x48] sm:$0xff]
    %v193 = vld [vmem:[#allocation2 + $0x50] sm:$0xff]
    %v194 = vld [vmem:[#allocation2 + $0x58] sm:$0xff]
    %v195 = vld [vmem:[#allocation2 + $0x60] sm:$0xff]
    %v196 = vld [vmem:[#allocation2 + $0x68] sm:$0xff]
    %v197 = vld [vmem:[#allocation2 + $0x70] sm:$0xff]
    %v198 = vld [vmem:[#allocation2 + $0x78] sm:$0xff]
    %v199 = vld [vmem:[#allocation2 + $0x80] sm:$0xff]
    %v200 = vld [vmem:[#allocation2 + $0x88] sm:$0xff]
    %v201 = vld [vmem:[#allocation2 + $0x90] sm:$0xff]
    %v202 = vld [vmem:[#allocation2 + $0x98] sm:$0xff]
    %v203 = vld [vmem:[#allocation2 + $0xa0] sm:$0xff]
    %v204 = vld [vmem:[#allocation2 + $0xa8] sm:$0xff]
    %v205 = vld [vmem:[#allocation2 + $0xb0] sm:$0xff]
    %v206 = vld [vmem:[#allocation2 + $0xb8] sm:$0xff]
    %v207 = vld [vmem:[#allocation2 + $0xc0] sm:$0xff]
    %v208 = vld [vmem:[#allocation2 + $0xc8] sm:$0xff]
    %v209 = vld [vmem:[#allocation2 + $0xd0] sm:$0xff]
    %v210 = vld [vmem:[#allocation2 + $0xd8] sm:$0xff]
    %v211 = vld [vmem:[#allocation2 + $0xe0] sm:$0xff]
    %v212 = vld [vmem:[#allocation2 + $0xe8] sm:$0xff]
    %v213 = vld [vmem:[#allocation2 + $0xf0] sm:$0xff]
    %v214 = vld [vmem:[#allocation2 + $0xf8] sm:$0xff]
    %v215 = vld [vmem:[#allocation2 + $0x100] sm:$0xff]
    %v216 = vld [vmem:[#allocation2 + $0x108] sm:$0xff]
    %v217 = vld [vmem:[#allocation2 + $0x110] sm:$0xff]
    %v218 = vld [vmem:[#allocation2 + $0x118] sm:$0xff]
    %v219 = vld [vmem:[#allocation2 + $0x120] sm:$0xff]
    %v220 = vld [vmem:[#allocation2 + $0x128] sm:$0xff]
    %v221 = vld [vmem:[#allocation2 + $0x130] sm:$0xff]
    %v222 = vld [vmem:[#allocation2 + $0x138] sm:$0xff]
    %v223 = vld [vmem:[#allocation2 + $0x140] sm:$0xff]
    %v224 = vld [vmem:[#allocation2 + $0x148] sm:$0xff]
    %v225 = vld [vmem:[#allocation2 + $0x150] sm:$0xff]
    %v226 = vld [vmem:[#allocation2 + $0x158] sm:$0xff]
    %v227 = vld [vmem:[#allocation2 + $0x160] sm:$0xff]
    %v228 = vld [vmem:[#allocation2 + $0x168] sm:$0xff]
    %v229 = vld [vmem:[#allocation2 + $0x170] sm:$0xff]
    %v230 = vld [vmem:[#allocation2 + $0x178] sm:$0xff]
    %v231 = vld [vmem:[#allocation2 + $0x180] sm:$0xff]
    %v232 = vld [vmem:[#allocation2 + $0x188] sm:$0xff]
    %v233 = vld [vmem:[#allocation2 + $0x190] sm:$0xff]
    %v234 = vld [vmem:[#allocation2 + $0x198] sm:$0xff]
    %v235 = vld [vmem:[#allocation2 + $0x1a0] sm:$0xff]
    %v236 = vld [vmem:[#allocation2 + $0x1a8] sm:$0xff]
    %v237 = vld [vmem:[#allocation2 + $0x1b0] sm:$0xff]
    %v238 = vld [vmem:[#allocation2 + $0x1b8] sm:$0xff]
    %v239 = vld [vmem:[#allocation2 + $0x1c0] sm:$0xff]
    %v240 = vld [vmem:[#allocation2 + $0x1c8] sm:$0xff]
    %v241 = vld [vmem:[#allocation2 + $0x1d0] sm:$0xff]
    %v242 = vld [vmem:[#allocation2 + $0x1d8] sm:$0xff]
    %v243 = vld [vmem:[#allocation2 + $0x1e0] sm:$0xff]
    %v244 = vld [vmem:[#allocation2 + $0x1e8] sm:$0xff]
    %v245 = vld [vmem:[#allocation2 + $0x1f0] sm:$0xff]
    %v246 = vld [vmem:[#allocation2 + $0x1f8] sm:$0xff]
    %v247 = vld [vmem:[#allocation2 + $0x200] sm:$0xff]
    %v248 = vld [vmem:[#allocation2 + $0x208] sm:$0xff]
    %v249 = vld [vmem:[#allocation2 + $0x210] sm:$0xff]
    %v250 = vld [vmem:[#allocation2 + $0x218] sm:$0xff]
    %v251 = vld [vmem:[#allocation2 + $0x220] sm:$0xff]
    %v252 = vld [vmem:[#allocation2 + $0x228] sm:$0xff]
    %v253 = vld [vmem:[#allocation2 + $0x230] sm:$0xff]
    %v254 = vld [vmem:[#allocation2 + $0x238] sm:$0xff]
    %v255 = vld [vmem:[#allocation2 + $0x240] sm:$0xff]
    %v256 = vld [vmem:[#allocation2 + $0x248] sm:$0xff]
    %v257 = vld [vmem:[#allocation2 + $0x250] sm:$0xff]
    %v258 = vld [vmem:[#allocation2 + $0x258] sm:$0xff]
    %v259 = vld [vmem:[#allocation2 + $0x260] sm:$0xff]
    %v260 = vld [vmem:[#allocation2 + $0x268] sm:$0xff]
    %v261 = vld [vmem:[#allocation2 + $0x270] sm:$0xff]
    %v262 = vld [vmem:[#allocation2 + $0x278] sm:$0xff]
    %v263 = vld [vmem:[#allocation2 + $0x280] sm:$0xff]
    %v264 = vld [vmem:[#allocation2 + $0x288] sm:$0xff]
    %v265 = vld [vmem:[#allocation2 + $0x290] sm:$0xff]
    %v266 = vld [vmem:[#allocation2 + $0x298] sm:$0xff]
    %v267 = vld [vmem:[#allocation2 + $0x2a0] sm:$0xff]
    %v268 = vld [vmem:[#allocation2 + $0x2a8] sm:$0xff]
    %v269 = vld [vmem:[#allocation2 + $0x2b0] sm:$0xff]
    %v270 = vld [vmem:[#allocation2 + $0x2b8] sm:$0xff]
    %v271 = vld [vmem:[#allocation2 + $0x2c0] sm:$0xff]
    %v272 = vld [vmem:[#allocation2 + $0x2c8] sm:$0xff]
    %v273 = vld [vmem:[#allocation2 + $0x2d0] sm:$0xff]
    %v274 = vld [vmem:[#allocation2 + $0x2d8] sm:$0xff]
    %v275 = vld [vmem:[#allocation2 + $0x2e0] sm:$0xff]
    %v276 = vld [vmem:[#allocation2 + $0x2e8] sm:$0xff]
    %v277 = vld [vmem:[#allocation2 + $0x2f0] sm:$0xff]
    %v278 = vld [vmem:[#allocation2 + $0x2f8] sm:$0xff]
    %v279 = vld [vmem:[#allocation2 + $0x300] sm:$0xff]
    %v280 = vld [vmem:[#allocation2 + $0x308] sm:$0xff]
    %v281 = vld [vmem:[#allocation2 + $0x310] sm:$0xff]
    %v282 = vld [vmem:[#allocation2 + $0x318] sm:$0xff]
    %v283 = vld [vmem:[#allocation2 + $0x320] sm:$0xff]
    %v284 = vld [vmem:[#allocation2 + $0x328] sm:$0xff]
    %v285 = vld [vmem:[#allocation2 + $0x330] sm:$0xff]
    %v286 = vld [vmem:[#allocation2 + $0x338] sm:$0xff]
    %v287 = vld [vmem:[#allocation2 + $0x340] sm:$0xff]
    %v288 = vld [vmem:[#allocation2 + $0x348] sm:$0xff]
    %v289 = vld [vmem:[#allocation2 + $0x350] sm:$0xff]
    %v290 = vld [vmem:[#allocation2 + $0x358] sm:$0xff]
    %v291 = vld [vmem:[#allocation2 + $0x360] sm:$0xff]
    %v292 = vld [vmem:[#allocation2 + $0x368] sm:$0xff]
    %v293 = vld [vmem:[#allocation2 + $0x370] sm:$0xff]
    %v294 = vld [vmem:[#allocation2 + $0x378] sm:$0xff]
    %v295 = vld [vmem:[#allocation2 + $0x380] sm:$0xff]
    %v296 = vld [vmem:[#allocation2 + $0x388] sm:$0xff]
    %v297 = vld [vmem:[#allocation2 + $0x390] sm:$0xff]
    %v298 = vld [vmem:[#allocation2 + $0x398] sm:$0xff]
    %v299 = vld [vmem:[#allocation2 + $0x3a0] sm:$0xff]
    %v300 = vld [vmem:[#allocation2 + $0x3a8] sm:$0xff]
    %v301 = vld [vmem:[#allocation2 + $0x3b0] sm:$0xff]
    %v302 = vld [vmem:[#allocation2 + $0x3b8] sm:$0xff]
    %v303 = vld [vmem:[#allocation2 + $0x3c0] sm:$0xff]
    %v304 = vld [vmem:[#allocation2 + $0x3c8] sm:$0xff]
    %v305 = vld [vmem:[#allocation2 + $0x3d0] sm:$0xff]
    %v306 = vld [vmem:[#allocation2 + $0x3d8] sm:$0xff]
    %v307 = vld [vmem:[#allocation2 + $0x3e0] sm:$0xff]
    %v308 = vld [vmem:[#allocation2 + $0x3e8] sm:$0xff]
    %v309 = vld [vmem:[#allocation2 + $0x3f0] sm:$0xff]
    %v310 = vld [vmem:[#allocation2 + $0x3f8] sm:$0xff]
    %v311 = vld [vmem:[#allocation2 + $0x400] sm:$0xff]
    %v312 = vld [vmem:[#allocation2 + $0x408] sm:$0xff]
    %v313 = vld [vmem:[#allocation2 + $0x410] sm:$0xff]
    %v314 = vld [vmem:[#allocation2 + $0x418] sm:$0xff]
    %v315 = vld [vmem:[#allocation2 + $0x420] sm:$0xff]
    %v316 = vld [vmem:[#allocation2 + $0x428] sm:$0xff]
    %v317 = vld [vmem:[#allocation2 + $0x430] sm:$0xff]
    %v318 = vld [vmem:[#allocation2 + $0x438] sm:$0xff]
    %v319 = vld [vmem:[#allocation2 + $0x440] sm:$0xff]
    %v320 = vld [vmem:[#allocation2 + $0x448] sm:$0xff]
    %v321 = vld [vmem:[#allocation2 + $0x450] sm:$0xff]
    %v322 = vld [vmem:[#allocation2 + $0x458] sm:$0xff]
    %v323 = vld [vmem:[#allocation2 + $0x460] sm:$0xff]
    %v324 = vld [vmem:[#allocation2 + $0x468] sm:$0xff]
    %v325 = vld [vmem:[#allocation2 + $0x470] sm:$0xff]
    %v326 = vld [vmem:[#allocation2 + $0x478] sm:$0xff]
    %v327 = vld [vmem:[#allocation2 + $0x480] sm:$0xff]
    %v328 = vld [vmem:[#allocation2 + $0x488] sm:$0xff]
    %v329 = vld [vmem:[#allocation2 + $0x490] sm:$0xff]
    %v330 = vld [vmem:[#allocation2 + $0x498] sm:$0xff]
    %v331 = vld [vmem:[#allocation2 + $0x4a0] sm:$0xff]
    %v332 = vld [vmem:[#allocation2 + $0x4a8] sm:$0xff]
    %v333 = vld [vmem:[#allocation2 + $0x4b0] sm:$0xff]
    %v334 = vld [vmem:[#allocation2 + $0x4b8] sm:$0xff]
    %v335 = vld [vmem:[#allocation2 + $0x4c0] sm:$0xff]
    %v336 = vld [vmem:[#allocation2 + $0x4c8] sm:$0xff]
    %v337 = vld [vmem:[#allocation2 + $0x4d0] sm:$0xff]
    %v338 = vld [vmem:[#allocation2 + $0x4d8] sm:$0xff]
    %v339 = vld [vmem:[#allocation2 + $0x4e0] sm:$0xff]
    %v340 = vld [vmem:[#allocation2 + $0x4e8] sm:$0xff]
    %v341 = vld [vmem:[#allocation2 + $0x4f0] sm:$0xff]
    %v342 = vld [vmem:[#allocation2 + $0x4f8] sm:$0xff]
    %v343 = vld [vmem:[#allocation2 + $0x500] sm:$0xff]
    %v344 = vld [vmem:[#allocation2 + $0x508] sm:$0xff]
    %v345 = vld [vmem:[#allocation2 + $0x510] sm:$0xff]
    %v346 = vld [vmem:[#allocation2 + $0x518] sm:$0xff]
    %v347 = vld [vmem:[#allocation2 + $0x520] sm:$0xff]
    %v348 = vld [vmem:[#allocation2 + $0x528] sm:$0xff]
    %v349 = vld [vmem:[#allocation2 + $0x530] sm:$0xff]
    %v350 = vld [vmem:[#allocation2 + $0x538] sm:$0xff]
    %v351 = vld [vmem:[#allocation2 + $0x540] sm:$0xff]
    %v352 = vld [vmem:[#allocation2 + $0x548] sm:$0xff]
    %v353 = vld [vmem:[#allocation2 + $0x550] sm:$0xff]
    %v354 = vld [vmem:[#allocation2 + $0x558] sm:$0xff]
    %v355 = vld [vmem:[#allocation2 + $0x560] sm:$0xff]
    %v356 = vld [vmem:[#allocation2 + $0x568] sm:$0xff]
    %v357 = vld [vmem:[#allocation2 + $0x570] sm:$0xff]
    %v358 = vld [vmem:[#allocation2 + $0x578] sm:$0xff]
    %v359 = vld [vmem:[#allocation2 + $0x580] sm:$0xff]
    %v360 = vld [vmem:[#allocation2 + $0x588] sm:$0xff]
    %v361 = vld [vmem:[#allocation2 + $0x590] sm:$0xff]
    %v362 = vld [vmem:[#allocation2 + $0x598] sm:$0xff]
    %v363 = vld [vmem:[#allocation2 + $0x5a0] sm:$0xff]
    %v364 = vld [vmem:[#allocation2 + $0x5a8] sm:$0xff]
    %v365 = vld [vmem:[#allocation2 + $0x5b0] sm:$0xff]
    %v366 = vld [vmem:[#allocation2 + $0x5b8] sm:$0xff]
    %v367 = vld [vmem:[#allocation2 + $0x5c0] sm:$0xff]
    %v368 = vld [vmem:[#allocation2 + $0x5c8] sm:$0xff]
    %v369 = vld [vmem:[#allocation2 + $0x5d0] sm:$0xff]
    %v370 = vld [vmem:[#allocation2 + $0x5d8] sm:$0xff]
    %v371 = vld [vmem:[#allocation2 + $0x5e0] sm:$0xff]
    %v372 = vld [vmem:[#allocation2 + $0x5e8] sm:$0xff]
    %v373 = vld [vmem:[#allocation2 + $0x5f0] sm:$0xff]
    %v374 = vld [vmem:[#allocation2 + $0x5f8] sm:$0xff]
    %v375 = vld [vmem:[#allocation2 + $0x600] sm:$0xff]
    %v376 = vld [vmem:[#allocation2 + $0x608] sm:$0xff]
    %v377 = vld [vmem:[#allocation2 + $0x610] sm:$0xff]
    %v378 = vld [vmem:[#allocation2 + $0x618] sm:$0xff]
    %v379 = vld [vmem:[#allocation2 + $0x620] sm:$0xff]
    %v380 = vld [vmem:[#allocation2 + $0x628] sm:$0xff]
    %v381 = vld [vmem:[#allocation2 + $0x630] sm:$0xff]
    %v382 = vld [vmem:[#allocation2 + $0x638] sm:$0xff]
    %v383 = vld [vmem:[#allocation2 + $0x640] sm:$0xff]
    %v384 = vld [vmem:[#allocation2 + $0x648] sm:$0xff]
    %v385 = vld [vmem:[#allocation2 + $0x650] sm:$0xff]
    %v386 = vld [vmem:[#allocation2 + $0x658] sm:$0xff]
    %v387 = vld [vmem:[#allocation2 + $0x660] sm:$0xff]
    %v388 = vld [vmem:[#allocation2 + $0x668] sm:$0xff]
    %v389 = vld [vmem:[#allocation2 + $0x670] sm:$0xff]
    %v390 = vld [vmem:[#allocation2 + $0x678] sm:$0xff]
    %v391 = vld [vmem:[#allocation2 + $0x680] sm:$0xff]
    %v392 = vld [vmem:[#allocation2 + $0x688] sm:$0xff]
    %v393 = vld [vmem:[#allocation2 + $0x690] sm:$0xff]
    %v394 = vld [vmem:[#allocation2 + $0x698] sm:$0xff]
    %v395 = vld [vmem:[#allocation2 + $0x6a0] sm:$0xff]
    %v396 = vld [vmem:[#allocation2 + $0x6a8] sm:$0xff]
    %v397 = vld [vmem:[#allocation2 + $0x6b0] sm:$0xff]
    %v398 = vld [vmem:[#allocation2 + $0x6b8] sm:$0xff]
    %v399 = vld [vmem:[#allocation2 + $0x6c0] sm:$0xff]
    %v400 = vld [vmem:[#allocation2 + $0x6c8] sm:$0xff]
    %v401 = vld [vmem:[#allocation2 + $0x6d0] sm:$0xff]
    %v402 = vld [vmem:[#allocation2 + $0x6d8] sm:$0xff]
    %v403 = vld [vmem:[#allocation2 + $0x6e0] sm:$0xff]
    %v404 = vld [vmem:[#allocation2 + $0x6e8] sm:$0xff]
    %v405 = vld [vmem:[#allocation2 + $0x6f0] sm:$0xff]
    %v406 = vld [vmem:[#allocation2 + $0x6f8] sm:$0xff]
    %v407 = vld [vmem:[#allocation2 + $0x700] sm:$0xff]
    %v408 = vld [vmem:[#allocation2 + $0x708] sm:$0xff]
    %v409 = vld [vmem:[#allocation2 + $0x710] sm:$0xff]
    %v410 = vld [vmem:[#allocation2 + $0x718] sm:$0xff]
    %v411 = vld [vmem:[#allocation2 + $0x720] sm:$0xff]
    %v412 = vld [vmem:[#allocation2 + $0x728] sm:$0xff]
    %v413 = vld [vmem:[#allocation2 + $0x730] sm:$0xff]
    %v414 = vld [vmem:[#allocation2 + $0x738] sm:$0xff]
    %v415 = vld [vmem:[#allocation2 + $0x740] sm:$0xff]
    %v416 = vld [vmem:[#allocation2 + $0x748] sm:$0xff]
    %v417 = vld [vmem:[#allocation2 + $0x750] sm:$0xff]
    %v418 = vld [vmem:[#allocation2 + $0x758] sm:$0xff]
    %v419 = vld [vmem:[#allocation2 + $0x760] sm:$0xff]
    %v420 = vld [vmem:[#allocation2 + $0x768] sm:$0xff]
    %v421 = vld [vmem:[#allocation2 + $0x770] sm:$0xff]
    %v422 = vld [vmem:[#allocation2 + $0x778] sm:$0xff]
    %v423 = vld [vmem:[#allocation2 + $0x780] sm:$0xff]
    %v424 = vld [vmem:[#allocation2 + $0x788] sm:$0xff]
    %v425 = vld [vmem:[#allocation2 + $0x790] sm:$0xff]
    %v426 = vld [vmem:[#allocation2 + $0x798] sm:$0xff]
    %v427 = vld [vmem:[#allocation2 + $0x7a0] sm:$0xff]
    %v428 = vld [vmem:[#allocation2 + $0x7a8] sm:$0xff]
    %v429 = vld [vmem:[#allocation2 + $0x7b0] sm:$0xff]
    %v430 = vld [vmem:[#allocation2 + $0x7b8] sm:$0xff]
    %v431 = vld [vmem:[#allocation2 + $0x7c0] sm:$0xff]
    %v432 = vld [vmem:[#allocation2 + $0x7c8] sm:$0xff]
    %v433 = vld [vmem:[#allocation2 + $0x7d0] sm:$0xff]
    %v434 = vld [vmem:[#allocation2 + $0x7d8] sm:$0xff]
    %v435 = vld [vmem:[#allocation2 + $0x7e0] sm:$0xff]
    %v436 = vld [vmem:[#allocation2 + $0x7e8] sm:$0xff]
    %v437 = vld [vmem:[#allocation2 + $0x7f0] sm:$0xff]
    %v438 = vld [vmem:[#allocation2 + $0x7f8] sm:$0xff]
    %v439 = vld [vmem:[#allocation2 + $0x800] sm:$0xff]
    %v440 = vld [vmem:[#allocation2 + $0x808] sm:$0xff]
    %v441 = vld [vmem:[#allocation2 + $0x810] sm:$0xff]
    %v442 = vld [vmem:[#allocation2 + $0x818] sm:$0xff]
    %v443 = vld [vmem:[#allocation2 + $0x820] sm:$0xff]
    %v444 = vld [vmem:[#allocation2 + $0x828] sm:$0xff]
    %v445 = vld [vmem:[#allocation2 + $0x830] sm:$0xff]
    %v446 = vld [vmem:[#allocation2 + $0x838] sm:$0xff]
    %v447 = vld [vmem:[#allocation2 + $0x840] sm:$0xff]
    %v448 = vld [vmem:[#allocation2 + $0x848] sm:$0xff]
    %v449 = vld [vmem:[#allocation2 + $0x850] sm:$0xff]
    %v450 = vld [vmem:[#allocation2 + $0x858] sm:$0xff]
    %v451 = vld [vmem:[#allocation2 + $0x860] sm:$0xff]
    %v452 = vld [vmem:[#allocation2 + $0x868] sm:$0xff]
    %v453 = vld [vmem:[#allocation2 + $0x870] sm:$0xff]
    %v454 = vld [vmem:[#allocation2 + $0x878] sm:$0xff]
    %v455 = vld [vmem:[#allocation2 + $0x880] sm:$0xff]
    %v456 = vld [vmem:[#allocation2 + $0x888] sm:$0xff]
    %v457 = vld [vmem:[#allocation2 + $0x890] sm:$0xff]
    %v458 = vld [vmem:[#allocation2 + $0x898] sm:$0xff]
    %v459 = vld [vmem:[#allocation2 + $0x8a0] sm:$0xff]
    %v460 = vld [vmem:[#allocation2 + $0x8a8] sm:$0xff]
    %v461 = vld [vmem:[#allocation2 + $0x8b0] sm:$0xff]
    %v462 = vld [vmem:[#allocation2 + $0x8b8] sm:$0xff]
    %v463 = vld [vmem:[#allocation2 + $0x8c0] sm:$0xff]
    %v464 = vld [vmem:[#allocation2 + $0x8c8] sm:$0xff]
    %v465 = vld [vmem:[#allocation2 + $0x8d0] sm:$0xff]
    %v466 = vld [vmem:[#allocation2 + $0x8d8] sm:$0xff]
    %v467 = vld [vmem:[#allocation2 + $0x8e0] sm:$0xff]
    %v468 = vld [vmem:[#allocation2 + $0x8e8] sm:$0xff]
    %v469 = vld [vmem:[#allocation2 + $0x8f0] sm:$0xff]
    %v470 = vld [vmem:[#allocation2 + $0x8f8] sm:$0xff]
    %v471 = vld [vmem:[#allocation2 + $0x900] sm:$0xff]
    %v472 = vld [vmem:[#allocation2 + $0x908] sm:$0xff]
    %v473 = vld [vmem:[#allocation2 + $0x910] sm:$0xff]
    %v474 = vld [vmem:[#allocation2 + $0x918] sm:$0xff]
    %v475 = vld [vmem:[#allocation2 + $0x920] sm:$0xff]
    %v476 = vld [vmem:[#allocation2 + $0x928] sm:$0xff]
    %v477 = vld [vmem:[#allocation2 + $0x930] sm:$0xff]
    %v478 = vld [vmem:[#allocation2 + $0x938] sm:$0xff]
    %v479 = vld [vmem:[#allocation2 + $0x940] sm:$0xff]
    %v480 = vld [vmem:[#allocation2 + $0x948] sm:$0xff]
    %v481 = vld [vmem:[#allocation2 + $0x950] sm:$0xff]
    %v482 = vld [vmem:[#allocation2 + $0x958] sm:$0xff]
    %v483 = vld [vmem:[#allocation2 + $0x960] sm:$0xff]
    %v484 = vld [vmem:[#allocation2 + $0x968] sm:$0xff]
    %v485 = vld [vmem:[#allocation2 + $0x970] sm:$0xff]
    %v486 = vld [vmem:[#allocation2 + $0x978] sm:$0xff]
    %v487 = vld [vmem:[#allocation2 + $0x980] sm:$0xff]
    %v488 = vld [vmem:[#allocation2 + $0x988] sm:$0xff]
    %v489 = vld [vmem:[#allocation2 + $0x990] sm:$0xff]
    %v490 = vld [vmem:[#allocation2 + $0x998] sm:$0xff]
    %v491 = vld [vmem:[#allocation2 + $0x9a0] sm:$0xff]
    %v492 = vld [vmem:[#allocation2 + $0x9a8] sm:$0xff]
    %v493 = vld [vmem:[#allocation2 + $0x9b0] sm:$0xff]
    %v494 = vld [vmem:[#allocation2 + $0x9b8] sm:$0xff]
    %v495 = vld [vmem:[#allocation2 + $0x9c0] sm:$0xff]
    %v496 = vld [vmem:[#allocation2 + $0x9c8] sm:$0xff]
    %v497 = vld [vmem:[#allocation2 + $0x9d0] sm:$0xff]
    %v498 = vld [vmem:[#allocation2 + $0x9d8] sm:$0xff]
    %v499 = vld [vmem:[#allocation2 + $0x9e0] sm:$0xff]
    %v500 = vld [vmem:[#allocation2 + $0x9e8] sm:$0xff]
    %v501 = vld [vmem:[#allocation2 + $0x9f0] sm:$0xff]
    %v502 = vld [vmem:[#allocation2 + $0x9f8] sm:$0xff]
    %v503 = vld [vmem:[#allocation2 + $0xa00] sm:$0xff]
    %v504 = vld [vmem:[#allocation2 + $0xa08] sm:$0xff]
    %v505 = vld [vmem:[#allocation2 + $0xa10] sm:$0xff]
    %v506 = vld [vmem:[#allocation2 + $0xa18] sm:$0xff]
    %v507 = vld [vmem:[#allocation2 + $0xa20] sm:$0xff]
    %v508 = vld [vmem:[#allocation2 + $0xa28] sm:$0xff]
    %v509 = vld [vmem:[#allocation2 + $0xa30] sm:$0xff]
    %v510 = vld [vmem:[#allocation2 + $0xa38] sm:$0xff]
    %v511 = vld [vmem:[#allocation2 + $0xa40] sm:$0xff]
    %v512 = vld [vmem:[#allocation2 + $0xa48] sm:$0xff]
    %v513 = vld [vmem:[#allocation2 + $0xa50] sm:$0xff]
    %v514 = vld [vmem:[#allocation2 + $0xa58] sm:$0xff]
    %v515 = vld [vmem:[#allocation2 + $0xa60] sm:$0xff]
    %v516 = vld [vmem:[#allocation2 + $0xa68] sm:$0xff]
    %v517 = vld [vmem:[#allocation2 + $0xa70] sm:$0xff]
    %v518 = vld [vmem:[#allocation2 + $0xa78] sm:$0xff]
    %v519 = vld [vmem:[#allocation2 + $0xa80] sm:$0xff]
    %v520 = vld [vmem:[#allocation2 + $0xa88] sm:$0xff]
    %v521 = vld [vmem:[#allocation2 + $0xa90] sm:$0xff]
    %v522 = vld [vmem:[#allocation2 + $0xa98] sm:$0xff]
    %v523 = vld [vmem:[#allocation2 + $0xaa0] sm:$0xff]
    %v524 = vld [vmem:[#allocation2 + $0xaa8] sm:$0xff]
    %v525 = vld [vmem:[#allocation2 + $0xab0] sm:$0xff]
    %v526 = vld [vmem:[#allocation2 + $0xab8] sm:$0xff]
    %v527 = vld [vmem:[#allocation2 + $0xac0] sm:$0xff]
    %v528 = vld [vmem:[#allocation2 + $0xac8] sm:$0xff]
    %v529 = vld [vmem:[#allocation2 + $0xad0] sm:$0xff]
    %v530 = vld [vmem:[#allocation2 + $0xad8] sm:$0xff]
    %v531 = vld [vmem:[#allocation2 + $0xae0] sm:$0xff]
    %v532 = vld [vmem:[#allocation2 + $0xae8] sm:$0xff]
    %v533 = vld [vmem:[#allocation2 + $0xaf0] sm:$0xff]
    %v534 = vld [vmem:[#allocation2 + $0xaf8] sm:$0xff]
    %v535 = vld [vmem:[#allocation2 + $0xb00] sm:$0xff]
    %v536 = vld [vmem:[#allocation2 + $0xb08] sm:$0xff]
    %v537 = vld [vmem:[#allocation2 + $0xb10] sm:$0xff]
    %v538 = vld [vmem:[#allocation2 + $0xb18] sm:$0xff]
    %v539 = vld [vmem:[#allocation2 + $0xb20] sm:$0xff]
    %v540 = vld [vmem:[#allocation2 + $0xb28] sm:$0xff]
    %v541 = vld [vmem:[#allocation2 + $0xb30] sm:$0xff]
    %v542 = vld [vmem:[#allocation2 + $0xb38] sm:$0xff]
    %v543 = vld [vmem:[#allocation2 + $0xb40] sm:$0xff]
    %v544 = vld [vmem:[#allocation2 + $0xb48] sm:$0xff]
    %v545 = vld [vmem:[#allocation2 + $0xb50] sm:$0xff]
    %v546 = vld [vmem:[#allocation2 + $0xb58] sm:$0xff]
    %v547 = vld [vmem:[#allocation2 + $0xb60] sm:$0xff]
    %v548 = vld [vmem:[#allocation2 + $0xb68] sm:$0xff]
    %v549 = vld [vmem:[#allocation2 + $0xb70] sm:$0xff]
    %v550 = vld [vmem:[#allocation2 + $0xb78] sm:$0xff]
    %v551 = vld [vmem:[#allocation2 + $0xb80] sm:$0xff]
    %v552 = vld [vmem:[#allocation2 + $0xb88] sm:$0xff]
    %v553 = vld [vmem:[#allocation2 + $0xb90] sm:$0xff]
    %v554 = vld [vmem:[#allocation2 + $0xb98] sm:$0xff]
    %v555 = vld [vmem:[#allocation2 + $0xba0] sm:$0xff]
    %v556 = vld [vmem:[#allocation2 + $0xba8] sm:$0xff]
    %v557 = vld [vmem:[#allocation2 + $0xbb0] sm:$0xff]
    %v558 = vld [vmem:[#allocation2 + $0xbb8] sm:$0xff]
    %v559 = vld [vmem:[#allocation2 + $0xbc0] sm:$0xff]
    %v560 = vld [vmem:[#allocation2 + $0xbc8] sm:$0xff]
    %v561 = vld [vmem:[#allocation2 + $0xbd0] sm:$0xff]
    %v562 = vld [vmem:[#allocation2 + $0xbd8] sm:$0xff]
    %v563 = vld [vmem:[#allocation2 + $0xbe0] sm:$0xff]
    %v564 = vld [vmem:[#allocation2 + $0xbe8] sm:$0xff]
    %v565 = vld [vmem:[#allocation2 + $0xbf0] sm:$0xff]
    %v566 = vld [vmem:[#allocation2 + $0xbf8] sm:$0xff]
    %v951 = vunpack.c.l.b16 %v183
    %v952 = vunpack.c.h.b16 %v183
    %v953 = vunpack.c.l.b16 %v184
    %v954 = vunpack.c.h.b16 %v184
    %v955 = vunpack.c.l.b16 %v185
    %v956 = vunpack.c.h.b16 %v185
    %v957 = vunpack.c.l.b16 %v186
    %v958 = vunpack.c.h.b16 %v186
    %v959 = vunpack.c.l.b16 %v187
    %v960 = vunpack.c.h.b16 %v187
    %v961 = vunpack.c.l.b16 %v188
    %v962 = vunpack.c.h.b16 %v188
    %v963 = vunpack.c.l.b16 %v189
    %v964 = vunpack.c.h.b16 %v189
    %v965 = vunpack.c.l.b16 %v190
    %v966 = vunpack.c.h.b16 %v190
    %v967 = vunpack.c.l.b16 %v191
    %v968 = vunpack.c.h.b16 %v191
    %v969 = vunpack.c.l.b16 %v192
    %v970 = vunpack.c.h.b16 %v192
    %v971 = vunpack.c.l.b16 %v193
    %v972 = vunpack.c.h.b16 %v193
    %v973 = vunpack.c.l.b16 %v194
    %v974 = vunpack.c.h.b16 %v194
    %v975 = vunpack.c.l.b16 %v195
    %v976 = vunpack.c.h.b16 %v195
    %v977 = vunpack.c.l.b16 %v196
    %v978 = vunpack.c.h.b16 %v196
    %v979 = vunpack.c.l.b16 %v197
    %v980 = vunpack.c.h.b16 %v197
    %v981 = vunpack.c.l.b16 %v198
    %v982 = vunpack.c.h.b16 %v198
    %v983 = vunpack.c.l.b16 %v199
    %v984 = vunpack.c.h.b16 %v199
    %v985 = vunpack.c.l.b16 %v200
    %v986 = vunpack.c.h.b16 %v200
    %v987 = vunpack.c.l.b16 %v201
    %v988 = vunpack.c.h.b16 %v201
    %v989 = vunpack.c.l.b16 %v202
    %v990 = vunpack.c.h.b16 %v202
    %v991 = vunpack.c.l.b16 %v203
    %v992 = vunpack.c.h.b16 %v203
    %v993 = vunpack.c.l.b16 %v204
    %v994 = vunpack.c.h.b16 %v204
    %v995 = vunpack.c.l.b16 %v205
    %v996 = vunpack.c.h.b16 %v205
    %v997 = vunpack.c.l.b16 %v206
    %v998 = vunpack.c.h.b16 %v206
    %v999 = vunpack.c.l.b16 %v207
    %v1000 = vunpack.c.h.b16 %v207
    %v1001 = vunpack.c.l.b16 %v208
    %v1002 = vunpack.c.h.b16 %v208
    %v1003 = vunpack.c.l.b16 %v209
    %v1004 = vunpack.c.h.b16 %v209
    %v1005 = vunpack.c.l.b16 %v210
    %v1006 = vunpack.c.h.b16 %v210
    %v1007 = vunpack.c.l.b16 %v211
    %v1008 = vunpack.c.h.b16 %v211
    %v1009 = vunpack.c.l.b16 %v212
    %v1010 = vunpack.c.h.b16 %v212
    %v1011 = vunpack.c.l.b16 %v213
    %v1012 = vunpack.c.h.b16 %v213
    %v1013 = vunpack.c.l.b16 %v214
    %v1014 = vunpack.c.h.b16 %v214
    %v1015 = vunpack.c.l.b16 %v215
    %v1016 = vunpack.c.h.b16 %v215
    %v1017 = vunpack.c.l.b16 %v216
    %v1018 = vunpack.c.h.b16 %v216
    %v1019 = vunpack.c.l.b16 %v217
    %v1020 = vunpack.c.h.b16 %v217
    %v1021 = vunpack.c.l.b16 %v218
    %v1022 = vunpack.c.h.b16 %v218
    %v1023 = vunpack.c.l.b16 %v219
    %v1024 = vunpack.c.h.b16 %v219
    %v1025 = vunpack.c.l.b16 %v220
    %v1026 = vunpack.c.h.b16 %v220
    %v1027 = vunpack.c.l.b16 %v221
    %v1028 = vunpack.c.h.b16 %v221
    %v1029 = vunpack.c.l.b16 %v222
    %v1030 = vunpack.c.h.b16 %v222
    %v1031 = vunpack.c.l.b16 %v223
    %v1032 = vunpack.c.h.b16 %v223
    %v1033 = vunpack.c.l.b16 %v224
    %v1034 = vunpack.c.h.b16 %v224
    %v1035 = vunpack.c.l.b16 %v225
    %v1036 = vunpack.c.h.b16 %v225
    %v1037 = vunpack.c.l.b16 %v226
    %v1038 = vunpack.c.h.b16 %v226
    %v1039 = vunpack.c.l.b16 %v227
    %v1040 = vunpack.c.h.b16 %v227
    %v1041 = vunpack.c.l.b16 %v228
    %v1042 = vunpack.c.h.b16 %v228
    %v1043 = vunpack.c.l.b16 %v229
    %v1044 = vunpack.c.h.b16 %v229
    %v1045 = vunpack.c.l.b16 %v230
    %v1046 = vunpack.c.h.b16 %v230
    %v1047 = vunpack.c.l.b16 %v231
    %v1048 = vunpack.c.h.b16 %v231
    %v1049 = vunpack.c.l.b16 %v232
    %v1050 = vunpack.c.h.b16 %v232
    %v1051 = vunpack.c.l.b16 %v233
    %v1052 = vunpack.c.h.b16 %v233
    %v1053 = vunpack.c.l.b16 %v234
    %v1054 = vunpack.c.h.b16 %v234
    %v1055 = vunpack.c.l.b16 %v235
    %v1056 = vunpack.c.h.b16 %v235
    %v1057 = vunpack.c.l.b16 %v236
    %v1058 = vunpack.c.h.b16 %v236
    %v1059 = vunpack.c.l.b16 %v237
    %v1060 = vunpack.c.h.b16 %v237
    %v1061 = vunpack.c.l.b16 %v238
    %v1062 = vunpack.c.h.b16 %v238
    %v1063 = vunpack.c.l.b16 %v239
    %v1064 = vunpack.c.h.b16 %v239
    %v1065 = vunpack.c.l.b16 %v240
    %v1066 = vunpack.c.h.b16 %v240
    %v1067 = vunpack.c.l.b16 %v241
    %v1068 = vunpack.c.h.b16 %v241
    %v1069 = vunpack.c.l.b16 %v242
    %v1070 = vunpack.c.h.b16 %v242
    %v1071 = vunpack.c.l.b16 %v243
    %v1072 = vunpack.c.h.b16 %v243
    %v1073 = vunpack.c.l.b16 %v244
    %v1074 = vunpack.c.h.b16 %v244
    %v1075 = vunpack.c.l.b16 %v245
    %v1076 = vunpack.c.h.b16 %v245
    %v1077 = vunpack.c.l.b16 %v246
    %v1078 = vunpack.c.h.b16 %v246
    %v1079 = vunpack.c.l.b16 %v247
    %v1080 = vunpack.c.h.b16 %v247
    %v1081 = vunpack.c.l.b16 %v248
    %v1082 = vunpack.c.h.b16 %v248
    %v1083 = vunpack.c.l.b16 %v249
    %v1084 = vunpack.c.h.b16 %v249
    %v1085 = vunpack.c.l.b16 %v250
    %v1086 = vunpack.c.h.b16 %v250
    %v1087 = vunpack.c.l.b16 %v251
    %v1088 = vunpack.c.h.b16 %v251
    %v1089 = vunpack.c.l.b16 %v252
    %v1090 = vunpack.c.h.b16 %v252
    %v1091 = vunpack.c.l.b16 %v253
    %v1092 = vunpack.c.h.b16 %v253
    %v1093 = vunpack.c.l.b16 %v254
    %v1094 = vunpack.c.h.b16 %v254
    %v1095 = vunpack.c.l.b16 %v255
    %v1096 = vunpack.c.h.b16 %v255
    %v1097 = vunpack.c.l.b16 %v256
    %v1098 = vunpack.c.h.b16 %v256
    %v1099 = vunpack.c.l.b16 %v257
    %v1100 = vunpack.c.h.b16 %v257
    %v1101 = vunpack.c.l.b16 %v258
    %v1102 = vunpack.c.h.b16 %v258
    %v1103 = vunpack.c.l.b16 %v259
    %v1104 = vunpack.c.h.b16 %v259
    %v1105 = vunpack.c.l.b16 %v260
    %v1106 = vunpack.c.h.b16 %v260
    %v1107 = vunpack.c.l.b16 %v261
    %v1108 = vunpack.c.h.b16 %v261
    %v1109 = vunpack.c.l.b16 %v262
    %v1110 = vunpack.c.h.b16 %v262
    %v1111 = vunpack.c.l.b16 %v263
    %v1112 = vunpack.c.h.b16 %v263
    %v1113 = vunpack.c.l.b16 %v264
    %v1114 = vunpack.c.h.b16 %v264
    %v1115 = vunpack.c.l.b16 %v265
    %v1116 = vunpack.c.h.b16 %v265
    %v1117 = vunpack.c.l.b16 %v266
    %v1118 = vunpack.c.h.b16 %v266
    %v1119 = vunpack.c.l.b16 %v267
    %v1120 = vunpack.c.h.b16 %v267
    %v1121 = vunpack.c.l.b16 %v268
    %v1122 = vunpack.c.h.b16 %v268
    %v1123 = vunpack.c.l.b16 %v269
    %v1124 = vunpack.c.h.b16 %v269
    %v1125 = vunpack.c.l.b16 %v270
    %v1126 = vunpack.c.h.b16 %v270
    %v1127 = vunpack.c.l.b16 %v271
    %v1128 = vunpack.c.h.b16 %v271
    %v1129 = vunpack.c.l.b16 %v272
    %v1130 = vunpack.c.h.b16 %v272
    %v1131 = vunpack.c.l.b16 %v273
    %v1132 = vunpack.c.h.b16 %v273
    %v1133 = vunpack.c.l.b16 %v274
    %v1134 = vunpack.c.h.b16 %v274
    %v1135 = vunpack.c.l.b16 %v275
    %v1136 = vunpack.c.h.b16 %v275
    %v1137 = vunpack.c.l.b16 %v276
    %v1138 = vunpack.c.h.b16 %v276
    %v1139 = vunpack.c.l.b16 %v277
    %v1140 = vunpack.c.h.b16 %v277
    %v1141 = vunpack.c.l.b16 %v278
    %v1142 = vunpack.c.h.b16 %v278
    %v1143 = vunpack.c.l.b16 %v279
    %v1144 = vunpack.c.h.b16 %v279
    %v1145 = vunpack.c.l.b16 %v280
    %v1146 = vunpack.c.h.b16 %v280
    %v1147 = vunpack.c.l.b16 %v281
    %v1148 = vunpack.c.h.b16 %v281
    %v1149 = vunpack.c.l.b16 %v282
    %v1150 = vunpack.c.h.b16 %v282
    %v1151 = vunpack.c.l.b16 %v283
    %v1152 = vunpack.c.h.b16 %v283
    %v1153 = vunpack.c.l.b16 %v284
    %v1154 = vunpack.c.h.b16 %v284
    %v1155 = vunpack.c.l.b16 %v285
    %v1156 = vunpack.c.h.b16 %v285
    %v1157 = vunpack.c.l.b16 %v286
    %v1158 = vunpack.c.h.b16 %v286
    %v1159 = vunpack.c.l.b16 %v287
    %v1160 = vunpack.c.h.b16 %v287
    %v1161 = vunpack.c.l.b16 %v288
    %v1162 = vunpack.c.h.b16 %v288
    %v1163 = vunpack.c.l.b16 %v289
    %v1164 = vunpack.c.h.b16 %v289
    %v1165 = vunpack.c.l.b16 %v290
    %v1166 = vunpack.c.h.b16 %v290
    %v1167 = vunpack.c.l.b16 %v291
    %v1168 = vunpack.c.h.b16 %v291
    %v1169 = vunpack.c.l.b16 %v292
    %v1170 = vunpack.c.h.b16 %v292
    %v1171 = vunpack.c.l.b16 %v293
    %v1172 = vunpack.c.h.b16 %v293
    %v1173 = vunpack.c.l.b16 %v294
    %v1174 = vunpack.c.h.b16 %v294
    %v1175 = vunpack.c.l.b16 %v295
    %v1176 = vunpack.c.h.b16 %v295
    %v1177 = vunpack.c.l.b16 %v296
    %v1178 = vunpack.c.h.b16 %v296
    %v1179 = vunpack.c.l.b16 %v297
    %v1180 = vunpack.c.h.b16 %v297
    %v1181 = vunpack.c.l.b16 %v298
    %v1182 = vunpack.c.h.b16 %v298
    %v1183 = vunpack.c.l.b16 %v299
    %v1184 = vunpack.c.h.b16 %v299
    %v1185 = vunpack.c.l.b16 %v300
    %v1186 = vunpack.c.h.b16 %v300
    %v1187 = vunpack.c.l.b16 %v301
    %v1188 = vunpack.c.h.b16 %v301
    %v1189 = vunpack.c.l.b16 %v302
    %v1190 = vunpack.c.h.b16 %v302
    %v1191 = vunpack.c.l.b16 %v303
    %v1192 = vunpack.c.h.b16 %v303
    %v1193 = vunpack.c.l.b16 %v304
    %v1194 = vunpack.c.h.b16 %v304
    %v1195 = vunpack.c.l.b16 %v305
    %v1196 = vunpack.c.h.b16 %v305
    %v1197 = vunpack.c.l.b16 %v306
    %v1198 = vunpack.c.h.b16 %v306
    %v1199 = vunpack.c.l.b16 %v307
    %v1200 = vunpack.c.h.b16 %v307
    %v1201 = vunpack.c.l.b16 %v308
    %v1202 = vunpack.c.h.b16 %v308
    %v1203 = vunpack.c.l.b16 %v309
    %v1204 = vunpack.c.h.b16 %v309
    %v1205 = vunpack.c.l.b16 %v310
    %v1206 = vunpack.c.h.b16 %v310
    %v1207 = vunpack.c.l.b16 %v311
    %v1208 = vunpack.c.h.b16 %v311
    %v1209 = vunpack.c.l.b16 %v312
    %v1210 = vunpack.c.h.b16 %v312
    %v1211 = vunpack.c.l.b16 %v313
    %v1212 = vunpack.c.h.b16 %v313
    %v1213 = vunpack.c.l.b16 %v314
    %v1214 = vunpack.c.h.b16 %v314
    %v1215 = vunpack.c.l.b16 %v315
    %v1216 = vunpack.c.h.b16 %v315
    %v1217 = vunpack.c.l.b16 %v316
    %v1218 = vunpack.c.h.b16 %v316
    %v1219 = vunpack.c.l.b16 %v317
    %v1220 = vunpack.c.h.b16 %v317
    %v1221 = vunpack.c.l.b16 %v318
    %v1222 = vunpack.c.h.b16 %v318
    %v1223 = vunpack.c.l.b16 %v319
    %v1224 = vunpack.c.h.b16 %v319
    %v1225 = vunpack.c.l.b16 %v320
    %v1226 = vunpack.c.h.b16 %v320
    %v1227 = vunpack.c.l.b16 %v321
    %v1228 = vunpack.c.h.b16 %v321
    %v1229 = vunpack.c.l.b16 %v322
    %v1230 = vunpack.c.h.b16 %v322
    %v1231 = vunpack.c.l.b16 %v323
    %v1232 = vunpack.c.h.b16 %v323
    %v1233 = vunpack.c.l.b16 %v324
    %v1234 = vunpack.c.h.b16 %v324
    %v1235 = vunpack.c.l.b16 %v325
    %v1236 = vunpack.c.h.b16 %v325
    %v1237 = vunpack.c.l.b16 %v326
    %v1238 = vunpack.c.h.b16 %v326
    %v1239 = vunpack.c.l.b16 %v327
    %v1240 = vunpack.c.h.b16 %v327
    %v1241 = vunpack.c.l.b16 %v328
    %v1242 = vunpack.c.h.b16 %v328
    %v1243 = vunpack.c.l.b16 %v329
    %v1244 = vunpack.c.h.b16 %v329
    %v1245 = vunpack.c.l.b16 %v330
    %v1246 = vunpack.c.h.b16 %v330
    %v1247 = vunpack.c.l.b16 %v331
    %v1248 = vunpack.c.h.b16 %v331
    %v1249 = vunpack.c.l.b16 %v332
    %v1250 = vunpack.c.h.b16 %v332
    %v1251 = vunpack.c.l.b16 %v333
    %v1252 = vunpack.c.h.b16 %v333
    %v1253 = vunpack.c.l.b16 %v334
    %v1254 = vunpack.c.h.b16 %v334
    %v1255 = vunpack.c.l.b16 %v335
    %v1256 = vunpack.c.h.b16 %v335
    %v1257 = vunpack.c.l.b16 %v336
    %v1258 = vunpack.c.h.b16 %v336
    %v1259 = vunpack.c.l.b16 %v337
    %v1260 = vunpack.c.h.b16 %v337
    %v1261 = vunpack.c.l.b16 %v338
    %v1262 = vunpack.c.h.b16 %v338
    %v1263 = vunpack.c.l.b16 %v339
    %v1264 = vunpack.c.h.b16 %v339
    %v1265 = vunpack.c.l.b16 %v340
    %v1266 = vunpack.c.h.b16 %v340
    %v1267 = vunpack.c.l.b16 %v341
    %v1268 = vunpack.c.h.b16 %v341
    %v1269 = vunpack.c.l.b16 %v342
    %v1270 = vunpack.c.h.b16 %v342
    %v1271 = vunpack.c.l.b16 %v343
    %v1272 = vunpack.c.h.b16 %v343
    %v1273 = vunpack.c.l.b16 %v344
    %v1274 = vunpack.c.h.b16 %v344
    %v1275 = vunpack.c.l.b16 %v345
    %v1276 = vunpack.c.h.b16 %v345
    %v1277 = vunpack.c.l.b16 %v346
    %v1278 = vunpack.c.h.b16 %v346
    %v1279 = vunpack.c.l.b16 %v347
    %v1280 = vunpack.c.h.b16 %v347
    %v1281 = vunpack.c.l.b16 %v348
    %v1282 = vunpack.c.h.b16 %v348
    %v1283 = vunpack.c.l.b16 %v349
    %v1284 = vunpack.c.h.b16 %v349
    %v1285 = vunpack.c.l.b16 %v350
    %v1286 = vunpack.c.h.b16 %v350
    %v1287 = vunpack.c.l.b16 %v351
    %v1288 = vunpack.c.h.b16 %v351
    %v1289 = vunpack.c.l.b16 %v352
    %v1290 = vunpack.c.h.b16 %v352
    %v1291 = vunpack.c.l.b16 %v353
    %v1292 = vunpack.c.h.b16 %v353
    %v1293 = vunpack.c.l.b16 %v354
    %v1294 = vunpack.c.h.b16 %v354
    %v1295 = vunpack.c.l.b16 %v355
    %v1296 = vunpack.c.h.b16 %v355
    %v1297 = vunpack.c.l.b16 %v356
    %v1298 = vunpack.c.h.b16 %v356
    %v1299 = vunpack.c.l.b16 %v357
    %v1300 = vunpack.c.h.b16 %v357
    %v1301 = vunpack.c.l.b16 %v358
    %v1302 = vunpack.c.h.b16 %v358
    %v1303 = vunpack.c.l.b16 %v359
    %v1304 = vunpack.c.h.b16 %v359
    %v1305 = vunpack.c.l.b16 %v360
    %v1306 = vunpack.c.h.b16 %v360
    %v1307 = vunpack.c.l.b16 %v361
    %v1308 = vunpack.c.h.b16 %v361
    %v1309 = vunpack.c.l.b16 %v362
    %v1310 = vunpack.c.h.b16 %v362
    %v1311 = vunpack.c.l.b16 %v363
    %v1312 = vunpack.c.h.b16 %v363
    %v1313 = vunpack.c.l.b16 %v364
    %v1314 = vunpack.c.h.b16 %v364
    %v1315 = vunpack.c.l.b16 %v365
    %v1316 = vunpack.c.h.b16 %v365
    %v1317 = vunpack.c.l.b16 %v366
    %v1318 = vunpack.c.h.b16 %v366
    %v1319 = vunpack.c.l.b16 %v367
    %v1320 = vunpack.c.h.b16 %v367
    %v1321 = vunpack.c.l.b16 %v368
    %v1322 = vunpack.c.h.b16 %v368
    %v1323 = vunpack.c.l.b16 %v369
    %v1324 = vunpack.c.h.b16 %v369
    %v1325 = vunpack.c.l.b16 %v370
    %v1326 = vunpack.c.h.b16 %v370
    %v1327 = vunpack.c.l.b16 %v371
    %v1328 = vunpack.c.h.b16 %v371
    %v1329 = vunpack.c.l.b16 %v372
    %v1330 = vunpack.c.h.b16 %v372
    %v1331 = vunpack.c.l.b16 %v373
    %v1332 = vunpack.c.h.b16 %v373
    %v1333 = vunpack.c.l.b16 %v374
    %v1334 = vunpack.c.h.b16 %v374
    %v1335 = vunpack.c.l.b16 %v375
    %v1336 = vunpack.c.h.b16 %v375
    %v1337 = vunpack.c.l.b16 %v376
    %v1338 = vunpack.c.h.b16 %v376
    %v1339 = vunpack.c.l.b16 %v377
    %v1340 = vunpack.c.h.b16 %v377
    %v1341 = vunpack.c.l.b16 %v378
    %v1342 = vunpack.c.h.b16 %v378
    %v1343 = vunpack.c.l.b16 %v379
    %v1344 = vunpack.c.h.b16 %v379
    %v1345 = vunpack.c.l.b16 %v380
    %v1346 = vunpack.c.h.b16 %v380
    %v1347 = vunpack.c.l.b16 %v381
    %v1348 = vunpack.c.h.b16 %v381
    %v1349 = vunpack.c.l.b16 %v382
    %v1350 = vunpack.c.h.b16 %v382
    %v1351 = vunpack.c.l.b16 %v383
    %v1352 = vunpack.c.h.b16 %v383
    %v1353 = vunpack.c.l.b16 %v384
    %v1354 = vunpack.c.h.b16 %v384
    %v1355 = vunpack.c.l.b16 %v385
    %v1356 = vunpack.c.h.b16 %v385
    %v1357 = vunpack.c.l.b16 %v386
    %v1358 = vunpack.c.h.b16 %v386
    %v1359 = vunpack.c.l.b16 %v387
    %v1360 = vunpack.c.h.b16 %v387
    %v1361 = vunpack.c.l.b16 %v388
    %v1362 = vunpack.c.h.b16 %v388
    %v1363 = vunpack.c.l.b16 %v389
    %v1364 = vunpack.c.h.b16 %v389
    %v1365 = vunpack.c.l.b16 %v390
    %v1366 = vunpack.c.h.b16 %v390
    %v1367 = vunpack.c.l.b16 %v391
    %v1368 = vunpack.c.h.b16 %v391
    %v1369 = vunpack.c.l.b16 %v392
    %v1370 = vunpack.c.h.b16 %v392
    %v1371 = vunpack.c.l.b16 %v393
    %v1372 = vunpack.c.h.b16 %v393
    %v1373 = vunpack.c.l.b16 %v394
    %v1374 = vunpack.c.h.b16 %v394
    %v1375 = vunpack.c.l.b16 %v395
    %v1376 = vunpack.c.h.b16 %v395
    %v1377 = vunpack.c.l.b16 %v396
    %v1378 = vunpack.c.h.b16 %v396
    %v1379 = vunpack.c.l.b16 %v397
    %v1380 = vunpack.c.h.b16 %v397
    %v1381 = vunpack.c.l.b16 %v398
    %v1382 = vunpack.c.h.b16 %v398
    %v1383 = vunpack.c.l.b16 %v399
    %v1384 = vunpack.c.h.b16 %v399
    %v1385 = vunpack.c.l.b16 %v400
    %v1386 = vunpack.c.h.b16 %v400
    %v1387 = vunpack.c.l.b16 %v401
    %v1388 = vunpack.c.h.b16 %v401
    %v1389 = vunpack.c.l.b16 %v402
    %v1390 = vunpack.c.h.b16 %v402
    %v1391 = vunpack.c.l.b16 %v403
    %v1392 = vunpack.c.h.b16 %v403
    %v1393 = vunpack.c.l.b16 %v404
    %v1394 = vunpack.c.h.b16 %v404
    %v1395 = vunpack.c.l.b16 %v405
    %v1396 = vunpack.c.h.b16 %v405
    %v1397 = vunpack.c.l.b16 %v406
    %v1398 = vunpack.c.h.b16 %v406
    %v1399 = vunpack.c.l.b16 %v407
    %v1400 = vunpack.c.h.b16 %v407
    %v1401 = vunpack.c.l.b16 %v408
    %v1402 = vunpack.c.h.b16 %v408
    %v1403 = vunpack.c.l.b16 %v409
    %v1404 = vunpack.c.h.b16 %v409
    %v1405 = vunpack.c.l.b16 %v410
    %v1406 = vunpack.c.h.b16 %v410
    %v1407 = vunpack.c.l.b16 %v411
    %v1408 = vunpack.c.h.b16 %v411
    %v1409 = vunpack.c.l.b16 %v412
    %v1410 = vunpack.c.h.b16 %v412
    %v1411 = vunpack.c.l.b16 %v413
    %v1412 = vunpack.c.h.b16 %v413
    %v1413 = vunpack.c.l.b16 %v414
    %v1414 = vunpack.c.h.b16 %v414
    %v1415 = vunpack.c.l.b16 %v415
    %v1416 = vunpack.c.h.b16 %v415
    %v1417 = vunpack.c.l.b16 %v416
    %v1418 = vunpack.c.h.b16 %v416
    %v1419 = vunpack.c.l.b16 %v417
    %v1420 = vunpack.c.h.b16 %v417
    %v1421 = vunpack.c.l.b16 %v418
    %v1422 = vunpack.c.h.b16 %v418
    %v1423 = vunpack.c.l.b16 %v419
    %v1424 = vunpack.c.h.b16 %v419
    %v1425 = vunpack.c.l.b16 %v420
    %v1426 = vunpack.c.h.b16 %v420
    %v1427 = vunpack.c.l.b16 %v421
    %v1428 = vunpack.c.h.b16 %v421
    %v1429 = vunpack.c.l.b16 %v422
    %v1430 = vunpack.c.h.b16 %v422
    %v1431 = vunpack.c.l.b16 %v423
    %v1432 = vunpack.c.h.b16 %v423
    %v1433 = vunpack.c.l.b16 %v424
    %v1434 = vunpack.c.h.b16 %v424
    %v1435 = vunpack.c.l.b16 %v425
    %v1436 = vunpack.c.h.b16 %v425
    %v1437 = vunpack.c.l.b16 %v426
    %v1438 = vunpack.c.h.b16 %v426
    %v1439 = vunpack.c.l.b16 %v427
    %v1440 = vunpack.c.h.b16 %v427
    %v1441 = vunpack.c.l.b16 %v428
    %v1442 = vunpack.c.h.b16 %v428
    %v1443 = vunpack.c.l.b16 %v429
    %v1444 = vunpack.c.h.b16 %v429
    %v1445 = vunpack.c.l.b16 %v430
    %v1446 = vunpack.c.h.b16 %v430
    %v1447 = vunpack.c.l.b16 %v431
    %v1448 = vunpack.c.h.b16 %v431
    %v1449 = vunpack.c.l.b16 %v432
    %v1450 = vunpack.c.h.b16 %v432
    %v1451 = vunpack.c.l.b16 %v433
    %v1452 = vunpack.c.h.b16 %v433
    %v1453 = vunpack.c.l.b16 %v434
    %v1454 = vunpack.c.h.b16 %v434
    %v1455 = vunpack.c.l.b16 %v435
    %v1456 = vunpack.c.h.b16 %v435
    %v1457 = vunpack.c.l.b16 %v436
    %v1458 = vunpack.c.h.b16 %v436
    %v1459 = vunpack.c.l.b16 %v437
    %v1460 = vunpack.c.h.b16 %v437
    %v1461 = vunpack.c.l.b16 %v438
    %v1462 = vunpack.c.h.b16 %v438
    %v1463 = vunpack.c.l.b16 %v439
    %v1464 = vunpack.c.h.b16 %v439
    %v1465 = vunpack.c.l.b16 %v440
    %v1466 = vunpack.c.h.b16 %v440
    %v1467 = vunpack.c.l.b16 %v441
    %v1468 = vunpack.c.h.b16 %v441
    %v1469 = vunpack.c.l.b16 %v442
    %v1470 = vunpack.c.h.b16 %v442
    %v1471 = vunpack.c.l.b16 %v443
    %v1472 = vunpack.c.h.b16 %v443
    %v1473 = vunpack.c.l.b16 %v444
    %v1474 = vunpack.c.h.b16 %v444
    %v1475 = vunpack.c.l.b16 %v445
    %v1476 = vunpack.c.h.b16 %v445
    %v1477 = vunpack.c.l.b16 %v446
    %v1478 = vunpack.c.h.b16 %v446
    %v1479 = vunpack.c.l.b16 %v447
    %v1480 = vunpack.c.h.b16 %v447
    %v1481 = vunpack.c.l.b16 %v448
    %v1482 = vunpack.c.h.b16 %v448
    %v1483 = vunpack.c.l.b16 %v449
    %v1484 = vunpack.c.h.b16 %v449
    %v1485 = vunpack.c.l.b16 %v450
    %v1486 = vunpack.c.h.b16 %v450
    %v1487 = vunpack.c.l.b16 %v451
    %v1488 = vunpack.c.h.b16 %v451
    %v1489 = vunpack.c.l.b16 %v452
    %v1490 = vunpack.c.h.b16 %v452
    %v1491 = vunpack.c.l.b16 %v453
    %v1492 = vunpack.c.h.b16 %v453
    %v1493 = vunpack.c.l.b16 %v454
    %v1494 = vunpack.c.h.b16 %v454
    %v1495 = vunpack.c.l.b16 %v455
    %v1496 = vunpack.c.h.b16 %v455
    %v1497 = vunpack.c.l.b16 %v456
    %v1498 = vunpack.c.h.b16 %v456
    %v1499 = vunpack.c.l.b16 %v457
    %v1500 = vunpack.c.h.b16 %v457
    %v1501 = vunpack.c.l.b16 %v458
    %v1502 = vunpack.c.h.b16 %v458
    %v1503 = vunpack.c.l.b16 %v459
    %v1504 = vunpack.c.h.b16 %v459
    %v1505 = vunpack.c.l.b16 %v460
    %v1506 = vunpack.c.h.b16 %v460
    %v1507 = vunpack.c.l.b16 %v461
    %v1508 = vunpack.c.h.b16 %v461
    %v1509 = vunpack.c.l.b16 %v462
    %v1510 = vunpack.c.h.b16 %v462
    %v1511 = vunpack.c.l.b16 %v463
    %v1512 = vunpack.c.h.b16 %v463
    %v1513 = vunpack.c.l.b16 %v464
    %v1514 = vunpack.c.h.b16 %v464
    %v1515 = vunpack.c.l.b16 %v465
    %v1516 = vunpack.c.h.b16 %v465
    %v1517 = vunpack.c.l.b16 %v466
    %v1518 = vunpack.c.h.b16 %v466
    %v1519 = vunpack.c.l.b16 %v467
    %v1520 = vunpack.c.h.b16 %v467
    %v1521 = vunpack.c.l.b16 %v468
    %v1522 = vunpack.c.h.b16 %v468
    %v1523 = vunpack.c.l.b16 %v469
    %v1524 = vunpack.c.h.b16 %v469
    %v1525 = vunpack.c.l.b16 %v470
    %v1526 = vunpack.c.h.b16 %v470
    %v1527 = vunpack.c.l.b16 %v471
    %v1528 = vunpack.c.h.b16 %v471
    %v1529 = vunpack.c.l.b16 %v472
    %v1530 = vunpack.c.h.b16 %v472
    %v1531 = vunpack.c.l.b16 %v473
    %v1532 = vunpack.c.h.b16 %v473
    %v1533 = vunpack.c.l.b16 %v474
    %v1534 = vunpack.c.h.b16 %v474
    %v1535 = vunpack.c.l.b16 %v475
    %v1536 = vunpack.c.h.b16 %v475
    %v1537 = vunpack.c.l.b16 %v476
    %v1538 = vunpack.c.h.b16 %v476
    %v1539 = vunpack.c.l.b16 %v477
    %v1540 = vunpack.c.h.b16 %v477
    %v1541 = vunpack.c.l.b16 %v478
    %v1542 = vunpack.c.h.b16 %v478
    %v1543 = vunpack.c.l.b16 %v479
    %v1544 = vunpack.c.h.b16 %v479
    %v1545 = vunpack.c.l.b16 %v480
    %v1546 = vunpack.c.h.b16 %v480
    %v1547 = vunpack.c.l.b16 %v481
    %v1548 = vunpack.c.h.b16 %v481
    %v1549 = vunpack.c.l.b16 %v482
    %v1550 = vunpack.c.h.b16 %v482
    %v1551 = vunpack.c.l.b16 %v483
    %v1552 = vunpack.c.h.b16 %v483
    %v1553 = vunpack.c.l.b16 %v484
    %v1554 = vunpack.c.h.b16 %v484
    %v1555 = vunpack.c.l.b16 %v485
    %v1556 = vunpack.c.h.b16 %v485
    %v1557 = vunpack.c.l.b16 %v486
    %v1558 = vunpack.c.h.b16 %v486
    %v1559 = vunpack.c.l.b16 %v487
    %v1560 = vunpack.c.h.b16 %v487
    %v1561 = vunpack.c.l.b16 %v488
    %v1562 = vunpack.c.h.b16 %v488
    %v1563 = vunpack.c.l.b16 %v489
    %v1564 = vunpack.c.h.b16 %v489
    %v1565 = vunpack.c.l.b16 %v490
    %v1566 = vunpack.c.h.b16 %v490
    %v1567 = vunpack.c.l.b16 %v491
    %v1568 = vunpack.c.h.b16 %v491
    %v1569 = vunpack.c.l.b16 %v492
    %v1570 = vunpack.c.h.b16 %v492
    %v1571 = vunpack.c.l.b16 %v493
    %v1572 = vunpack.c.h.b16 %v493
    %v1573 = vunpack.c.l.b16 %v494
    %v1574 = vunpack.c.h.b16 %v494
    %v1575 = vunpack.c.l.b16 %v495
    %v1576 = vunpack.c.h.b16 %v495
    %v1577 = vunpack.c.l.b16 %v496
    %v1578 = vunpack.c.h.b16 %v496
    %v1579 = vunpack.c.l.b16 %v497
    %v1580 = vunpack.c.h.b16 %v497
    %v1581 = vunpack.c.l.b16 %v498
    %v1582 = vunpack.c.h.b16 %v498
    %v1583 = vunpack.c.l.b16 %v499
    %v1584 = vunpack.c.h.b16 %v499
    %v1585 = vunpack.c.l.b16 %v500
    %v1586 = vunpack.c.h.b16 %v500
    %v1587 = vunpack.c.l.b16 %v501
    %v1588 = vunpack.c.h.b16 %v501
    %v1589 = vunpack.c.l.b16 %v502
    %v1590 = vunpack.c.h.b16 %v502
    %v1591 = vunpack.c.l.b16 %v503
    %v1592 = vunpack.c.h.b16 %v503
    %v1593 = vunpack.c.l.b16 %v504
    %v1594 = vunpack.c.h.b16 %v504
    %v1595 = vunpack.c.l.b16 %v505
    %v1596 = vunpack.c.h.b16 %v505
    %v1597 = vunpack.c.l.b16 %v506
    %v1598 = vunpack.c.h.b16 %v506
    %v1599 = vunpack.c.l.b16 %v507
    %v1600 = vunpack.c.h.b16 %v507
    %v1601 = vunpack.c.l.b16 %v508
    %v1602 = vunpack.c.h.b16 %v508
    %v1603 = vunpack.c.l.b16 %v509
    %v1604 = vunpack.c.h.b16 %v509
    %v1605 = vunpack.c.l.b16 %v510
    %v1606 = vunpack.c.h.b16 %v510
    %v1607 = vunpack.c.l.b16 %v511
    %v1608 = vunpack.c.h.b16 %v511
    %v1609 = vunpack.c.l.b16 %v512
    %v1610 = vunpack.c.h.b16 %v512
    %v1611 = vunpack.c.l.b16 %v513
    %v1612 = vunpack.c.h.b16 %v513
    %v1613 = vunpack.c.l.b16 %v514
    %v1614 = vunpack.c.h.b16 %v514
    %v1615 = vunpack.c.l.b16 %v515
    %v1616 = vunpack.c.h.b16 %v515
    %v1617 = vunpack.c.l.b16 %v516
    %v1618 = vunpack.c.h.b16 %v516
    %v1619 = vunpack.c.l.b16 %v517
    %v1620 = vunpack.c.h.b16 %v517
    %v1621 = vunpack.c.l.b16 %v518
    %v1622 = vunpack.c.h.b16 %v518
    %v1623 = vunpack.c.l.b16 %v519
    %v1624 = vunpack.c.h.b16 %v519
    %v1625 = vunpack.c.l.b16 %v520
    %v1626 = vunpack.c.h.b16 %v520
    %v1627 = vunpack.c.l.b16 %v521
    %v1628 = vunpack.c.h.b16 %v521
    %v1629 = vunpack.c.l.b16 %v522
    %v1630 = vunpack.c.h.b16 %v522
    %v1631 = vunpack.c.l.b16 %v523
    %v1632 = vunpack.c.h.b16 %v523
    %v1633 = vunpack.c.l.b16 %v524
    %v1634 = vunpack.c.h.b16 %v524
    %v1635 = vunpack.c.l.b16 %v525
    %v1636 = vunpack.c.h.b16 %v525
    %v1637 = vunpack.c.l.b16 %v526
    %v1638 = vunpack.c.h.b16 %v526
    %v1639 = vunpack.c.l.b16 %v527
    %v1640 = vunpack.c.h.b16 %v527
    %v1641 = vunpack.c.l.b16 %v528
    %v1642 = vunpack.c.h.b16 %v528
    %v1643 = vunpack.c.l.b16 %v529
    %v1644 = vunpack.c.h.b16 %v529
    %v1645 = vunpack.c.l.b16 %v530
    %v1646 = vunpack.c.h.b16 %v530
    %v1647 = vunpack.c.l.b16 %v531
    %v1648 = vunpack.c.h.b16 %v531
    %v1649 = vunpack.c.l.b16 %v532
    %v1650 = vunpack.c.h.b16 %v532
    %v1651 = vunpack.c.l.b16 %v533
    %v1652 = vunpack.c.h.b16 %v533
    %v1653 = vunpack.c.l.b16 %v534
    %v1654 = vunpack.c.h.b16 %v534
    %v1655 = vunpack.c.l.b16 %v535
    %v1656 = vunpack.c.h.b16 %v535
    %v1657 = vunpack.c.l.b16 %v536
    %v1658 = vunpack.c.h.b16 %v536
    %v1659 = vunpack.c.l.b16 %v537
    %v1660 = vunpack.c.h.b16 %v537
    %v1661 = vunpack.c.l.b16 %v538
    %v1662 = vunpack.c.h.b16 %v538
    %v1663 = vunpack.c.l.b16 %v539
    %v1664 = vunpack.c.h.b16 %v539
    %v1665 = vunpack.c.l.b16 %v540
    %v1666 = vunpack.c.h.b16 %v540
    %v1667 = vunpack.c.l.b16 %v541
    %v1668 = vunpack.c.h.b16 %v541
    %v1669 = vunpack.c.l.b16 %v542
    %v1670 = vunpack.c.h.b16 %v542
    %v1671 = vunpack.c.l.b16 %v543
    %v1672 = vunpack.c.h.b16 %v543
    %v1673 = vunpack.c.l.b16 %v544
    %v1674 = vunpack.c.h.b16 %v544
    %v1675 = vunpack.c.l.b16 %v545
    %v1676 = vunpack.c.h.b16 %v545
    %v1677 = vunpack.c.l.b16 %v546
    %v1678 = vunpack.c.h.b16 %v546
    %v1679 = vunpack.c.l.b16 %v547
    %v1680 = vunpack.c.h.b16 %v547
    %v1681 = vunpack.c.l.b16 %v548
    %v1682 = vunpack.c.h.b16 %v548
    %v1683 = vunpack.c.l.b16 %v549
    %v1684 = vunpack.c.h.b16 %v549
    %v1685 = vunpack.c.l.b16 %v550
    %v1686 = vunpack.c.h.b16 %v550
    %v1687 = vunpack.c.l.b16 %v551
    %v1688 = vunpack.c.h.b16 %v551
    %v1689 = vunpack.c.l.b16 %v552
    %v1690 = vunpack.c.h.b16 %v552
    %v1691 = vunpack.c.l.b16 %v553
    %v1692 = vunpack.c.h.b16 %v553
    %v1693 = vunpack.c.l.b16 %v554
    %v1694 = vunpack.c.h.b16 %v554
    %v1695 = vunpack.c.l.b16 %v555
    %v1696 = vunpack.c.h.b16 %v555
    %v1697 = vunpack.c.l.b16 %v556
    %v1698 = vunpack.c.h.b16 %v556
    %v1699 = vunpack.c.l.b16 %v557
    %v1700 = vunpack.c.h.b16 %v557
    %v1701 = vunpack.c.l.b16 %v558
    %v1702 = vunpack.c.h.b16 %v558
    %v1703 = vunpack.c.l.b16 %v559
    %v1704 = vunpack.c.h.b16 %v559
    %v1705 = vunpack.c.l.b16 %v560
    %v1706 = vunpack.c.h.b16 %v560
    %v1707 = vunpack.c.l.b16 %v561
    %v1708 = vunpack.c.h.b16 %v561
    %v1709 = vunpack.c.l.b16 %v562
    %v1710 = vunpack.c.h.b16 %v562
    %v1711 = vunpack.c.l.b16 %v563
    %v1712 = vunpack.c.h.b16 %v563
    %v1713 = vunpack.c.l.b16 %v564
    %v1714 = vunpack.c.h.b16 %v564
    %v1715 = vunpack.c.l.b16 %v565
    %v1716 = vunpack.c.h.b16 %v565
    %v1717 = vunpack.c.l.b16 %v566
    %v1718 = vunpack.c.h.b16 %v566
    %v1719 = vpack.c.b16 %v999, %v951
    %v1720 = vpack.c.b16 %v1000, %v952
    %v1721 = vpack.c.b16 %v1001, %v953
    %v1722 = vpack.c.b16 %v1002, %v954
    %v1723 = vpack.c.b16 %v1003, %v955
    %v1724 = vpack.c.b16 %v1004, %v956
    %v1725 = vpack.c.b16 %v1005, %v957
    %v1726 = vpack.c.b16 %v1006, %v958
    %v1727 = vpack.c.b16 %v1007, %v959
    %v1728 = vpack.c.b16 %v1008, %v960
    %v1729 = vpack.c.b16 %v1009, %v961
    %v1730 = vpack.c.b16 %v1010, %v962
    %v1731 = vpack.c.b16 %v1011, %v963
    %v1732 = vpack.c.b16 %v1012, %v964
    %v1733 = vpack.c.b16 %v1013, %v965
    %v1734 = vpack.c.b16 %v1014, %v966
    %v1735 = vpack.c.b16 %v1015, %v967
    %v1736 = vpack.c.b16 %v1016, %v968
    %v1737 = vpack.c.b16 %v1017, %v969
    %v1738 = vpack.c.b16 %v1018, %v970
    %v1739 = vpack.c.b16 %v1019, %v971
    %v1740 = vpack.c.b16 %v1020, %v972
    %v1741 = vpack.c.b16 %v1021, %v973
    %v1742 = vpack.c.b16 %v1022, %v974
    %v1743 = vpack.c.b16 %v1023, %v975
    %v1744 = vpack.c.b16 %v1024, %v976
    %v1745 = vpack.c.b16 %v1025, %v977
    %v1746 = vpack.c.b16 %v1026, %v978
    %v1747 = vpack.c.b16 %v1027, %v979
    %v1748 = vpack.c.b16 %v1028, %v980
    %v1749 = vpack.c.b16 %v1029, %v981
    %v1750 = vpack.c.b16 %v1030, %v982
    %v1751 = vpack.c.b16 %v1031, %v983
    %v1752 = vpack.c.b16 %v1032, %v984
    %v1753 = vpack.c.b16 %v1033, %v985
    %v1754 = vpack.c.b16 %v1034, %v986
    %v1755 = vpack.c.b16 %v1035, %v987
    %v1756 = vpack.c.b16 %v1036, %v988
    %v1757 = vpack.c.b16 %v1037, %v989
    %v1758 = vpack.c.b16 %v1038, %v990
    %v1759 = vpack.c.b16 %v1039, %v991
    %v1760 = vpack.c.b16 %v1040, %v992
    %v1761 = vpack.c.b16 %v1041, %v993
    %v1762 = vpack.c.b16 %v1042, %v994
    %v1763 = vpack.c.b16 %v1043, %v995
    %v1764 = vpack.c.b16 %v1044, %v996
    %v1765 = vpack.c.b16 %v1045, %v997
    %v1766 = vpack.c.b16 %v1046, %v998
    %v1767 = vpack.c.b16 %v1095, %v1047
    %v1768 = vpack.c.b16 %v1096, %v1048
    %v1769 = vpack.c.b16 %v1097, %v1049
    %v1770 = vpack.c.b16 %v1098, %v1050
    %v1771 = vpack.c.b16 %v1099, %v1051
    %v1772 = vpack.c.b16 %v1100, %v1052
    %v1773 = vpack.c.b16 %v1101, %v1053
    %v1774 = vpack.c.b16 %v1102, %v1054
    %v1775 = vpack.c.b16 %v1103, %v1055
    %v1776 = vpack.c.b16 %v1104, %v1056
    %v1777 = vpack.c.b16 %v1105, %v1057
    %v1778 = vpack.c.b16 %v1106, %v1058
    %v1779 = vpack.c.b16 %v1107, %v1059
    %v1780 = vpack.c.b16 %v1108, %v1060
    %v1781 = vpack.c.b16 %v1109, %v1061
    %v1782 = vpack.c.b16 %v1110, %v1062
    %v1783 = vpack.c.b16 %v1111, %v1063
    %v1784 = vpack.c.b16 %v1112, %v1064
    %v1785 = vpack.c.b16 %v1113, %v1065
    %v1786 = vpack.c.b16 %v1114, %v1066
    %v1787 = vpack.c.b16 %v1115, %v1067
    %v1788 = vpack.c.b16 %v1116, %v1068
    %v1789 = vpack.c.b16 %v1117, %v1069
    %v1790 = vpack.c.b16 %v1118, %v1070
    %v1791 = vpack.c.b16 %v1119, %v1071
    %v1792 = vpack.c.b16 %v1120, %v1072
    %v1793 = vpack.c.b16 %v1121, %v1073
    %v1794 = vpack.c.b16 %v1122, %v1074
    %v1795 = vpack.c.b16 %v1123, %v1075
    %v1796 = vpack.c.b16 %v1124, %v1076
    %v1797 = vpack.c.b16 %v1125, %v1077
    %v1798 = vpack.c.b16 %v1126, %v1078
    %v1799 = vpack.c.b16 %v1127, %v1079
    %v1800 = vpack.c.b16 %v1128, %v1080
    %v1801 = vpack.c.b16 %v1129, %v1081
    %v1802 = vpack.c.b16 %v1130, %v1082
    %v1803 = vpack.c.b16 %v1131, %v1083
    %v1804 = vpack.c.b16 %v1132, %v1084
    %v1805 = vpack.c.b16 %v1133, %v1085
    %v1806 = vpack.c.b16 %v1134, %v1086
    %v1807 = vpack.c.b16 %v1135, %v1087
    %v1808 = vpack.c.b16 %v1136, %v1088
    %v1809 = vpack.c.b16 %v1137, %v1089
    %v1810 = vpack.c.b16 %v1138, %v1090
    %v1811 = vpack.c.b16 %v1139, %v1091
    %v1812 = vpack.c.b16 %v1140, %v1092
    %v1813 = vpack.c.b16 %v1141, %v1093
    %v1814 = vpack.c.b16 %v1142, %v1094
    %v1815 = vpack.c.b16 %v1191, %v1143
    %v1816 = vpack.c.b16 %v1192, %v1144
    %v1817 = vpack.c.b16 %v1193, %v1145
    %v1818 = vpack.c.b16 %v1194, %v1146
    %v1819 = vpack.c.b16 %v1195, %v1147
    %v1820 = vpack.c.b16 %v1196, %v1148
    %v1821 = vpack.c.b16 %v1197, %v1149
    %v1822 = vpack.c.b16 %v1198, %v1150
    %v1823 = vpack.c.b16 %v1199, %v1151
    %v1824 = vpack.c.b16 %v1200, %v1152
    %v1825 = vpack.c.b16 %v1201, %v1153
    %v1826 = vpack.c.b16 %v1202, %v1154
    %v1827 = vpack.c.b16 %v1203, %v1155
    %v1828 = vpack.c.b16 %v1204, %v1156
    %v1829 = vpack.c.b16 %v1205, %v1157
    %v1830 = vpack.c.b16 %v1206, %v1158
    %v1831 = vpack.c.b16 %v1207, %v1159
    %v1832 = vpack.c.b16 %v1208, %v1160
    %v1833 = vpack.c.b16 %v1209, %v1161
    %v1834 = vpack.c.b16 %v1210, %v1162
    %v1835 = vpack.c.b16 %v1211, %v1163
    %v1836 = vpack.c.b16 %v1212, %v1164
    %v1837 = vpack.c.b16 %v1213, %v1165
    %v1838 = vpack.c.b16 %v1214, %v1166
    %v1839 = vpack.c.b16 %v1215, %v1167
    %v1840 = vpack.c.b16 %v1216, %v1168
    %v1841 = vpack.c.b16 %v1217, %v1169
    %v1842 = vpack.c.b16 %v1218, %v1170
    %v1843 = vpack.c.b16 %v1219, %v1171
    %v1844 = vpack.c.b16 %v1220, %v1172
    %v1845 = vpack.c.b16 %v1221, %v1173
    %v1846 = vpack.c.b16 %v1222, %v1174
    %v1847 = vpack.c.b16 %v1223, %v1175
    %v1848 = vpack.c.b16 %v1224, %v1176
    %v1849 = vpack.c.b16 %v1225, %v1177
    %v1850 = vpack.c.b16 %v1226, %v1178
    %v1851 = vpack.c.b16 %v1227, %v1179
    %v1852 = vpack.c.b16 %v1228, %v1180
    %v1853 = vpack.c.b16 %v1229, %v1181
    %v1854 = vpack.c.b16 %v1230, %v1182
    %v1855 = vpack.c.b16 %v1231, %v1183
    %v1856 = vpack.c.b16 %v1232, %v1184
    %v1857 = vpack.c.b16 %v1233, %v1185
    %v1858 = vpack.c.b16 %v1234, %v1186
    %v1859 = vpack.c.b16 %v1235, %v1187
    %v1860 = vpack.c.b16 %v1236, %v1188
    %v1861 = vpack.c.b16 %v1237, %v1189
    %v1862 = vpack.c.b16 %v1238, %v1190
    %v1863 = vpack.c.b16 %v1287, %v1239
    %v1864 = vpack.c.b16 %v1288, %v1240
    %v1865 = vpack.c.b16 %v1289, %v1241
    %v1866 = vpack.c.b16 %v1290, %v1242
    %v1867 = vpack.c.b16 %v1291, %v1243
    %v1868 = vpack.c.b16 %v1292, %v1244
    %v1869 = vpack.c.b16 %v1293, %v1245
    %v1870 = vpack.c.b16 %v1294, %v1246
    %v1871 = vpack.c.b16 %v1295, %v1247
    %v1872 = vpack.c.b16 %v1296, %v1248
    %v1873 = vpack.c.b16 %v1297, %v1249
    %v1874 = vpack.c.b16 %v1298, %v1250
    %v1875 = vpack.c.b16 %v1299, %v1251
    %v1876 = vpack.c.b16 %v1300, %v1252
    %v1877 = vpack.c.b16 %v1301, %v1253
    %v1878 = vpack.c.b16 %v1302, %v1254
    %v1879 = vpack.c.b16 %v1303, %v1255
    %v1880 = vpack.c.b16 %v1304, %v1256
    %v1881 = vpack.c.b16 %v1305, %v1257
    %v1882 = vpack.c.b16 %v1306, %v1258
    %v1883 = vpack.c.b16 %v1307, %v1259
    %v1884 = vpack.c.b16 %v1308, %v1260
    %v1885 = vpack.c.b16 %v1309, %v1261
    %v1886 = vpack.c.b16 %v1310, %v1262
    %v1887 = vpack.c.b16 %v1311, %v1263
    %v1888 = vpack.c.b16 %v1312, %v1264
    %v1889 = vpack.c.b16 %v1313, %v1265
    %v1890 = vpack.c.b16 %v1314, %v1266
    %v1891 = vpack.c.b16 %v1315, %v1267
    %v1892 = vpack.c.b16 %v1316, %v1268
    %v1893 = vpack.c.b16 %v1317, %v1269
    %v1894 = vpack.c.b16 %v1318, %v1270
    %v1895 = vpack.c.b16 %v1319, %v1271
    %v1896 = vpack.c.b16 %v1320, %v1272
    %v1897 = vpack.c.b16 %v1321, %v1273
    %v1898 = vpack.c.b16 %v1322, %v1274
    %v1899 = vpack.c.b16 %v1323, %v1275
    %v1900 = vpack.c.b16 %v1324, %v1276
    %v1901 = vpack.c.b16 %v1325, %v1277
    %v1902 = vpack.c.b16 %v1326, %v1278
    %v1903 = vpack.c.b16 %v1327, %v1279
    %v1904 = vpack.c.b16 %v1328, %v1280
    %v1905 = vpack.c.b16 %v1329, %v1281
    %v1906 = vpack.c.b16 %v1330, %v1282
    %v1907 = vpack.c.b16 %v1331, %v1283
    %v1908 = vpack.c.b16 %v1332, %v1284
    %v1909 = vpack.c.b16 %v1333, %v1285
    %v1910 = vpack.c.b16 %v1334, %v1286
    %v1911 = vpack.c.b16 %v1383, %v1335
    %v1912 = vpack.c.b16 %v1384, %v1336
    %v1913 = vpack.c.b16 %v1385, %v1337
    %v1914 = vpack.c.b16 %v1386, %v1338
    %v1915 = vpack.c.b16 %v1387, %v1339
    %v1916 = vpack.c.b16 %v1388, %v1340
    %v1917 = vpack.c.b16 %v1389, %v1341
    %v1918 = vpack.c.b16 %v1390, %v1342
    %v1919 = vpack.c.b16 %v1391, %v1343
    %v1920 = vpack.c.b16 %v1392, %v1344
    %v1921 = vpack.c.b16 %v1393, %v1345
    %v1922 = vpack.c.b16 %v1394, %v1346
    %v1923 = vpack.c.b16 %v1395, %v1347
    %v1924 = vpack.c.b16 %v1396, %v1348
    %v1925 = vpack.c.b16 %v1397, %v1349
    %v1926 = vpack.c.b16 %v1398, %v1350
    %v1927 = vpack.c.b16 %v1399, %v1351
    %v1928 = vpack.c.b16 %v1400, %v1352
    %v1929 = vpack.c.b16 %v1401, %v1353
    %v1930 = vpack.c.b16 %v1402, %v1354
    %v1931 = vpack.c.b16 %v1403, %v1355
    %v1932 = vpack.c.b16 %v1404, %v1356
    %v1933 = vpack.c.b16 %v1405, %v1357
    %v1934 = vpack.c.b16 %v1406, %v1358
    %v1935 = vpack.c.b16 %v1407, %v1359
    %v1936 = vpack.c.b16 %v1408, %v1360
    %v1937 = vpack.c.b16 %v1409, %v1361
    %v1938 = vpack.c.b16 %v1410, %v1362
    %v1939 = vpack.c.b16 %v1411, %v1363
    %v1940 = vpack.c.b16 %v1412, %v1364
    %v1941 = vpack.c.b16 %v1413, %v1365
    %v1942 = vpack.c.b16 %v1414, %v1366
    %v1943 = vpack.c.b16 %v1415, %v1367
    %v1944 = vpack.c.b16 %v1416, %v1368
    %v1945 = vpack.c.b16 %v1417, %v1369
    %v1946 = vpack.c.b16 %v1418, %v1370
    %v1947 = vpack.c.b16 %v1419, %v1371
    %v1948 = vpack.c.b16 %v1420, %v1372
    %v1949 = vpack.c.b16 %v1421, %v1373
    %v1950 = vpack.c.b16 %v1422, %v1374
    %v1951 = vpack.c.b16 %v1423, %v1375
    %v1952 = vpack.c.b16 %v1424, %v1376
    %v1953 = vpack.c.b16 %v1425, %v1377
    %v1954 = vpack.c.b16 %v1426, %v1378
    %v1955 = vpack.c.b16 %v1427, %v1379
    %v1956 = vpack.c.b16 %v1428, %v1380
    %v1957 = vpack.c.b16 %v1429, %v1381
    %v1958 = vpack.c.b16 %v1430, %v1382
    %v1959 = vpack.c.b16 %v1479, %v1431
    %v1960 = vpack.c.b16 %v1480, %v1432
    %v1961 = vpack.c.b16 %v1481, %v1433
    %v1962 = vpack.c.b16 %v1482, %v1434
    %v1963 = vpack.c.b16 %v1483, %v1435
    %v1964 = vpack.c.b16 %v1484, %v1436
    %v1965 = vpack.c.b16 %v1485, %v1437
    %v1966 = vpack.c.b16 %v1486, %v1438
    %v1967 = vpack.c.b16 %v1487, %v1439
    %v1968 = vpack.c.b16 %v1488, %v1440
    %v1969 = vpack.c.b16 %v1489, %v1441
    %v1970 = vpack.c.b16 %v1490, %v1442
    %v1971 = vpack.c.b16 %v1491, %v1443
    %v1972 = vpack.c.b16 %v1492, %v1444
    %v1973 = vpack.c.b16 %v1493, %v1445
    %v1974 = vpack.c.b16 %v1494, %v1446
    %v1975 = vpack.c.b16 %v1495, %v1447
    %v1976 = vpack.c.b16 %v1496, %v1448
    %v1977 = vpack.c.b16 %v1497, %v1449
    %v1978 = vpack.c.b16 %v1498, %v1450
    %v1979 = vpack.c.b16 %v1499, %v1451
    %v1980 = vpack.c.b16 %v1500, %v1452
    %v1981 = vpack.c.b16 %v1501, %v1453
    %v1982 = vpack.c.b16 %v1502, %v1454
    %v1983 = vpack.c.b16 %v1503, %v1455
    %v1984 = vpack.c.b16 %v1504, %v1456
    %v1985 = vpack.c.b16 %v1505, %v1457
    %v1986 = vpack.c.b16 %v1506, %v1458
    %v1987 = vpack.c.b16 %v1507, %v1459
    %v1988 = vpack.c.b16 %v1508, %v1460
    %v1989 = vpack.c.b16 %v1509, %v1461
    %v1990 = vpack.c.b16 %v1510, %v1462
    %v1991 = vpack.c.b16 %v1511, %v1463
    %v1992 = vpack.c.b16 %v1512, %v1464
    %v1993 = vpack.c.b16 %v1513, %v1465
    %v1994 = vpack.c.b16 %v1514, %v1466
    %v1995 = vpack.c.b16 %v1515, %v1467
    %v1996 = vpack.c.b16 %v1516, %v1468
    %v1997 = vpack.c.b16 %v1517, %v1469
    %v1998 = vpack.c.b16 %v1518, %v1470
    %v1999 = vpack.c.b16 %v1519, %v1471
    %v2000 = vpack.c.b16 %v1520, %v1472
    %v2001 = vpack.c.b16 %v1521, %v1473
    %v2002 = vpack.c.b16 %v1522, %v1474
    %v2003 = vpack.c.b16 %v1523, %v1475
    %v2004 = vpack.c.b16 %v1524, %v1476
    %v2005 = vpack.c.b16 %v1525, %v1477
    %v2006 = vpack.c.b16 %v1526, %v1478
    %v2007 = vpack.c.b16 %v1575, %v1527
    %v2008 = vpack.c.b16 %v1576, %v1528
    %v2009 = vpack.c.b16 %v1577, %v1529
    %v2010 = vpack.c.b16 %v1578, %v1530
    %v2011 = vpack.c.b16 %v1579, %v1531
    %v2012 = vpack.c.b16 %v1580, %v1532
    %v2013 = vpack.c.b16 %v1581, %v1533
    %v2014 = vpack.c.b16 %v1582, %v1534
    %v2015 = vpack.c.b16 %v1583, %v1535
    %v2016 = vpack.c.b16 %v1584, %v1536
    %v2017 = vpack.c.b16 %v1585, %v1537
    %v2018 = vpack.c.b16 %v1586, %v1538
    %v2019 = vpack.c.b16 %v1587, %v1539
    %v2020 = vpack.c.b16 %v1588, %v1540
    %v2021 = vpack.c.b16 %v1589, %v1541
    %v2022 = vpack.c.b16 %v1590, %v1542
    %v2023 = vpack.c.b16 %v1591, %v1543
    %v2024 = vpack.c.b16 %v1592, %v1544
    %v2025 = vpack.c.b16 %v1593, %v1545
    %v2026 = vpack.c.b16 %v1594, %v1546
    %v2027 = vpack.c.b16 %v1595, %v1547
    %v2028 = vpack.c.b16 %v1596, %v1548
    %v2029 = vpack.c.b16 %v1597, %v1549
    %v2030 = vpack.c.b16 %v1598, %v1550
    %v2031 = vpack.c.b16 %v1599, %v1551
    %v2032 = vpack.c.b16 %v1600, %v1552
    %v2033 = vpack.c.b16 %v1601, %v1553
    %v2034 = vpack.c.b16 %v1602, %v1554
    %v2035 = vpack.c.b16 %v1603, %v1555
    %v2036 = vpack.c.b16 %v1604, %v1556
    %v2037 = vpack.c.b16 %v1605, %v1557
    %v2038 = vpack.c.b16 %v1606, %v1558
    %v2039 = vpack.c.b16 %v1607, %v1559
    %v2040 = vpack.c.b16 %v1608, %v1560
    %v2041 = vpack.c.b16 %v1609, %v1561
    %v2042 = vpack.c.b16 %v1610, %v1562
    %v2043 = vpack.c.b16 %v1611, %v1563
    %v2044 = vpack.c.b16 %v1612, %v1564
    %v2045 = vpack.c.b16 %v1613, %v1565
    %v2046 = vpack.c.b16 %v1614, %v1566
    %v2047 = vpack.c.b16 %v1615, %v1567
    %v2048 = vpack.c.b16 %v1616, %v1568
    %v2049 = vpack.c.b16 %v1617, %v1569
    %v2050 = vpack.c.b16 %v1618, %v1570
    %v2051 = vpack.c.b16 %v1619, %v1571
    %v2052 = vpack.c.b16 %v1620, %v1572
    %v2053 = vpack.c.b16 %v1621, %v1573
    %v2054 = vpack.c.b16 %v1622, %v1574
    %v2055 = vpack.c.b16 %v1671, %v1623
    %v2056 = vpack.c.b16 %v1672, %v1624
    %v2057 = vpack.c.b16 %v1673, %v1625
    %v2058 = vpack.c.b16 %v1674, %v1626
    %v2059 = vpack.c.b16 %v1675, %v1627
    %v2060 = vpack.c.b16 %v1676, %v1628
    %v2061 = vpack.c.b16 %v1677, %v1629
    %v2062 = vpack.c.b16 %v1678, %v1630
    %v2063 = vpack.c.b16 %v1679, %v1631
    %v2064 = vpack.c.b16 %v1680, %v1632
    %v2065 = vpack.c.b16 %v1681, %v1633
    %v2066 = vpack.c.b16 %v1682, %v1634
    %v2067 = vpack.c.b16 %v1683, %v1635
    %v2068 = vpack.c.b16 %v1684, %v1636
    %v2069 = vpack.c.b16 %v1685, %v1637
    %v2070 = vpack.c.b16 %v1686, %v1638
    %v2071 = vpack.c.b16 %v1687, %v1639
    %v2072 = vpack.c.b16 %v1688, %v1640
    %v2073 = vpack.c.b16 %v1689, %v1641
    %v2074 = vpack.c.b16 %v1690, %v1642
    %v2075 = vpack.c.b16 %v1691, %v1643
    %v2076 = vpack.c.b16 %v1692, %v1644
    %v2077 = vpack.c.b16 %v1693, %v1645
    %v2078 = vpack.c.b16 %v1694, %v1646
    %v2079 = vpack.c.b16 %v1695, %v1647
    %v2080 = vpack.c.b16 %v1696, %v1648
    %v2081 = vpack.c.b16 %v1697, %v1649
    %v2082 = vpack.c.b16 %v1698, %v1650
    %v2083 = vpack.c.b16 %v1699, %v1651
    %v2084 = vpack.c.b16 %v1700, %v1652
    %v2085 = vpack.c.b16 %v1701, %v1653
    %v2086 = vpack.c.b16 %v1702, %v1654
    %v2087 = vpack.c.b16 %v1703, %v1655
    %v2088 = vpack.c.b16 %v1704, %v1656
    %v2089 = vpack.c.b16 %v1705, %v1657
    %v2090 = vpack.c.b16 %v1706, %v1658
    %v2091 = vpack.c.b16 %v1707, %v1659
    %v2092 = vpack.c.b16 %v1708, %v1660
    %v2093 = vpack.c.b16 %v1709, %v1661
    %v2094 = vpack.c.b16 %v1710, %v1662
    %v2095 = vpack.c.b16 %v1711, %v1663
    %v2096 = vpack.c.b16 %v1712, %v1664
    %v2097 = vpack.c.b16 %v1713, %v1665
    %v2098 = vpack.c.b16 %v1714, %v1666
    %v2099 = vpack.c.b16 %v1715, %v1667
    %v2100 = vpack.c.b16 %v1716, %v1668
    %v2101 = vpack.c.b16 %v1717, %v1669
    %v2102 = vpack.c.b16 %v1718, %v1670
    %2487 = vmatpush.bf16.msra.mxu0 %v2055
    %2488 = vmatpush.bf16.msra.mxu0 %v2007
    %2489 = vmatpush.bf16.msra.mxu0 %v1959
    %2490 = vmatpush.bf16.msra.mxu0 %v1911
    %2491 = vmatpush.bf16.msra.mxu0 %v1863
    %2492 = vmatpush.bf16.msra.mxu0 %v1815
    %2493 = vmatpush.bf16.msra.mxu0 %v1767
    %2494 = vmatpush.bf16.msra.mxu0 %v1719
    %2495 = vmatmul.bf16.gmra.mxu0 %v177
    %v2496 = vpop.f32.mrf.mxu0
    %v2497 = vadd.f32 0.0, %v2496
    %v2498 = vpop.f32.mrf.mxu0
    %v2499 = vadd.f32 0.0, %v2498
    %2500 = vmatmul.bf16.gmra.mxu0 %v178
    %v2501 = vpop.f32.mrf.mxu0
    %v2502 = vadd.f32 0.0, %v2501
    %v2503 = vpop.f32.mrf.mxu0
    %v2504 = vadd.f32 0.0, %v2503
    %2505 = vmatmul.bf16.gmra.mxu0 %v179
    %v2506 = vpop.f32.mrf.mxu0
    %v2507 = vadd.f32 0.0, %v2506
    %v2508 = vpop.f32.mrf.mxu0
    %v2509 = vadd.f32 0.0, %v2508
    %2510 = vmatmul.bf16.gmra.mxu0 %v180
    %v2511 = vpop.f32.mrf.mxu0
    %v2512 = vadd.f32 0.0, %v2511
    %v2513 = vpop.f32.mrf.mxu0
    %v2514 = vadd.f32 0.0, %v2513
    %2515 = vmatmul.bf16.gmra.mxu0 %v181
    %v2516 = vpop.f32.mrf.mxu0
    %v2517 = vpop.f32.mrf.mxu0
    %2518 = vmatmul.bf16.gmra.mxu0 %v182
    %v2519 = vpop.f32.mrf.mxu0
    %v2520 = vpop.f32.mrf.mxu0
    %2521 = vdwg.mxu0
    %2522 = vmatpush.bf16.msra.mxu0 %v2056
    %2523 = vmatpush.bf16.msra.mxu0 %v2008
    %2524 = vmatpush.bf16.msra.mxu0 %v1960
    %2525 = vmatpush.bf16.msra.mxu0 %v1912
    %2526 = vmatpush.bf16.msra.mxu0 %v1864
    %2527 = vmatpush.bf16.msra.mxu0 %v1816
    %2528 = vmatpush.bf16.msra.mxu0 %v1768
    %2529 = vmatpush.bf16.msra.mxu0 %v1720
    %2530 = vmatmul.bf16.gmra.mxu0 %v177
    %v2531 = vpop.f32.mrf.mxu0
    %v2532 = vadd.f32 0.0, %v2531
    %v2533 = vpop.f32.mrf.mxu0
    %v2534 = vadd.f32 0.0, %v2533
    %2535 = vmatmul.bf16.gmra.mxu0 %v178
    %v2536 = vpop.f32.mrf.mxu0
    %v2537 = vadd.f32 0.0, %v2536
    %v2538 = vpop.f32.mrf.mxu0
    %v2539 = vadd.f32 0.0, %v2538
    %2540 = vmatmul.bf16.gmra.mxu0 %v179
    %v2541 = vpop.f32.mrf.mxu0
    %v2542 = vadd.f32 0.0, %v2541
    %v2543 = vpop.f32.mrf.mxu0
    %v2544 = vadd.f32 0.0, %v2543
    %2545 = vmatmul.bf16.gmra.mxu0 %v180
    %v2546 = vpop.f32.mrf.mxu0
    %v2547 = vadd.f32 0.0, %v2546
    %v2548 = vpop.f32.mrf.mxu0
    %v2549 = vadd.f32 0.0, %v2548
    %2550 = vmatmul.bf16.gmra.mxu0 %v181
    %v2551 = vpop.f32.mrf.mxu0
    %v2552 = vpop.f32.mrf.mxu0
    %2553 = vmatmul.bf16.gmra.mxu0 %v182
    %v2554 = vpop.f32.mrf.mxu0
    %v2555 = vpop.f32.mrf.mxu0
    %2556 = vdwg.mxu0
    %2557 = vmatpush.bf16.msra.mxu0 %v2057
    %2558 = vmatpush.bf16.msra.mxu0 %v2009
    %2559 = vmatpush.bf16.msra.mxu0 %v1961
    %2560 = vmatpush.bf16.msra.mxu0 %v1913
    %2561 = vmatpush.bf16.msra.mxu0 %v1865
    %2562 = vmatpush.bf16.msra.mxu0 %v1817
    %2563 = vmatpush.bf16.msra.mxu0 %v1769
    %2564 = vmatpush.bf16.msra.mxu0 %v1721
    %2565 = vmatmul.bf16.gmra.mxu0 %v177
    %v2566 = vpop.f32.mrf.mxu0
    %v2567 = vadd.f32 0.0, %v2566
    %v2568 = vpop.f32.mrf.mxu0
    %v2569 = vadd.f32 0.0, %v2568
    %2570 = vmatmul.bf16.gmra.mxu0 %v178
    %v2571 = vpop.f32.mrf.mxu0
    %v2572 = vadd.f32 0.0, %v2571
    %v2573 = vpop.f32.mrf.mxu0
    %v2574 = vadd.f32 0.0, %v2573
    %2575 = vmatmul.bf16.gmra.mxu0 %v179
    %v2576 = vpop.f32.mrf.mxu0
    %v2577 = vadd.f32 0.0, %v2576
    %v2578 = vpop.f32.mrf.mxu0
    %v2579 = vadd.f32 0.0, %v2578
    %2580 = vmatmul.bf16.gmra.mxu0 %v180
    %v2581 = vpop.f32.mrf.mxu0
    %v2582 = vadd.f32 0.0, %v2581
    %v2583 = vpop.f32.mrf.mxu0
    %v2584 = vadd.f32 0.0, %v2583
    %2585 = vmatmul.bf16.gmra.mxu0 %v181
    %v2586 = vpop.f32.mrf.mxu0
    %v2587 = vadd.f32 0.0, %v2586
    %v2588 = vpop.f32.mrf.mxu0
    %2589 = vmatmul.bf16.gmra.mxu0 %v182
    %v2590 = vpop.f32.mrf.mxu0
    %v2591 = vpop.f32.mrf.mxu0
    %2592 = vdwg.mxu0
    %2593 = vmatpush.bf16.msra.mxu0 %v2058
    %2594 = vmatpush.bf16.msra.mxu0 %v2010
    %2595 = vmatpush.bf16.msra.mxu0 %v1962
    %2596 = vmatpush.bf16.msra.mxu0 %v1914
    %2597 = vmatpush.bf16.msra.mxu0 %v1866
    %2598 = vmatpush.bf16.msra.mxu0 %v1818
    %2599 = vmatpush.bf16.msra.mxu0 %v1770
    %2600 = vmatpush.bf16.msra.mxu0 %v1722
    %2601 = vmatmul.bf16.gmra.mxu0 %v177
    %v2602 = vpop.f32.mrf.mxu0
    %v2603 = vadd.f32 0.0, %v2602
    %v2604 = vpop.f32.mrf.mxu0
    %v2605 = vadd.f32 0.0, %v2604
    %2606 = vmatmul.bf16.gmra.mxu0 %v178
    %v2607 = vpop.f32.mrf.mxu0
    %v2608 = vadd.f32 0.0, %v2607
    %v2609 = vpop.f32.mrf.mxu0
    %v2610 = vadd.f32 0.0, %v2609
    %2611 = vmatmul.bf16.gmra.mxu0 %v179
    %v2612 = vpop.f32.mrf.mxu0
    %v2613 = vadd.f32 0.0, %v2612
    %v2614 = vpop.f32.mrf.mxu0
    %v2615 = vadd.f32 0.0, %v2614
    %2616 = vmatmul.bf16.gmra.mxu0 %v180
    %v2617 = vpop.f32.mrf.mxu0
    %v2618 = vadd.f32 0.0, %v2617
    %v2619 = vpop.f32.mrf.mxu0
    %v2620 = vadd.f32 0.0, %v2619
    %2621 = vmatmul.bf16.gmra.mxu0 %v181
    %v2622 = vpop.f32.mrf.mxu0
    %v2623 = vadd.f32 0.0, %v2622
    %v2624 = vpop.f32.mrf.mxu0
    %2625 = vmatmul.bf16.gmra.mxu0 %v182
    %v2626 = vpop.f32.mrf.mxu0
    %v2627 = vpop.f32.mrf.mxu0
    %2628 = vdwg.mxu0
    %2629 = vmatpush.bf16.msra.mxu0 %v2059
    %2630 = vmatpush.bf16.msra.mxu0 %v2011
    %2631 = vmatpush.bf16.msra.mxu0 %v1963
    %2632 = vmatpush.bf16.msra.mxu0 %v1915
    %2633 = vmatpush.bf16.msra.mxu0 %v1867
    %2634 = vmatpush.bf16.msra.mxu0 %v1819
    %2635 = vmatpush.bf16.msra.mxu0 %v1771
    %2636 = vmatpush.bf16.msra.mxu0 %v1723
    %2637 = vmatmul.bf16.gmra.mxu0 %v177
    %v2638 = vpop.f32.mrf.mxu0
    %v2639 = vadd.f32 0.0, %v2638
    %v2640 = vpop.f32.mrf.mxu0
    %v2641 = vadd.f32 0.0, %v2640
    %2642 = vmatmul.bf16.gmra.mxu0 %v178
    %v2643 = vpop.f32.mrf.mxu0
    %v2644 = vadd.f32 0.0, %v2643
    %v2645 = vpop.f32.mrf.mxu0
    %v2646 = vadd.f32 0.0, %v2645
    %2647 = vmatmul.bf16.gmra.mxu0 %v179
    %v2648 = vpop.f32.mrf.mxu0
    %v2649 = vadd.f32 0.0, %v2648
    %v2650 = vpop.f32.mrf.mxu0
    %v2651 = vadd.f32 0.0, %v2650
    %2652 = vmatmul.bf16.gmra.mxu0 %v180
    %v2653 = vpop.f32.mrf.mxu0
    %v2654 = vadd.f32 0.0, %v2653
    %v2655 = vpop.f32.mrf.mxu0
    %v2656 = vadd.f32 0.0, %v2655
    %2657 = vmatmul.bf16.gmra.mxu0 %v181
    %v2658 = vpop.f32.mrf.mxu0
    %v2659 = vadd.f32 0.0, %v2658
    %v2660 = vpop.f32.mrf.mxu0
    %2661 = vmatmul.bf16.gmra.mxu0 %v182
    %v2662 = vpop.f32.mrf.mxu0
    %v2663 = vpop.f32.mrf.mxu0
    %2664 = vdwg.mxu0
    %2665 = vmatpush.bf16.msra.mxu0 %v2060
    %2666 = vmatpush.bf16.msra.mxu0 %v2012
    %2667 = vmatpush.bf16.msra.mxu0 %v1964
    %2668 = vmatpush.bf16.msra.mxu0 %v1916
    %2669 = vmatpush.bf16.msra.mxu0 %v1868
    %2670 = vmatpush.bf16.msra.mxu0 %v1820
    %2671 = vmatpush.bf16.msra.mxu0 %v1772
    %2672 = vmatpush.bf16.msra.mxu0 %v1724
    %2673 = vmatmul.bf16.gmra.mxu0 %v177
    %v2674 = vpop.f32.mrf.mxu0
    %v2675 = vadd.f32 0.0, %v2674
    %v2676 = vpop.f32.mrf.mxu0
    %v2677 = vadd.f32 0.0, %v2676
    %2678 = vmatmul.bf16.gmra.mxu0 %v178
    %v2679 = vpop.f32.mrf.mxu0
    %v2680 = vadd.f32 0.0, %v2679
    %v2681 = vpop.f32.mrf.mxu0
    %v2682 = vadd.f32 0.0, %v2681
    %2683 = vmatmul.bf16.gmra.mxu0 %v179
    %v2684 = vpop.f32.mrf.mxu0
    %v2685 = vadd.f32 0.0, %v2684
    %v2686 = vpop.f32.mrf.mxu0
    %v2687 = vadd.f32 0.0, %v2686
    %2688 = vmatmul.bf16.gmra.mxu0 %v180
    %v2689 = vpop.f32.mrf.mxu0
    %v2690 = vadd.f32 0.0, %v2689
    %v2691 = vpop.f32.mrf.mxu0
    %v2692 = vadd.f32 0.0, %v2691
    %2693 = vmatmul.bf16.gmra.mxu0 %v181
    %v2694 = vpop.f32.mrf.mxu0
    %v2695 = vadd.f32 0.0, %v2694
    %v2696 = vpop.f32.mrf.mxu0
    %2697 = vmatmul.bf16.gmra.mxu0 %v182
    %v2698 = vpop.f32.mrf.mxu0
    %v2699 = vpop.f32.mrf.mxu0
    %2700 = vdwg.mxu0
    %2701 = vmatpush.bf16.msra.mxu0 %v2061
    %2702 = vmatpush.bf16.msra.mxu0 %v2013
    %2703 = vmatpush.bf16.msra.mxu0 %v1965
    %2704 = vmatpush.bf16.msra.mxu0 %v1917
    %2705 = vmatpush.bf16.msra.mxu0 %v1869
    %2706 = vmatpush.bf16.msra.mxu0 %v1821
    %2707 = vmatpush.bf16.msra.mxu0 %v1773
    %2708 = vmatpush.bf16.msra.mxu0 %v1725
    %2709 = vmatmul.bf16.gmra.mxu0 %v177
    %v2710 = vpop.f32.mrf.mxu0
    %v2711 = vadd.f32 0.0, %v2710
    %v2712 = vpop.f32.mrf.mxu0
    %v2713 = vadd.f32 0.0, %v2712
    %2714 = vmatmul.bf16.gmra.mxu0 %v178
    %v2715 = vpop.f32.mrf.mxu0
    %v2716 = vadd.f32 0.0, %v2715
    %v2717 = vpop.f32.mrf.mxu0
    %v2718 = vadd.f32 0.0, %v2717
    %2719 = vmatmul.bf16.gmra.mxu0 %v179
    %v2720 = vpop.f32.mrf.mxu0
    %v2721 = vadd.f32 0.0, %v2720
    %v2722 = vpop.f32.mrf.mxu0
    %v2723 = vadd.f32 0.0, %v2722
    %2724 = vmatmul.bf16.gmra.mxu0 %v180
    %v2725 = vpop.f32.mrf.mxu0
    %v2726 = vadd.f32 0.0, %v2725
    %v2727 = vpop.f32.mrf.mxu0
    %v2728 = vadd.f32 0.0, %v2727
    %2729 = vmatmul.bf16.gmra.mxu0 %v181
    %v2730 = vpop.f32.mrf.mxu0
    %v2731 = vadd.f32 0.0, %v2730
    %v2732 = vpop.f32.mrf.mxu0
    %2733 = vmatmul.bf16.gmra.mxu0 %v182
    %v2734 = vpop.f32.mrf.mxu0
    %v2735 = vpop.f32.mrf.mxu0
    %2736 = vdwg.mxu0
    %2737 = vmatpush.bf16.msra.mxu0 %v2062
    %2738 = vmatpush.bf16.msra.mxu0 %v2014
    %2739 = vmatpush.bf16.msra.mxu0 %v1966
    %2740 = vmatpush.bf16.msra.mxu0 %v1918
    %2741 = vmatpush.bf16.msra.mxu0 %v1870
    %2742 = vmatpush.bf16.msra.mxu0 %v1822
    %2743 = vmatpush.bf16.msra.mxu0 %v1774
    %2744 = vmatpush.bf16.msra.mxu0 %v1726
    %2745 = vmatmul.bf16.gmra.mxu0 %v177
    %v2746 = vpop.f32.mrf.mxu0
    %v2747 = vadd.f32 0.0, %v2746
    %v2748 = vpop.f32.mrf.mxu0
    %v2749 = vadd.f32 0.0, %v2748
    %2750 = vmatmul.bf16.gmra.mxu0 %v178
    %v2751 = vpop.f32.mrf.mxu0
    %v2752 = vadd.f32 0.0, %v2751
    %v2753 = vpop.f32.mrf.mxu0
    %v2754 = vadd.f32 0.0, %v2753
    %2755 = vmatmul.bf16.gmra.mxu0 %v179
    %v2756 = vpop.f32.mrf.mxu0
    %v2757 = vadd.f32 0.0, %v2756
    %v2758 = vpop.f32.mrf.mxu0
    %v2759 = vadd.f32 0.0, %v2758
    %2760 = vmatmul.bf16.gmra.mxu0 %v180
    %v2761 = vpop.f32.mrf.mxu0
    %v2762 = vadd.f32 0.0, %v2761
    %v2763 = vpop.f32.mrf.mxu0
    %v2764 = vadd.f32 0.0, %v2763
    %2765 = vmatmul.bf16.gmra.mxu0 %v181
    %v2766 = vpop.f32.mrf.mxu0
    %v2767 = vadd.f32 0.0, %v2766
    %v2768 = vpop.f32.mrf.mxu0
    %2769 = vmatmul.bf16.gmra.mxu0 %v182
    %v2770 = vpop.f32.mrf.mxu0
    %v2771 = vpop.f32.mrf.mxu0
    %2772 = vdwg.mxu0
    %2773 = vmatpush.bf16.msra.mxu0 %v2063
    %2774 = vmatpush.bf16.msra.mxu0 %v2015
    %2775 = vmatpush.bf16.msra.mxu0 %v1967
    %2776 = vmatpush.bf16.msra.mxu0 %v1919
    %2777 = vmatpush.bf16.msra.mxu0 %v1871
    %2778 = vmatpush.bf16.msra.mxu0 %v1823
    %2779 = vmatpush.bf16.msra.mxu0 %v1775
    %2780 = vmatpush.bf16.msra.mxu0 %v1727
    %2781 = vmatmul.bf16.gmra.mxu0 %v177
    %v2782 = vpop.f32.mrf.mxu0
    %v2783 = vadd.f32 0.0, %v2782
    %v2784 = vpop.f32.mrf.mxu0
    %v2785 = vadd.f32 0.0, %v2784
    %2786 = vmatmul.bf16.gmra.mxu0 %v178
    %v2787 = vpop.f32.mrf.mxu0
    %v2788 = vadd.f32 0.0, %v2787
    %v2789 = vpop.f32.mrf.mxu0
    %v2790 = vadd.f32 0.0, %v2789
    %2791 = vmatmul.bf16.gmra.mxu0 %v179
    %v2792 = vpop.f32.mrf.mxu0
    %v2793 = vadd.f32 0.0, %v2792
    %v2794 = vpop.f32.mrf.mxu0
    %v2795 = vadd.f32 0.0, %v2794
    %2796 = vmatmul.bf16.gmra.mxu0 %v180
    %v2797 = vpop.f32.mrf.mxu0
    %v2798 = vadd.f32 0.0, %v2797
    %v2799 = vpop.f32.mrf.mxu0
    %v2800 = vadd.f32 0.0, %v2799
    %2801 = vmatmul.bf16.gmra.mxu0 %v181
    %v2802 = vpop.f32.mrf.mxu0
    %v2803 = vadd.f32 0.0, %v2802
    %v2804 = vpop.f32.mrf.mxu0
    %2805 = vmatmul.bf16.gmra.mxu0 %v182
    %v2806 = vpop.f32.mrf.mxu0
    %v2807 = vpop.f32.mrf.mxu0
    %2808 = vdwg.mxu0
    %2809 = vmatpush.bf16.msra.mxu0 %v2064
    %2810 = vmatpush.bf16.msra.mxu0 %v2016
    %2811 = vmatpush.bf16.msra.mxu0 %v1968
    %2812 = vmatpush.bf16.msra.mxu0 %v1920
    %2813 = vmatpush.bf16.msra.mxu0 %v1872
    %2814 = vmatpush.bf16.msra.mxu0 %v1824
    %2815 = vmatpush.bf16.msra.mxu0 %v1776
    %2816 = vmatpush.bf16.msra.mxu0 %v1728
    %2817 = vmatmul.bf16.gmra.mxu0 %v177
    %v2818 = vpop.f32.mrf.mxu0
    %v2819 = vadd.f32 0.0, %v2818
    %v2820 = vpop.f32.mrf.mxu0
    %v2821 = vadd.f32 0.0, %v2820
    %2822 = vmatmul.bf16.gmra.mxu0 %v178
    %v2823 = vpop.f32.mrf.mxu0
    %v2824 = vadd.f32 0.0, %v2823
    %v2825 = vpop.f32.mrf.mxu0
    %v2826 = vadd.f32 0.0, %v2825
    %2827 = vmatmul.bf16.gmra.mxu0 %v179
    %v2828 = vpop.f32.mrf.mxu0
    %v2829 = vadd.f32 0.0, %v2828
    %v2830 = vpop.f32.mrf.mxu0
    %v2831 = vadd.f32 0.0, %v2830
    %2832 = vmatmul.bf16.gmra.mxu0 %v180
    %v2833 = vpop.f32.mrf.mxu0
    %v2834 = vadd.f32 0.0, %v2833
    %v2835 = vpop.f32.mrf.mxu0
    %v2836 = vadd.f32 0.0, %v2835
    %2837 = vmatmul.bf16.gmra.mxu0 %v181
    %v2838 = vpop.f32.mrf.mxu0
    %v2839 = vadd.f32 0.0, %v2838
    %v2840 = vpop.f32.mrf.mxu0
    %2841 = vmatmul.bf16.gmra.mxu0 %v182
    %v2842 = vpop.f32.mrf.mxu0
    %v2843 = vpop.f32.mrf.mxu0
    %2844 = vdwg.mxu0
    %2845 = vmatpush.bf16.msra.mxu0 %v2065
    %2846 = vmatpush.bf16.msra.mxu0 %v2017
    %2847 = vmatpush.bf16.msra.mxu0 %v1969
    %2848 = vmatpush.bf16.msra.mxu0 %v1921
    %2849 = vmatpush.bf16.msra.mxu0 %v1873
    %2850 = vmatpush.bf16.msra.mxu0 %v1825
    %2851 = vmatpush.bf16.msra.mxu0 %v1777
    %2852 = vmatpush.bf16.msra.mxu0 %v1729
    %2853 = vmatmul.bf16.gmra.mxu0 %v177
    %v2854 = vpop.f32.mrf.mxu0
    %v2855 = vadd.f32 0.0, %v2854
    %v2856 = vpop.f32.mrf.mxu0
    %v2857 = vadd.f32 0.0, %v2856
    %2858 = vmatmul.bf16.gmra.mxu0 %v178
    %v2859 = vpop.f32.mrf.mxu0
    %v2860 = vadd.f32 0.0, %v2859
    %v2861 = vpop.f32.mrf.mxu0
    %v2862 = vadd.f32 0.0, %v2861
    %2863 = vmatmul.bf16.gmra.mxu0 %v179
    %v2864 = vpop.f32.mrf.mxu0
    %v2865 = vadd.f32 0.0, %v2864
    %v2866 = vpop.f32.mrf.mxu0
    %v2867 = vadd.f32 0.0, %v2866
    %2868 = vmatmul.bf16.gmra.mxu0 %v180
    %v2869 = vpop.f32.mrf.mxu0
    %v2870 = vadd.f32 0.0, %v2869
    %v2871 = vpop.f32.mrf.mxu0
    %v2872 = vadd.f32 0.0, %v2871
    %2873 = vmatmul.bf16.gmra.mxu0 %v181
    %v2874 = vpop.f32.mrf.mxu0
    %v2875 = vadd.f32 0.0, %v2874
    %v2876 = vpop.f32.mrf.mxu0
    %2877 = vmatmul.bf16.gmra.mxu0 %v182
    %v2878 = vpop.f32.mrf.mxu0
    %v2879 = vpop.f32.mrf.mxu0
    %2880 = vdwg.mxu0
    %2881 = vmatpush.bf16.msra.mxu0 %v2066
    %2882 = vmatpush.bf16.msra.mxu0 %v2018
    %2883 = vmatpush.bf16.msra.mxu0 %v1970
    %2884 = vmatpush.bf16.msra.mxu0 %v1922
    %2885 = vmatpush.bf16.msra.mxu0 %v1874
    %2886 = vmatpush.bf16.msra.mxu0 %v1826
    %2887 = vmatpush.bf16.msra.mxu0 %v1778
    %2888 = vmatpush.bf16.msra.mxu0 %v1730
    %2889 = vmatmul.bf16.gmra.mxu0 %v177
    %v2890 = vpop.f32.mrf.mxu0
    %v2891 = vadd.f32 0.0, %v2890
    %v2892 = vpop.f32.mrf.mxu0
    %v2893 = vadd.f32 0.0, %v2892
    %2894 = vmatmul.bf16.gmra.mxu0 %v178
    %v2895 = vpop.f32.mrf.mxu0
    %v2896 = vadd.f32 0.0, %v2895
    %v2897 = vpop.f32.mrf.mxu0
    %v2898 = vadd.f32 0.0, %v2897
    %2899 = vmatmul.bf16.gmra.mxu0 %v179
    %v2900 = vpop.f32.mrf.mxu0
    %v2901 = vadd.f32 0.0, %v2900
    %v2902 = vpop.f32.mrf.mxu0
    %v2903 = vadd.f32 0.0, %v2902
    %2904 = vmatmul.bf16.gmra.mxu0 %v180
    %v2905 = vpop.f32.mrf.mxu0
    %v2906 = vadd.f32 0.0, %v2905
    %v2907 = vpop.f32.mrf.mxu0
    %v2908 = vadd.f32 0.0, %v2907
    %2909 = vmatmul.bf16.gmra.mxu0 %v181
    %v2910 = vpop.f32.mrf.mxu0
    %v2911 = vadd.f32 0.0, %v2910
    %v2912 = vpop.f32.mrf.mxu0
    %2913 = vmatmul.bf16.gmra.mxu0 %v182
    %v2914 = vpop.f32.mrf.mxu0
    %v2915 = vpop.f32.mrf.mxu0
    %2916 = vdwg.mxu0
    %2917 = vmatpush.bf16.msra.mxu0 %v2067
    %2918 = vmatpush.bf16.msra.mxu0 %v2019
    %2919 = vmatpush.bf16.msra.mxu0 %v1971
    %2920 = vmatpush.bf16.msra.mxu0 %v1923
    %2921 = vmatpush.bf16.msra.mxu0 %v1875
    %2922 = vmatpush.bf16.msra.mxu0 %v1827
    %2923 = vmatpush.bf16.msra.mxu0 %v1779
    %2924 = vmatpush.bf16.msra.mxu0 %v1731
    %2925 = vmatmul.bf16.gmra.mxu0 %v177
    %v2926 = vpop.f32.mrf.mxu0
    %v2927 = vadd.f32 0.0, %v2926
    %v2928 = vpop.f32.mrf.mxu0
    %v2929 = vadd.f32 0.0, %v2928
    %2930 = vmatmul.bf16.gmra.mxu0 %v178
    %v2931 = vpop.f32.mrf.mxu0
    %v2932 = vadd.f32 0.0, %v2931
    %v2933 = vpop.f32.mrf.mxu0
    %v2934 = vadd.f32 0.0, %v2933
    %2935 = vmatmul.bf16.gmra.mxu0 %v179
    %v2936 = vpop.f32.mrf.mxu0
    %v2937 = vadd.f32 0.0, %v2936
    %v2938 = vpop.f32.mrf.mxu0
    %v2939 = vadd.f32 0.0, %v2938
    %2940 = vmatmul.bf16.gmra.mxu0 %v180
    %v2941 = vpop.f32.mrf.mxu0
    %v2942 = vadd.f32 0.0, %v2941
    %v2943 = vpop.f32.mrf.mxu0
    %v2944 = vadd.f32 0.0, %v2943
    %2945 = vmatmul.bf16.gmra.mxu0 %v181
    %v2946 = vpop.f32.mrf.mxu0
    %v2947 = vadd.f32 0.0, %v2946
    %v2948 = vpop.f32.mrf.mxu0
    %2949 = vmatmul.bf16.gmra.mxu0 %v182
    %v2950 = vpop.f32.mrf.mxu0
    %v2951 = vpop.f32.mrf.mxu0
    %2952 = vdwg.mxu0
    %2953 = vmatpush.bf16.msra.mxu0 %v2068
    %2954 = vmatpush.bf16.msra.mxu0 %v2020
    %2955 = vmatpush.bf16.msra.mxu0 %v1972
    %2956 = vmatpush.bf16.msra.mxu0 %v1924
    %2957 = vmatpush.bf16.msra.mxu0 %v1876
    %2958 = vmatpush.bf16.msra.mxu0 %v1828
    %2959 = vmatpush.bf16.msra.mxu0 %v1780
    %2960 = vmatpush.bf16.msra.mxu0 %v1732
    %2961 = vmatmul.bf16.gmra.mxu0 %v177
    %v2962 = vpop.f32.mrf.mxu0
    %v2963 = vadd.f32 0.0, %v2962
    %v2964 = vpop.f32.mrf.mxu0
    %v2965 = vadd.f32 0.0, %v2964
    %2966 = vmatmul.bf16.gmra.mxu0 %v178
    %v2967 = vpop.f32.mrf.mxu0
    %v2968 = vadd.f32 0.0, %v2967
    %v2969 = vpop.f32.mrf.mxu0
    %v2970 = vadd.f32 0.0, %v2969
    %2971 = vmatmul.bf16.gmra.mxu0 %v179
    %v2972 = vpop.f32.mrf.mxu0
    %v2973 = vadd.f32 0.0, %v2972
    %v2974 = vpop.f32.mrf.mxu0
    %v2975 = vadd.f32 0.0, %v2974
    %2976 = vmatmul.bf16.gmra.mxu0 %v180
    %v2977 = vpop.f32.mrf.mxu0
    %v2978 = vadd.f32 0.0, %v2977
    %v2979 = vpop.f32.mrf.mxu0
    %v2980 = vadd.f32 0.0, %v2979
    %2981 = vmatmul.bf16.gmra.mxu0 %v181
    %v2982 = vpop.f32.mrf.mxu0
    %v2983 = vadd.f32 0.0, %v2982
    %v2984 = vpop.f32.mrf.mxu0
    %2985 = vmatmul.bf16.gmra.mxu0 %v182
    %v2986 = vpop.f32.mrf.mxu0
    %v2987 = vpop.f32.mrf.mxu0
    %2988 = vdwg.mxu0
    %2989 = vmatpush.bf16.msra.mxu0 %v2069
    %2990 = vmatpush.bf16.msra.mxu0 %v2021
    %2991 = vmatpush.bf16.msra.mxu0 %v1973
    %2992 = vmatpush.bf16.msra.mxu0 %v1925
    %2993 = vmatpush.bf16.msra.mxu0 %v1877
    %2994 = vmatpush.bf16.msra.mxu0 %v1829
    %2995 = vmatpush.bf16.msra.mxu0 %v1781
    %2996 = vmatpush.bf16.msra.mxu0 %v1733
    %2997 = vmatmul.bf16.gmra.mxu0 %v177
    %v2998 = vpop.f32.mrf.mxu0
    %v2999 = vadd.f32 0.0, %v2998
    %v3000 = vpop.f32.mrf.mxu0
    %v3001 = vadd.f32 0.0, %v3000
    %3002 = vmatmul.bf16.gmra.mxu0 %v178
    %v3003 = vpop.f32.mrf.mxu0
    %v3004 = vadd.f32 0.0, %v3003
    %v3005 = vpop.f32.mrf.mxu0
    %v3006 = vadd.f32 0.0, %v3005
    %3007 = vmatmul.bf16.gmra.mxu0 %v179
    %v3008 = vpop.f32.mrf.mxu0
    %v3009 = vadd.f32 0.0, %v3008
    %v3010 = vpop.f32.mrf.mxu0
    %v3011 = vadd.f32 0.0, %v3010
    %3012 = vmatmul.bf16.gmra.mxu0 %v180
    %v3013 = vpop.f32.mrf.mxu0
    %v3014 = vadd.f32 0.0, %v3013
    %v3015 = vpop.f32.mrf.mxu0
    %v3016 = vadd.f32 0.0, %v3015
    %3017 = vmatmul.bf16.gmra.mxu0 %v181
    %v3018 = vpop.f32.mrf.mxu0
    %v3019 = vadd.f32 0.0, %v3018
    %v3020 = vpop.f32.mrf.mxu0
    %3021 = vmatmul.bf16.gmra.mxu0 %v182
    %v3022 = vpop.f32.mrf.mxu0
    %v3023 = vpop.f32.mrf.mxu0
    %3024 = vdwg.mxu0
    %3025 = vmatpush.bf16.msra.mxu0 %v2070
    %3026 = vmatpush.bf16.msra.mxu0 %v2022
    %3027 = vmatpush.bf16.msra.mxu0 %v1974
    %3028 = vmatpush.bf16.msra.mxu0 %v1926
    %3029 = vmatpush.bf16.msra.mxu0 %v1878
    %3030 = vmatpush.bf16.msra.mxu0 %v1830
    %3031 = vmatpush.bf16.msra.mxu0 %v1782
    %3032 = vmatpush.bf16.msra.mxu0 %v1734
    %3033 = vmatmul.bf16.gmra.mxu0 %v177
    %v3034 = vpop.f32.mrf.mxu0
    %v3035 = vadd.f32 0.0, %v3034
    %v3036 = vpop.f32.mrf.mxu0
    %v3037 = vadd.f32 0.0, %v3036
    %3038 = vmatmul.bf16.gmra.mxu0 %v178
    %v3039 = vpop.f32.mrf.mxu0
    %v3040 = vadd.f32 0.0, %v3039
    %v3041 = vpop.f32.mrf.mxu0
    %v3042 = vadd.f32 0.0, %v3041
    %3043 = vmatmul.bf16.gmra.mxu0 %v179
    %v3044 = vpop.f32.mrf.mxu0
    %v3045 = vadd.f32 0.0, %v3044
    %v3046 = vpop.f32.mrf.mxu0
    %v3047 = vadd.f32 0.0, %v3046
    %3048 = vmatmul.bf16.gmra.mxu0 %v180
    %v3049 = vpop.f32.mrf.mxu0
    %v3050 = vadd.f32 0.0, %v3049
    %v3051 = vpop.f32.mrf.mxu0
    %v3052 = vadd.f32 0.0, %v3051
    %3053 = vmatmul.bf16.gmra.mxu0 %v181
    %v3054 = vpop.f32.mrf.mxu0
    %v3055 = vadd.f32 0.0, %v3054
    %v3056 = vpop.f32.mrf.mxu0
    %3057 = vmatmul.bf16.gmra.mxu0 %v182
    %v3058 = vpop.f32.mrf.mxu0
    %v3059 = vpop.f32.mrf.mxu0
    %3060 = vdwg.mxu0
    %3061 = vmatpush.bf16.msra.mxu0 %v2071
    %3062 = vmatpush.bf16.msra.mxu0 %v2023
    %3063 = vmatpush.bf16.msra.mxu0 %v1975
    %3064 = vmatpush.bf16.msra.mxu0 %v1927
    %3065 = vmatpush.bf16.msra.mxu0 %v1879
    %3066 = vmatpush.bf16.msra.mxu0 %v1831
    %3067 = vmatpush.bf16.msra.mxu0 %v1783
    %3068 = vmatpush.bf16.msra.mxu0 %v1735
    %3069 = vmatmul.bf16.gmra.mxu0 %v177
    %v3070 = vpop.f32.mrf.mxu0
    %v3071 = vpop.f32.mrf.mxu0
    %v3072 = vadd.f32 0.0, %v3071
    %3073 = vmatmul.bf16.gmra.mxu0 %v178
    %v3074 = vpop.f32.mrf.mxu0
    %v3075 = vadd.f32 0.0, %v3074
    %v3076 = vpop.f32.mrf.mxu0
    %v3077 = vadd.f32 0.0, %v3076
    %3078 = vmatmul.bf16.gmra.mxu0 %v179
    %v3079 = vpop.f32.mrf.mxu0
    %v3080 = vadd.f32 0.0, %v3079
    %v3081 = vpop.f32.mrf.mxu0
    %v3082 = vadd.f32 0.0, %v3081
    %3083 = vmatmul.bf16.gmra.mxu0 %v180
    %v3084 = vpop.f32.mrf.mxu0
    %v3085 = vadd.f32 0.0, %v3084
    %v3086 = vpop.f32.mrf.mxu0
    %v3087 = vadd.f32 0.0, %v3086
    %3088 = vmatmul.bf16.gmra.mxu0 %v181
    %v3089 = vpop.f32.mrf.mxu0
    %v3090 = vadd.f32 0.0, %v3089
    %v3091 = vpop.f32.mrf.mxu0
    %3092 = vmatmul.bf16.gmra.mxu0 %v182
    %v3093 = vpop.f32.mrf.mxu0
    %v3094 = vpop.f32.mrf.mxu0
    %3095 = vdwg.mxu0
    %3096 = vmatpush.bf16.msra.mxu0 %v2072
    %3097 = vmatpush.bf16.msra.mxu0 %v2024
    %3098 = vmatpush.bf16.msra.mxu0 %v1976
    %3099 = vmatpush.bf16.msra.mxu0 %v1928
    %3100 = vmatpush.bf16.msra.mxu0 %v1880
    %3101 = vmatpush.bf16.msra.mxu0 %v1832
    %3102 = vmatpush.bf16.msra.mxu0 %v1784
    %3103 = vmatpush.bf16.msra.mxu0 %v1736
    %3104 = vmatmul.bf16.gmra.mxu0 %v177
    %v3105 = vpop.f32.mrf.mxu0
    %v3106 = vpop.f32.mrf.mxu0
    %v3107 = vadd.f32 0.0, %v3106
    %3108 = vmatmul.bf16.gmra.mxu0 %v178
    %v3109 = vpop.f32.mrf.mxu0
    %v3110 = vadd.f32 0.0, %v3109
    %v3111 = vpop.f32.mrf.mxu0
    %v3112 = vadd.f32 0.0, %v3111
    %3113 = vmatmul.bf16.gmra.mxu0 %v179
    %v3114 = vpop.f32.mrf.mxu0
    %v3115 = vadd.f32 0.0, %v3114
    %v3116 = vpop.f32.mrf.mxu0
    %v3117 = vadd.f32 0.0, %v3116
    %3118 = vmatmul.bf16.gmra.mxu0 %v180
    %v3119 = vpop.f32.mrf.mxu0
    %v3120 = vadd.f32 0.0, %v3119
    %v3121 = vpop.f32.mrf.mxu0
    %v3122 = vadd.f32 0.0, %v3121
    %3123 = vmatmul.bf16.gmra.mxu0 %v181
    %v3124 = vpop.f32.mrf.mxu0
    %v3125 = vadd.f32 0.0, %v3124
    %v3126 = vpop.f32.mrf.mxu0
    %3127 = vmatmul.bf16.gmra.mxu0 %v182
    %v3128 = vpop.f32.mrf.mxu0
    %v3129 = vpop.f32.mrf.mxu0
    %3130 = vdwg.mxu0
    %3131 = vmatpush.bf16.msra.mxu0 %v2073
    %3132 = vmatpush.bf16.msra.mxu0 %v2025
    %3133 = vmatpush.bf16.msra.mxu0 %v1977
    %3134 = vmatpush.bf16.msra.mxu0 %v1929
    %3135 = vmatpush.bf16.msra.mxu0 %v1881
    %3136 = vmatpush.bf16.msra.mxu0 %v1833
    %3137 = vmatpush.bf16.msra.mxu0 %v1785
    %3138 = vmatpush.bf16.msra.mxu0 %v1737
    %3139 = vmatmul.bf16.gmra.mxu0 %v177
    %v3140 = vpop.f32.mrf.mxu0
    %v3141 = vpop.f32.mrf.mxu0
    %v3142 = vadd.f32 0.0, %v3141
    %3143 = vmatmul.bf16.gmra.mxu0 %v178
    %v3144 = vpop.f32.mrf.mxu0
    %v3145 = vadd.f32 0.0, %v3144
    %v3146 = vpop.f32.mrf.mxu0
    %v3147 = vadd.f32 0.0, %v3146
    %3148 = vmatmul.bf16.gmra.mxu0 %v179
    %v3149 = vpop.f32.mrf.mxu0
    %v3150 = vadd.f32 0.0, %v3149
    %v3151 = vpop.f32.mrf.mxu0
    %v3152 = vadd.f32 0.0, %v3151
    %3153 = vmatmul.bf16.gmra.mxu0 %v180
    %v3154 = vpop.f32.mrf.mxu0
    %v3155 = vadd.f32 0.0, %v3154
    %v3156 = vpop.f32.mrf.mxu0
    %v3157 = vadd.f32 0.0, %v3156
    %3158 = vmatmul.bf16.gmra.mxu0 %v181
    %v3159 = vpop.f32.mrf.mxu0
    %v3160 = vadd.f32 0.0, %v3159
    %v3161 = vpop.f32.mrf.mxu0
    %v3162 = vadd.f32 0.0, %v3161
    %3163 = vmatmul.bf16.gmra.mxu0 %v182
    %v3164 = vpop.f32.mrf.mxu0
    %v3165 = vpop.f32.mrf.mxu0
    %3166 = vdwg.mxu0
    %3167 = vmatpush.bf16.msra.mxu0 %v2074
    %3168 = vmatpush.bf16.msra.mxu0 %v2026
    %3169 = vmatpush.bf16.msra.mxu0 %v1978
    %3170 = vmatpush.bf16.msra.mxu0 %v1930
    %3171 = vmatpush.bf16.msra.mxu0 %v1882
    %3172 = vmatpush.bf16.msra.mxu0 %v1834
    %3173 = vmatpush.bf16.msra.mxu0 %v1786
    %3174 = vmatpush.bf16.msra.mxu0 %v1738
    %3175 = vmatmul.bf16.gmra.mxu0 %v177
    %v3176 = vpop.f32.mrf.mxu0
    %v3177 = vpop.f32.mrf.mxu0
    %v3178 = vadd.f32 0.0, %v3177
    %3179 = vmatmul.bf16.gmra.mxu0 %v178
    %v3180 = vpop.f32.mrf.mxu0
    %v3181 = vadd.f32 0.0, %v3180
    %v3182 = vpop.f32.mrf.mxu0
    %v3183 = vadd.f32 0.0, %v3182
    %3184 = vmatmul.bf16.gmra.mxu0 %v179
    %v3185 = vpop.f32.mrf.mxu0
    %v3186 = vadd.f32 0.0, %v3185
    %v3187 = vpop.f32.mrf.mxu0
    %v3188 = vadd.f32 0.0, %v3187
    %3189 = vmatmul.bf16.gmra.mxu0 %v180
    %v3190 = vpop.f32.mrf.mxu0
    %v3191 = vadd.f32 0.0, %v3190
    %v3192 = vpop.f32.mrf.mxu0
    %v3193 = vadd.f32 0.0, %v3192
    %3194 = vmatmul.bf16.gmra.mxu0 %v181
    %v3195 = vpop.f32.mrf.mxu0
    %v3196 = vadd.f32 0.0, %v3195
    %v3197 = vpop.f32.mrf.mxu0
    %v3198 = vadd.f32 0.0, %v3197
    %3199 = vmatmul.bf16.gmra.mxu0 %v182
    %v3200 = vpop.f32.mrf.mxu0
    %v3201 = vpop.f32.mrf.mxu0
    %3202 = vdwg.mxu0
    %3203 = vmatpush.bf16.msra.mxu0 %v2075
    %3204 = vmatpush.bf16.msra.mxu0 %v2027
    %3205 = vmatpush.bf16.msra.mxu0 %v1979
    %3206 = vmatpush.bf16.msra.mxu0 %v1931
    %3207 = vmatpush.bf16.msra.mxu0 %v1883
    %3208 = vmatpush.bf16.msra.mxu0 %v1835
    %3209 = vmatpush.bf16.msra.mxu0 %v1787
    %3210 = vmatpush.bf16.msra.mxu0 %v1739
    %3211 = vmatmul.bf16.gmra.mxu0 %v177
    %v3212 = vpop.f32.mrf.mxu0
    %v3213 = vpop.f32.mrf.mxu0
    %v3214 = vadd.f32 0.0, %v3213
    %3215 = vmatmul.bf16.gmra.mxu0 %v178
    %v3216 = vpop.f32.mrf.mxu0
    %v3217 = vadd.f32 0.0, %v3216
    %v3218 = vpop.f32.mrf.mxu0
    %v3219 = vadd.f32 0.0, %v3218
    %3220 = vmatmul.bf16.gmra.mxu0 %v179
    %v3221 = vpop.f32.mrf.mxu0
    %v3222 = vadd.f32 0.0, %v3221
    %v3223 = vpop.f32.mrf.mxu0
    %v3224 = vadd.f32 0.0, %v3223
    %3225 = vmatmul.bf16.gmra.mxu0 %v180
    %v3226 = vpop.f32.mrf.mxu0
    %v3227 = vadd.f32 0.0, %v3226
    %v3228 = vpop.f32.mrf.mxu0
    %v3229 = vadd.f32 0.0, %v3228
    %3230 = vmatmul.bf16.gmra.mxu0 %v181
    %v3231 = vpop.f32.mrf.mxu0
    %v3232 = vadd.f32 0.0, %v3231
    %v3233 = vpop.f32.mrf.mxu0
    %v3234 = vadd.f32 0.0, %v3233
    %3235 = vmatmul.bf16.gmra.mxu0 %v182
    %v3236 = vpop.f32.mrf.mxu0
    %v3237 = vpop.f32.mrf.mxu0
    %3238 = vdwg.mxu0
    %3239 = vmatpush.bf16.msra.mxu0 %v2076
    %3240 = vmatpush.bf16.msra.mxu0 %v2028
    %3241 = vmatpush.bf16.msra.mxu0 %v1980
    %3242 = vmatpush.bf16.msra.mxu0 %v1932
    %3243 = vmatpush.bf16.msra.mxu0 %v1884
    %3244 = vmatpush.bf16.msra.mxu0 %v1836
    %3245 = vmatpush.bf16.msra.mxu0 %v1788
    %3246 = vmatpush.bf16.msra.mxu0 %v1740
    %3247 = vmatmul.bf16.gmra.mxu0 %v177
    %v3248 = vpop.f32.mrf.mxu0
    %v3249 = vpop.f32.mrf.mxu0
    %v3250 = vadd.f32 0.0, %v3249
    %3251 = vmatmul.bf16.gmra.mxu0 %v178
    %v3252 = vpop.f32.mrf.mxu0
    %v3253 = vadd.f32 0.0, %v3252
    %v3254 = vpop.f32.mrf.mxu0
    %v3255 = vadd.f32 0.0, %v3254
    %3256 = vmatmul.bf16.gmra.mxu0 %v179
    %v3257 = vpop.f32.mrf.mxu0
    %v3258 = vadd.f32 0.0, %v3257
    %v3259 = vpop.f32.mrf.mxu0
    %v3260 = vadd.f32 0.0, %v3259
    %3261 = vmatmul.bf16.gmra.mxu0 %v180
    %v3262 = vpop.f32.mrf.mxu0
    %v3263 = vadd.f32 0.0, %v3262
    %v3264 = vpop.f32.mrf.mxu0
    %v3265 = vadd.f32 0.0, %v3264
    %3266 = vmatmul.bf16.gmra.mxu0 %v181
    %v3267 = vpop.f32.mrf.mxu0
    %v3268 = vadd.f32 0.0, %v3267
    %v3269 = vpop.f32.mrf.mxu0
    %v3270 = vadd.f32 0.0, %v3269
    %3271 = vmatmul.bf16.gmra.mxu0 %v182
    %v3272 = vpop.f32.mrf.mxu0
    %v3273 = vpop.f32.mrf.mxu0
    %3274 = vdwg.mxu0
    %3275 = vmatpush.bf16.msra.mxu0 %v2077
    %3276 = vmatpush.bf16.msra.mxu0 %v2029
    %3277 = vmatpush.bf16.msra.mxu0 %v1981
    %3278 = vmatpush.bf16.msra.mxu0 %v1933
    %3279 = vmatpush.bf16.msra.mxu0 %v1885
    %3280 = vmatpush.bf16.msra.mxu0 %v1837
    %3281 = vmatpush.bf16.msra.mxu0 %v1789
    %3282 = vmatpush.bf16.msra.mxu0 %v1741
    %3283 = vmatmul.bf16.gmra.mxu0 %v177
    %v3284 = vpop.f32.mrf.mxu0
    %v3285 = vpop.f32.mrf.mxu0
    %v3286 = vadd.f32 0.0, %v3285
    %3287 = vmatmul.bf16.gmra.mxu0 %v178
    %v3288 = vpop.f32.mrf.mxu0
    %v3289 = vadd.f32 0.0, %v3288
    %v3290 = vpop.f32.mrf.mxu0
    %v3291 = vadd.f32 0.0, %v3290
    %3292 = vmatmul.bf16.gmra.mxu0 %v179
    %v3293 = vpop.f32.mrf.mxu0
    %v3294 = vadd.f32 0.0, %v3293
    %v3295 = vpop.f32.mrf.mxu0
    %v3296 = vadd.f32 0.0, %v3295
    %3297 = vmatmul.bf16.gmra.mxu0 %v180
    %v3298 = vpop.f32.mrf.mxu0
    %v3299 = vadd.f32 0.0, %v3298
    %v3300 = vpop.f32.mrf.mxu0
    %v3301 = vadd.f32 0.0, %v3300
    %3302 = vmatmul.bf16.gmra.mxu0 %v181
    %v3303 = vpop.f32.mrf.mxu0
    %v3304 = vadd.f32 0.0, %v3303
    %v3305 = vpop.f32.mrf.mxu0
    %v3306 = vadd.f32 0.0, %v3305
    %3307 = vmatmul.bf16.gmra.mxu0 %v182
    %v3308 = vpop.f32.mrf.mxu0
    %v3309 = vpop.f32.mrf.mxu0
    %3310 = vdwg.mxu0
    %3311 = vmatpush.bf16.msra.mxu0 %v2078
    %3312 = vmatpush.bf16.msra.mxu0 %v2030
    %3313 = vmatpush.bf16.msra.mxu0 %v1982
    %3314 = vmatpush.bf16.msra.mxu0 %v1934
    %3315 = vmatpush.bf16.msra.mxu0 %v1886
    %3316 = vmatpush.bf16.msra.mxu0 %v1838
    %3317 = vmatpush.bf16.msra.mxu0 %v1790
    %3318 = vmatpush.bf16.msra.mxu0 %v1742
    %3319 = vmatmul.bf16.gmra.mxu0 %v177
    %v3320 = vpop.f32.mrf.mxu0
    %v3321 = vpop.f32.mrf.mxu0
    %v3322 = vadd.f32 0.0, %v3321
    %3323 = vmatmul.bf16.gmra.mxu0 %v178
    %v3324 = vpop.f32.mrf.mxu0
    %v3325 = vadd.f32 0.0, %v3324
    %v3326 = vpop.f32.mrf.mxu0
    %v3327 = vadd.f32 0.0, %v3326
    %3328 = vmatmul.bf16.gmra.mxu0 %v179
    %v3329 = vpop.f32.mrf.mxu0
    %v3330 = vadd.f32 0.0, %v3329
    %v3331 = vpop.f32.mrf.mxu0
    %v3332 = vadd.f32 0.0, %v3331
    %3333 = vmatmul.bf16.gmra.mxu0 %v180
    %v3334 = vpop.f32.mrf.mxu0
    %v3335 = vadd.f32 0.0, %v3334
    %v3336 = vpop.f32.mrf.mxu0
    %v3337 = vadd.f32 0.0, %v3336
    %3338 = vmatmul.bf16.gmra.mxu0 %v181
    %v3339 = vpop.f32.mrf.mxu0
    %v3340 = vadd.f32 0.0, %v3339
    %v3341 = vpop.f32.mrf.mxu0
    %v3342 = vadd.f32 0.0, %v3341
    %3343 = vmatmul.bf16.gmra.mxu0 %v182
    %v3344 = vpop.f32.mrf.mxu0
    %v3345 = vpop.f32.mrf.mxu0
    %3346 = vdwg.mxu0
    %3347 = vmatpush.bf16.msra.mxu0 %v2079
    %3348 = vmatpush.bf16.msra.mxu0 %v2031
    %3349 = vmatpush.bf16.msra.mxu0 %v1983
    %3350 = vmatpush.bf16.msra.mxu0 %v1935
    %3351 = vmatpush.bf16.msra.mxu0 %v1887
    %3352 = vmatpush.bf16.msra.mxu0 %v1839
    %3353 = vmatpush.bf16.msra.mxu0 %v1791
    %3354 = vmatpush.bf16.msra.mxu0 %v1743
    %3355 = vmatmul.bf16.gmra.mxu0 %v177
    %v3356 = vpop.f32.mrf.mxu0
    %v3357 = vpop.f32.mrf.mxu0
    %v3358 = vadd.f32 0.0, %v3357
    %3359 = vmatmul.bf16.gmra.mxu0 %v178
    %v3360 = vpop.f32.mrf.mxu0
    %v3361 = vadd.f32 0.0, %v3360
    %v3362 = vpop.f32.mrf.mxu0
    %v3363 = vadd.f32 0.0, %v3362
    %3364 = vmatmul.bf16.gmra.mxu0 %v179
    %v3365 = vpop.f32.mrf.mxu0
    %v3366 = vadd.f32 0.0, %v3365
    %v3367 = vpop.f32.mrf.mxu0
    %v3368 = vadd.f32 0.0, %v3367
    %3369 = vmatmul.bf16.gmra.mxu0 %v180
    %v3370 = vpop.f32.mrf.mxu0
    %v3371 = vadd.f32 0.0, %v3370
    %v3372 = vpop.f32.mrf.mxu0
    %v3373 = vadd.f32 0.0, %v3372
    %3374 = vmatmul.bf16.gmra.mxu0 %v181
    %v3375 = vpop.f32.mrf.mxu0
    %v3376 = vadd.f32 0.0, %v3375
    %v3377 = vpop.f32.mrf.mxu0
    %v3378 = vadd.f32 0.0, %v3377
    %3379 = vmatmul.bf16.gmra.mxu0 %v182
    %v3380 = vpop.f32.mrf.mxu0
    %v3381 = vpop.f32.mrf.mxu0
    %3382 = vdwg.mxu0
    %3383 = vmatpush.bf16.msra.mxu0 %v2080
    %3384 = vmatpush.bf16.msra.mxu0 %v2032
    %3385 = vmatpush.bf16.msra.mxu0 %v1984
    %3386 = vmatpush.bf16.msra.mxu0 %v1936
    %3387 = vmatpush.bf16.msra.mxu0 %v1888
    %3388 = vmatpush.bf16.msra.mxu0 %v1840
    %3389 = vmatpush.bf16.msra.mxu0 %v1792
    %3390 = vmatpush.bf16.msra.mxu0 %v1744
    %3391 = vmatmul.bf16.gmra.mxu0 %v177
    %v3392 = vpop.f32.mrf.mxu0
    %v3393 = vpop.f32.mrf.mxu0
    %v3394 = vadd.f32 0.0, %v3393
    %3395 = vmatmul.bf16.gmra.mxu0 %v178
    %v3396 = vpop.f32.mrf.mxu0
    %v3397 = vadd.f32 0.0, %v3396
    %v3398 = vpop.f32.mrf.mxu0
    %v3399 = vadd.f32 0.0, %v3398
    %3400 = vmatmul.bf16.gmra.mxu0 %v179
    %v3401 = vpop.f32.mrf.mxu0
    %v3402 = vadd.f32 0.0, %v3401
    %v3403 = vpop.f32.mrf.mxu0
    %v3404 = vadd.f32 0.0, %v3403
    %3405 = vmatmul.bf16.gmra.mxu0 %v180
    %v3406 = vpop.f32.mrf.mxu0
    %v3407 = vadd.f32 0.0, %v3406
    %v3408 = vpop.f32.mrf.mxu0
    %v3409 = vadd.f32 0.0, %v3408
    %3410 = vmatmul.bf16.gmra.mxu0 %v181
    %v3411 = vpop.f32.mrf.mxu0
    %v3412 = vadd.f32 0.0, %v3411
    %v3413 = vpop.f32.mrf.mxu0
    %v3414 = vadd.f32 0.0, %v3413
    %3415 = vmatmul.bf16.gmra.mxu0 %v182
    %v3416 = vpop.f32.mrf.mxu0
    %v3417 = vpop.f32.mrf.mxu0
    %3418 = vdwg.mxu0
    %3419 = vmatpush.bf16.msra.mxu0 %v2081
    %3420 = vmatpush.bf16.msra.mxu0 %v2033
    %3421 = vmatpush.bf16.msra.mxu0 %v1985
    %3422 = vmatpush.bf16.msra.mxu0 %v1937
    %3423 = vmatpush.bf16.msra.mxu0 %v1889
    %3424 = vmatpush.bf16.msra.mxu0 %v1841
    %3425 = vmatpush.bf16.msra.mxu0 %v1793
    %3426 = vmatpush.bf16.msra.mxu0 %v1745
    %3427 = vmatmul.bf16.gmra.mxu0 %v177
    %v3428 = vpop.f32.mrf.mxu0
    %v3429 = vpop.f32.mrf.mxu0
    %v3430 = vadd.f32 0.0, %v3429
    %3431 = vmatmul.bf16.gmra.mxu0 %v178
    %v3432 = vpop.f32.mrf.mxu0
    %v3433 = vadd.f32 0.0, %v3432
    %v3434 = vpop.f32.mrf.mxu0
    %v3435 = vadd.f32 0.0, %v3434
    %3436 = vmatmul.bf16.gmra.mxu0 %v179
    %v3437 = vpop.f32.mrf.mxu0
    %v3438 = vadd.f32 0.0, %v3437
    %v3439 = vpop.f32.mrf.mxu0
    %v3440 = vadd.f32 0.0, %v3439
    %3441 = vmatmul.bf16.gmra.mxu0 %v180
    %v3442 = vpop.f32.mrf.mxu0
    %v3443 = vadd.f32 0.0, %v3442
    %v3444 = vpop.f32.mrf.mxu0
    %v3445 = vadd.f32 0.0, %v3444
    %3446 = vmatmul.bf16.gmra.mxu0 %v181
    %v3447 = vpop.f32.mrf.mxu0
    %v3448 = vadd.f32 0.0, %v3447
    %v3449 = vpop.f32.mrf.mxu0
    %v3450 = vadd.f32 0.0, %v3449
    %3451 = vmatmul.bf16.gmra.mxu0 %v182
    %v3452 = vpop.f32.mrf.mxu0
    %v3453 = vpop.f32.mrf.mxu0
    %3454 = vdwg.mxu0
    %3455 = vmatpush.bf16.msra.mxu0 %v2082
    %3456 = vmatpush.bf16.msra.mxu0 %v2034
    %3457 = vmatpush.bf16.msra.mxu0 %v1986
    %3458 = vmatpush.bf16.msra.mxu0 %v1938
    %3459 = vmatpush.bf16.msra.mxu0 %v1890
    %3460 = vmatpush.bf16.msra.mxu0 %v1842
    %3461 = vmatpush.bf16.msra.mxu0 %v1794
    %3462 = vmatpush.bf16.msra.mxu0 %v1746
    %3463 = vmatmul.bf16.gmra.mxu0 %v177
    %v3464 = vpop.f32.mrf.mxu0
    %v3465 = vpop.f32.mrf.mxu0
    %v3466 = vadd.f32 0.0, %v3465
    %3467 = vmatmul.bf16.gmra.mxu0 %v178
    %v3468 = vpop.f32.mrf.mxu0
    %v3469 = vadd.f32 0.0, %v3468
    %v3470 = vpop.f32.mrf.mxu0
    %v3471 = vadd.f32 0.0, %v3470
    %3472 = vmatmul.bf16.gmra.mxu0 %v179
    %v3473 = vpop.f32.mrf.mxu0
    %v3474 = vadd.f32 0.0, %v3473
    %v3475 = vpop.f32.mrf.mxu0
    %v3476 = vadd.f32 0.0, %v3475
    %3477 = vmatmul.bf16.gmra.mxu0 %v180
    %v3478 = vpop.f32.mrf.mxu0
    %v3479 = vadd.f32 0.0, %v3478
    %v3480 = vpop.f32.mrf.mxu0
    %v3481 = vadd.f32 0.0, %v3480
    %3482 = vmatmul.bf16.gmra.mxu0 %v181
    %v3483 = vpop.f32.mrf.mxu0
    %v3484 = vadd.f32 0.0, %v3483
    %v3485 = vpop.f32.mrf.mxu0
    %v3486 = vadd.f32 0.0, %v3485
    %3487 = vmatmul.bf16.gmra.mxu0 %v182
    %v3488 = vpop.f32.mrf.mxu0
    %v3489 = vpop.f32.mrf.mxu0
    %3490 = vdwg.mxu0
    %3491 = vmatpush.bf16.msra.mxu0 %v2083
    %3492 = vmatpush.bf16.msra.mxu0 %v2035
    %3493 = vmatpush.bf16.msra.mxu0 %v1987
    %3494 = vmatpush.bf16.msra.mxu0 %v1939
    %3495 = vmatpush.bf16.msra.mxu0 %v1891
    %3496 = vmatpush.bf16.msra.mxu0 %v1843
    %3497 = vmatpush.bf16.msra.mxu0 %v1795
    %3498 = vmatpush.bf16.msra.mxu0 %v1747
    %3499 = vmatmul.bf16.gmra.mxu0 %v177
    %v3500 = vpop.f32.mrf.mxu0
    %v3501 = vpop.f32.mrf.mxu0
    %v3502 = vadd.f32 0.0, %v3501
    %3503 = vmatmul.bf16.gmra.mxu0 %v178
    %v3504 = vpop.f32.mrf.mxu0
    %v3505 = vadd.f32 0.0, %v3504
    %v3506 = vpop.f32.mrf.mxu0
    %v3507 = vadd.f32 0.0, %v3506
    %3508 = vmatmul.bf16.gmra.mxu0 %v179
    %v3509 = vpop.f32.mrf.mxu0
    %v3510 = vadd.f32 0.0, %v3509
    %v3511 = vpop.f32.mrf.mxu0
    %v3512 = vadd.f32 0.0, %v3511
    %3513 = vmatmul.bf16.gmra.mxu0 %v180
    %v3514 = vpop.f32.mrf.mxu0
    %v3515 = vadd.f32 0.0, %v3514
    %v3516 = vpop.f32.mrf.mxu0
    %v3517 = vadd.f32 0.0, %v3516
    %3518 = vmatmul.bf16.gmra.mxu0 %v181
    %v3519 = vpop.f32.mrf.mxu0
    %v3520 = vadd.f32 0.0, %v3519
    %v3521 = vpop.f32.mrf.mxu0
    %v3522 = vadd.f32 0.0, %v3521
    %3523 = vmatmul.bf16.gmra.mxu0 %v182
    %v3524 = vpop.f32.mrf.mxu0
    %v3525 = vpop.f32.mrf.mxu0
    %3526 = vdwg.mxu0
    %3527 = vmatpush.bf16.msra.mxu0 %v2084
    %3528 = vmatpush.bf16.msra.mxu0 %v2036
    %3529 = vmatpush.bf16.msra.mxu0 %v1988
    %3530 = vmatpush.bf16.msra.mxu0 %v1940
    %3531 = vmatpush.bf16.msra.mxu0 %v1892
    %3532 = vmatpush.bf16.msra.mxu0 %v1844
    %3533 = vmatpush.bf16.msra.mxu0 %v1796
    %3534 = vmatpush.bf16.msra.mxu0 %v1748
    %3535 = vmatmul.bf16.gmra.mxu0 %v177
    %v3536 = vpop.f32.mrf.mxu0
    %v3537 = vpop.f32.mrf.mxu0
    %v3538 = vadd.f32 0.0, %v3537
    %3539 = vmatmul.bf16.gmra.mxu0 %v178
    %v3540 = vpop.f32.mrf.mxu0
    %v3541 = vadd.f32 0.0, %v3540
    %v3542 = vpop.f32.mrf.mxu0
    %v3543 = vadd.f32 0.0, %v3542
    %3544 = vmatmul.bf16.gmra.mxu0 %v179
    %v3545 = vpop.f32.mrf.mxu0
    %v3546 = vadd.f32 0.0, %v3545
    %v3547 = vpop.f32.mrf.mxu0
    %v3548 = vadd.f32 0.0, %v3547
    %3549 = vmatmul.bf16.gmra.mxu0 %v180
    %v3550 = vpop.f32.mrf.mxu0
    %v3551 = vadd.f32 0.0, %v3550
    %v3552 = vpop.f32.mrf.mxu0
    %v3553 = vadd.f32 0.0, %v3552
    %3554 = vmatmul.bf16.gmra.mxu0 %v181
    %v3555 = vpop.f32.mrf.mxu0
    %v3556 = vadd.f32 0.0, %v3555
    %v3557 = vpop.f32.mrf.mxu0
    %v3558 = vadd.f32 0.0, %v3557
    %3559 = vmatmul.bf16.gmra.mxu0 %v182
    %v3560 = vpop.f32.mrf.mxu0
    %v3561 = vpop.f32.mrf.mxu0
    %3562 = vdwg.mxu0
    %3563 = vmatpush.bf16.msra.mxu0 %v2085
    %3564 = vmatpush.bf16.msra.mxu0 %v2037
    %3565 = vmatpush.bf16.msra.mxu0 %v1989
    %3566 = vmatpush.bf16.msra.mxu0 %v1941
    %3567 = vmatpush.bf16.msra.mxu0 %v1893
    %3568 = vmatpush.bf16.msra.mxu0 %v1845
    %3569 = vmatpush.bf16.msra.mxu0 %v1797
    %3570 = vmatpush.bf16.msra.mxu0 %v1749
    %3571 = vmatmul.bf16.gmra.mxu0 %v177
    %v3572 = vpop.f32.mrf.mxu0
    %v3573 = vpop.f32.mrf.mxu0
    %v3574 = vadd.f32 0.0, %v3573
    %3575 = vmatmul.bf16.gmra.mxu0 %v178
    %v3576 = vpop.f32.mrf.mxu0
    %v3577 = vadd.f32 0.0, %v3576
    %v3578 = vpop.f32.mrf.mxu0
    %v3579 = vadd.f32 0.0, %v3578
    %3580 = vmatmul.bf16.gmra.mxu0 %v179
    %v3581 = vpop.f32.mrf.mxu0
    %v3582 = vadd.f32 0.0, %v3581
    %v3583 = vpop.f32.mrf.mxu0
    %v3584 = vadd.f32 0.0, %v3583
    %3585 = vmatmul.bf16.gmra.mxu0 %v180
    %v3586 = vpop.f32.mrf.mxu0
    %v3587 = vadd.f32 0.0, %v3586
    %v3588 = vpop.f32.mrf.mxu0
    %v3589 = vadd.f32 0.0, %v3588
    %3590 = vmatmul.bf16.gmra.mxu0 %v181
    %v3591 = vpop.f32.mrf.mxu0
    %v3592 = vadd.f32 0.0, %v3591
    %v3593 = vpop.f32.mrf.mxu0
    %v3594 = vadd.f32 0.0, %v3593
    %3595 = vmatmul.bf16.gmra.mxu0 %v182
    %v3596 = vpop.f32.mrf.mxu0
    %v3597 = vpop.f32.mrf.mxu0
    %3598 = vdwg.mxu0
    %3599 = vmatpush.bf16.msra.mxu0 %v2086
    %3600 = vmatpush.bf16.msra.mxu0 %v2038
    %3601 = vmatpush.bf16.msra.mxu0 %v1990
    %3602 = vmatpush.bf16.msra.mxu0 %v1942
    %3603 = vmatpush.bf16.msra.mxu0 %v1894
    %3604 = vmatpush.bf16.msra.mxu0 %v1846
    %3605 = vmatpush.bf16.msra.mxu0 %v1798
    %3606 = vmatpush.bf16.msra.mxu0 %v1750
    %3607 = vmatmul.bf16.gmra.mxu0 %v177
    %v3608 = vpop.f32.mrf.mxu0
    %v3609 = vpop.f32.mrf.mxu0
    %v3610 = vadd.f32 0.0, %v3609
    %3611 = vmatmul.bf16.gmra.mxu0 %v178
    %v3612 = vpop.f32.mrf.mxu0
    %v3613 = vadd.f32 0.0, %v3612
    %v3614 = vpop.f32.mrf.mxu0
    %v3615 = vadd.f32 0.0, %v3614
    %3616 = vmatmul.bf16.gmra.mxu0 %v179
    %v3617 = vpop.f32.mrf.mxu0
    %v3618 = vadd.f32 0.0, %v3617
    %v3619 = vpop.f32.mrf.mxu0
    %v3620 = vadd.f32 0.0, %v3619
    %3621 = vmatmul.bf16.gmra.mxu0 %v180
    %v3622 = vpop.f32.mrf.mxu0
    %v3623 = vadd.f32 0.0, %v3622
    %v3624 = vpop.f32.mrf.mxu0
    %v3625 = vadd.f32 0.0, %v3624
    %3626 = vmatmul.bf16.gmra.mxu0 %v181
    %v3627 = vpop.f32.mrf.mxu0
    %v3628 = vadd.f32 0.0, %v3627
    %v3629 = vpop.f32.mrf.mxu0
    %v3630 = vadd.f32 0.0, %v3629
    %3631 = vmatmul.bf16.gmra.mxu0 %v182
    %v3632 = vpop.f32.mrf.mxu0
    %v3633 = vpop.f32.mrf.mxu0
    %3634 = vdwg.mxu0
    %3635 = vmatpush.bf16.msra.mxu0 %v2087
    %3636 = vmatpush.bf16.msra.mxu0 %v2039
    %3637 = vmatpush.bf16.msra.mxu0 %v1991
    %3638 = vmatpush.bf16.msra.mxu0 %v1943
    %3639 = vmatpush.bf16.msra.mxu0 %v1895
    %3640 = vmatpush.bf16.msra.mxu0 %v1847
    %3641 = vmatpush.bf16.msra.mxu0 %v1799
    %3642 = vmatpush.bf16.msra.mxu0 %v1751
    %3643 = vmatmul.bf16.gmra.mxu0 %v177
    %v3644 = vpop.f32.mrf.mxu0
    %v3645 = vpop.f32.mrf.mxu0
    %3646 = vmatmul.bf16.gmra.mxu0 %v178
    %v3647 = vpop.f32.mrf.mxu0
    %v3648 = vadd.f32 0.0, %v3647
    %v3649 = vpop.f32.mrf.mxu0
    %v3650 = vadd.f32 0.0, %v3649
    %3651 = vmatmul.bf16.gmra.mxu0 %v179
    %v3652 = vpop.f32.mrf.mxu0
    %v3653 = vadd.f32 0.0, %v3652
    %v3654 = vpop.f32.mrf.mxu0
    %v3655 = vadd.f32 0.0, %v3654
    %3656 = vmatmul.bf16.gmra.mxu0 %v180
    %v3657 = vpop.f32.mrf.mxu0
    %v3658 = vadd.f32 0.0, %v3657
    %v3659 = vpop.f32.mrf.mxu0
    %v3660 = vadd.f32 0.0, %v3659
    %3661 = vmatmul.bf16.gmra.mxu0 %v181
    %v3662 = vpop.f32.mrf.mxu0
    %v3663 = vadd.f32 0.0, %v3662
    %v3664 = vpop.f32.mrf.mxu0
    %v3665 = vadd.f32 0.0, %v3664
    %3666 = vmatmul.bf16.gmra.mxu0 %v182
    %v3667 = vpop.f32.mrf.mxu0
    %v3668 = vpop.f32.mrf.mxu0
    %3669 = vdwg.mxu0
    %3670 = vmatpush.bf16.msra.mxu0 %v2088
    %3671 = vmatpush.bf16.msra.mxu0 %v2040
    %3672 = vmatpush.bf16.msra.mxu0 %v1992
    %3673 = vmatpush.bf16.msra.mxu0 %v1944
    %3674 = vmatpush.bf16.msra.mxu0 %v1896
    %3675 = vmatpush.bf16.msra.mxu0 %v1848
    %3676 = vmatpush.bf16.msra.mxu0 %v1800
    %3677 = vmatpush.bf16.msra.mxu0 %v1752
    %3678 = vmatmul.bf16.gmra.mxu0 %v177
    %v3679 = vpop.f32.mrf.mxu0
    %v3680 = vpop.f32.mrf.mxu0
    %3681 = vmatmul.bf16.gmra.mxu0 %v178
    %v3682 = vpop.f32.mrf.mxu0
    %v3683 = vadd.f32 0.0, %v3682
    %v3684 = vpop.f32.mrf.mxu0
    %v3685 = vadd.f32 0.0, %v3684
    %3686 = vmatmul.bf16.gmra.mxu0 %v179
    %v3687 = vpop.f32.mrf.mxu0
    %v3688 = vadd.f32 0.0, %v3687
    %v3689 = vpop.f32.mrf.mxu0
    %v3690 = vadd.f32 0.0, %v3689
    %3691 = vmatmul.bf16.gmra.mxu0 %v180
    %v3692 = vpop.f32.mrf.mxu0
    %v3693 = vadd.f32 0.0, %v3692
    %v3694 = vpop.f32.mrf.mxu0
    %v3695 = vadd.f32 0.0, %v3694
    %3696 = vmatmul.bf16.gmra.mxu0 %v181
    %v3697 = vpop.f32.mrf.mxu0
    %v3698 = vadd.f32 0.0, %v3697
    %v3699 = vpop.f32.mrf.mxu0
    %v3700 = vadd.f32 0.0, %v3699
    %3701 = vmatmul.bf16.gmra.mxu0 %v182
    %v3702 = vpop.f32.mrf.mxu0
    %v3703 = vpop.f32.mrf.mxu0
    %3704 = vdwg.mxu0
    %3705 = vmatpush.bf16.msra.mxu0 %v2089
    %3706 = vmatpush.bf16.msra.mxu0 %v2041
    %3707 = vmatpush.bf16.msra.mxu0 %v1993
    %3708 = vmatpush.bf16.msra.mxu0 %v1945
    %3709 = vmatpush.bf16.msra.mxu0 %v1897
    %3710 = vmatpush.bf16.msra.mxu0 %v1849
    %3711 = vmatpush.bf16.msra.mxu0 %v1801
    %3712 = vmatpush.bf16.msra.mxu0 %v1753
    %3713 = vmatmul.bf16.gmra.mxu0 %v177
    %v3714 = vpop.f32.mrf.mxu0
    %v3715 = vpop.f32.mrf.mxu0
    %3716 = vmatmul.bf16.gmra.mxu0 %v178
    %v3717 = vpop.f32.mrf.mxu0
    %v3718 = vadd.f32 0.0, %v3717
    %v3719 = vpop.f32.mrf.mxu0
    %v3720 = vadd.f32 0.0, %v3719
    %3721 = vmatmul.bf16.gmra.mxu0 %v179
    %v3722 = vpop.f32.mrf.mxu0
    %v3723 = vadd.f32 0.0, %v3722
    %v3724 = vpop.f32.mrf.mxu0
    %v3725 = vadd.f32 0.0, %v3724
    %3726 = vmatmul.bf16.gmra.mxu0 %v180
    %v3727 = vpop.f32.mrf.mxu0
    %v3728 = vadd.f32 0.0, %v3727
    %v3729 = vpop.f32.mrf.mxu0
    %v3730 = vadd.f32 0.0, %v3729
    %3731 = vmatmul.bf16.gmra.mxu0 %v181
    %v3732 = vpop.f32.mrf.mxu0
    %v3733 = vadd.f32 0.0, %v3732
    %v3734 = vpop.f32.mrf.mxu0
    %v3735 = vadd.f32 0.0, %v3734
    %3736 = vmatmul.bf16.gmra.mxu0 %v182
    %v3737 = vpop.f32.mrf.mxu0
    %v3738 = vadd.f32 0.0, %v3737
    %v3739 = vpop.f32.mrf.mxu0
    %3740 = vdwg.mxu0
    %3741 = vmatpush.bf16.msra.mxu0 %v2090
    %3742 = vmatpush.bf16.msra.mxu0 %v2042
    %3743 = vmatpush.bf16.msra.mxu0 %v1994
    %3744 = vmatpush.bf16.msra.mxu0 %v1946
    %3745 = vmatpush.bf16.msra.mxu0 %v1898
    %3746 = vmatpush.bf16.msra.mxu0 %v1850
    %3747 = vmatpush.bf16.msra.mxu0 %v1802
    %3748 = vmatpush.bf16.msra.mxu0 %v1754
    %3749 = vmatmul.bf16.gmra.mxu0 %v177
    %v3750 = vpop.f32.mrf.mxu0
    %v3751 = vpop.f32.mrf.mxu0
    %3752 = vmatmul.bf16.gmra.mxu0 %v178
    %v3753 = vpop.f32.mrf.mxu0
    %v3754 = vadd.f32 0.0, %v3753
    %v3755 = vpop.f32.mrf.mxu0
    %v3756 = vadd.f32 0.0, %v3755
    %3757 = vmatmul.bf16.gmra.mxu0 %v179
    %v3758 = vpop.f32.mrf.mxu0
    %v3759 = vadd.f32 0.0, %v3758
    %v3760 = vpop.f32.mrf.mxu0
    %v3761 = vadd.f32 0.0, %v3760
    %3762 = vmatmul.bf16.gmra.mxu0 %v180
    %v3763 = vpop.f32.mrf.mxu0
    %v3764 = vadd.f32 0.0, %v3763
    %v3765 = vpop.f32.mrf.mxu0
    %v3766 = vadd.f32 0.0, %v3765
    %3767 = vmatmul.bf16.gmra.mxu0 %v181
    %v3768 = vpop.f32.mrf.mxu0
    %v3769 = vadd.f32 0.0, %v3768
    %v3770 = vpop.f32.mrf.mxu0
    %v3771 = vadd.f32 0.0, %v3770
    %3772 = vmatmul.bf16.gmra.mxu0 %v182
    %v3773 = vpop.f32.mrf.mxu0
    %v3774 = vadd.f32 0.0, %v3773
    %v3775 = vpop.f32.mrf.mxu0
    %3776 = vdwg.mxu0
    %3777 = vmatpush.bf16.msra.mxu0 %v2091
    %3778 = vmatpush.bf16.msra.mxu0 %v2043
    %3779 = vmatpush.bf16.msra.mxu0 %v1995
    %3780 = vmatpush.bf16.msra.mxu0 %v1947
    %3781 = vmatpush.bf16.msra.mxu0 %v1899
    %3782 = vmatpush.bf16.msra.mxu0 %v1851
    %3783 = vmatpush.bf16.msra.mxu0 %v1803
    %3784 = vmatpush.bf16.msra.mxu0 %v1755
    %3785 = vmatmul.bf16.gmra.mxu0 %v177
    %v3786 = vpop.f32.mrf.mxu0
    %v3787 = vpop.f32.mrf.mxu0
    %3788 = vmatmul.bf16.gmra.mxu0 %v178
    %v3789 = vpop.f32.mrf.mxu0
    %v3790 = vadd.f32 0.0, %v3789
    %v3791 = vpop.f32.mrf.mxu0
    %v3792 = vadd.f32 0.0, %v3791
    %3793 = vmatmul.bf16.gmra.mxu0 %v179
    %v3794 = vpop.f32.mrf.mxu0
    %v3795 = vadd.f32 0.0, %v3794
    %v3796 = vpop.f32.mrf.mxu0
    %v3797 = vadd.f32 0.0, %v3796
    %3798 = vmatmul.bf16.gmra.mxu0 %v180
    %v3799 = vpop.f32.mrf.mxu0
    %v3800 = vadd.f32 0.0, %v3799
    %v3801 = vpop.f32.mrf.mxu0
    %v3802 = vadd.f32 0.0, %v3801
    %3803 = vmatmul.bf16.gmra.mxu0 %v181
    %v3804 = vpop.f32.mrf.mxu0
    %v3805 = vadd.f32 0.0, %v3804
    %v3806 = vpop.f32.mrf.mxu0
    %v3807 = vadd.f32 0.0, %v3806
    %3808 = vmatmul.bf16.gmra.mxu0 %v182
    %v3809 = vpop.f32.mrf.mxu0
    %v3810 = vadd.f32 0.0, %v3809
    %v3811 = vpop.f32.mrf.mxu0
    %3812 = vdwg.mxu0
    %3813 = vmatpush.bf16.msra.mxu0 %v2092
    %3814 = vmatpush.bf16.msra.mxu0 %v2044
    %3815 = vmatpush.bf16.msra.mxu0 %v1996
    %3816 = vmatpush.bf16.msra.mxu0 %v1948
    %3817 = vmatpush.bf16.msra.mxu0 %v1900
    %3818 = vmatpush.bf16.msra.mxu0 %v1852
    %3819 = vmatpush.bf16.msra.mxu0 %v1804
    %3820 = vmatpush.bf16.msra.mxu0 %v1756
    %3821 = vmatmul.bf16.gmra.mxu0 %v177
    %v3822 = vpop.f32.mrf.mxu0
    %v3823 = vpop.f32.mrf.mxu0
    %3824 = vmatmul.bf16.gmra.mxu0 %v178
    %v3825 = vpop.f32.mrf.mxu0
    %v3826 = vadd.f32 0.0, %v3825
    %v3827 = vpop.f32.mrf.mxu0
    %v3828 = vadd.f32 0.0, %v3827
    %3829 = vmatmul.bf16.gmra.mxu0 %v179
    %v3830 = vpop.f32.mrf.mxu0
    %v3831 = vadd.f32 0.0, %v3830
    %v3832 = vpop.f32.mrf.mxu0
    %v3833 = vadd.f32 0.0, %v3832
    %3834 = vmatmul.bf16.gmra.mxu0 %v180
    %v3835 = vpop.f32.mrf.mxu0
    %v3836 = vadd.f32 0.0, %v3835
    %v3837 = vpop.f32.mrf.mxu0
    %v3838 = vadd.f32 0.0, %v3837
    %3839 = vmatmul.bf16.gmra.mxu0 %v181
    %v3840 = vpop.f32.mrf.mxu0
    %v3841 = vadd.f32 0.0, %v3840
    %v3842 = vpop.f32.mrf.mxu0
    %v3843 = vadd.f32 0.0, %v3842
    %3844 = vmatmul.bf16.gmra.mxu0 %v182
    %v3845 = vpop.f32.mrf.mxu0
    %v3846 = vadd.f32 0.0, %v3845
    %v3847 = vpop.f32.mrf.mxu0
    %3848 = vdwg.mxu0
    %3849 = vmatpush.bf16.msra.mxu0 %v2093
    %3850 = vmatpush.bf16.msra.mxu0 %v2045
    %3851 = vmatpush.bf16.msra.mxu0 %v1997
    %3852 = vmatpush.bf16.msra.mxu0 %v1949
    %3853 = vmatpush.bf16.msra.mxu0 %v1901
    %3854 = vmatpush.bf16.msra.mxu0 %v1853
    %3855 = vmatpush.bf16.msra.mxu0 %v1805
    %3856 = vmatpush.bf16.msra.mxu0 %v1757
    %3857 = vmatmul.bf16.gmra.mxu0 %v177
    %v3858 = vpop.f32.mrf.mxu0
    %v3859 = vpop.f32.mrf.mxu0
    %3860 = vmatmul.bf16.gmra.mxu0 %v178
    %v3861 = vpop.f32.mrf.mxu0
    %v3862 = vadd.f32 0.0, %v3861
    %v3863 = vpop.f32.mrf.mxu0
    %v3864 = vadd.f32 0.0, %v3863
    %3865 = vmatmul.bf16.gmra.mxu0 %v179
    %v3866 = vpop.f32.mrf.mxu0
    %v3867 = vadd.f32 0.0, %v3866
    %v3868 = vpop.f32.mrf.mxu0
    %v3869 = vadd.f32 0.0, %v3868
    %3870 = vmatmul.bf16.gmra.mxu0 %v180
    %v3871 = vpop.f32.mrf.mxu0
    %v3872 = vadd.f32 0.0, %v3871
    %v3873 = vpop.f32.mrf.mxu0
    %v3874 = vadd.f32 0.0, %v3873
    %3875 = vmatmul.bf16.gmra.mxu0 %v181
    %v3876 = vpop.f32.mrf.mxu0
    %v3877 = vadd.f32 0.0, %v3876
    %v3878 = vpop.f32.mrf.mxu0
    %v3879 = vadd.f32 0.0, %v3878
    %3880 = vmatmul.bf16.gmra.mxu0 %v182
    %v3881 = vpop.f32.mrf.mxu0
    %v3882 = vadd.f32 0.0, %v3881
    %v3883 = vpop.f32.mrf.mxu0
    %3884 = vdwg.mxu0
    %3885 = vmatpush.bf16.msra.mxu0 %v2094
    %3886 = vmatpush.bf16.msra.mxu0 %v2046
    %3887 = vmatpush.bf16.msra.mxu0 %v1998
    %3888 = vmatpush.bf16.msra.mxu0 %v1950
    %3889 = vmatpush.bf16.msra.mxu0 %v1902
    %3890 = vmatpush.bf16.msra.mxu0 %v1854
    %3891 = vmatpush.bf16.msra.mxu0 %v1806
    %3892 = vmatpush.bf16.msra.mxu0 %v1758
    %3893 = vmatmul.bf16.gmra.mxu0 %v177
    %v3894 = vpop.f32.mrf.mxu0
    %v3895 = vpop.f32.mrf.mxu0
    %3896 = vmatmul.bf16.gmra.mxu0 %v178
    %v3897 = vpop.f32.mrf.mxu0
    %v3898 = vadd.f32 0.0, %v3897
    %v3899 = vpop.f32.mrf.mxu0
    %v3900 = vadd.f32 0.0, %v3899
    %3901 = vmatmul.bf16.gmra.mxu0 %v179
    %v3902 = vpop.f32.mrf.mxu0
    %v3903 = vadd.f32 0.0, %v3902
    %v3904 = vpop.f32.mrf.mxu0
    %v3905 = vadd.f32 0.0, %v3904
    %3906 = vmatmul.bf16.gmra.mxu0 %v180
    %v3907 = vpop.f32.mrf.mxu0
    %v3908 = vadd.f32 0.0, %v3907
    %v3909 = vpop.f32.mrf.mxu0
    %v3910 = vadd.f32 0.0, %v3909
    %3911 = vmatmul.bf16.gmra.mxu0 %v181
    %v3912 = vpop.f32.mrf.mxu0
    %v3913 = vadd.f32 0.0, %v3912
    %v3914 = vpop.f32.mrf.mxu0
    %v3915 = vadd.f32 0.0, %v3914
    %3916 = vmatmul.bf16.gmra.mxu0 %v182
    %v3917 = vpop.f32.mrf.mxu0
    %v3918 = vadd.f32 0.0, %v3917
    %v3919 = vpop.f32.mrf.mxu0
    %3920 = vdwg.mxu0
    %3921 = vmatpush.bf16.msra.mxu0 %v2095
    %3922 = vmatpush.bf16.msra.mxu0 %v2047
    %3923 = vmatpush.bf16.msra.mxu0 %v1999
    %3924 = vmatpush.bf16.msra.mxu0 %v1951
    %3925 = vmatpush.bf16.msra.mxu0 %v1903
    %3926 = vmatpush.bf16.msra.mxu0 %v1855
    %3927 = vmatpush.bf16.msra.mxu0 %v1807
    %3928 = vmatpush.bf16.msra.mxu0 %v1759
    %3929 = vmatmul.bf16.gmra.mxu0 %v177
    %v3930 = vpop.f32.mrf.mxu0
    %v3931 = vpop.f32.mrf.mxu0
    %3932 = vmatmul.bf16.gmra.mxu0 %v178
    %v3933 = vpop.f32.mrf.mxu0
    %v3934 = vadd.f32 0.0, %v3933
    %v3935 = vpop.f32.mrf.mxu0
    %v3936 = vadd.f32 0.0, %v3935
    %3937 = vmatmul.bf16.gmra.mxu0 %v179
    %v3938 = vpop.f32.mrf.mxu0
    %v3939 = vadd.f32 0.0, %v3938
    %v3940 = vpop.f32.mrf.mxu0
    %v3941 = vadd.f32 0.0, %v3940
    %3942 = vmatmul.bf16.gmra.mxu0 %v180
    %v3943 = vpop.f32.mrf.mxu0
    %v3944 = vadd.f32 0.0, %v3943
    %v3945 = vpop.f32.mrf.mxu0
    %v3946 = vadd.f32 0.0, %v3945
    %3947 = vmatmul.bf16.gmra.mxu0 %v181
    %v3948 = vpop.f32.mrf.mxu0
    %v3949 = vadd.f32 0.0, %v3948
    %v3950 = vpop.f32.mrf.mxu0
    %v3951 = vadd.f32 0.0, %v3950
    %3952 = vmatmul.bf16.gmra.mxu0 %v182
    %v3953 = vpop.f32.mrf.mxu0
    %v3954 = vadd.f32 0.0, %v3953
    %v3955 = vpop.f32.mrf.mxu0
    %3956 = vdwg.mxu0
    %3957 = vmatpush.bf16.msra.mxu0 %v2096
    %3958 = vmatpush.bf16.msra.mxu0 %v2048
    %3959 = vmatpush.bf16.msra.mxu0 %v2000
    %3960 = vmatpush.bf16.msra.mxu0 %v1952
    %3961 = vmatpush.bf16.msra.mxu0 %v1904
    %3962 = vmatpush.bf16.msra.mxu0 %v1856
    %3963 = vmatpush.bf16.msra.mxu0 %v1808
    %3964 = vmatpush.bf16.msra.mxu0 %v1760
    %3965 = vmatmul.bf16.gmra.mxu0 %v177
    %v3966 = vpop.f32.mrf.mxu0
    %v3967 = vpop.f32.mrf.mxu0
    %3968 = vmatmul.bf16.gmra.mxu0 %v178
    %v3969 = vpop.f32.mrf.mxu0
    %v3970 = vadd.f32 0.0, %v3969
    %v3971 = vpop.f32.mrf.mxu0
    %v3972 = vadd.f32 0.0, %v3971
    %3973 = vmatmul.bf16.gmra.mxu0 %v179
    %v3974 = vpop.f32.mrf.mxu0
    %v3975 = vadd.f32 0.0, %v3974
    %v3976 = vpop.f32.mrf.mxu0
    %v3977 = vadd.f32 0.0, %v3976
    %3978 = vmatmul.bf16.gmra.mxu0 %v180
    %v3979 = vpop.f32.mrf.mxu0
    %v3980 = vadd.f32 0.0, %v3979
    %v3981 = vpop.f32.mrf.mxu0
    %v3982 = vadd.f32 0.0, %v3981
    %3983 = vmatmul.bf16.gmra.mxu0 %v181
    %v3984 = vpop.f32.mrf.mxu0
    %v3985 = vadd.f32 0.0, %v3984
    %v3986 = vpop.f32.mrf.mxu0
    %v3987 = vadd.f32 0.0, %v3986
    %3988 = vmatmul.bf16.gmra.mxu0 %v182
    %v3989 = vpop.f32.mrf.mxu0
    %v3990 = vadd.f32 0.0, %v3989
    %v3991 = vpop.f32.mrf.mxu0
    %3992 = vdwg.mxu0
    %3993 = vmatpush.bf16.msra.mxu0 %v2097
    %3994 = vmatpush.bf16.msra.mxu0 %v2049
    %3995 = vmatpush.bf16.msra.mxu0 %v2001
    %3996 = vmatpush.bf16.msra.mxu0 %v1953
    %3997 = vmatpush.bf16.msra.mxu0 %v1905
    %3998 = vmatpush.bf16.msra.mxu0 %v1857
    %3999 = vmatpush.bf16.msra.mxu0 %v1809
    %4000 = vmatpush.bf16.msra.mxu0 %v1761
    %4001 = vmatmul.bf16.gmra.mxu0 %v177
    %v4002 = vpop.f32.mrf.mxu0
    %v4003 = vpop.f32.mrf.mxu0
    %4004 = vmatmul.bf16.gmra.mxu0 %v178
    %v4005 = vpop.f32.mrf.mxu0
    %v4006 = vadd.f32 0.0, %v4005
    %v4007 = vpop.f32.mrf.mxu0
    %v4008 = vadd.f32 0.0, %v4007
    %4009 = vmatmul.bf16.gmra.mxu0 %v179
    %v4010 = vpop.f32.mrf.mxu0
    %v4011 = vadd.f32 0.0, %v4010
    %v4012 = vpop.f32.mrf.mxu0
    %v4013 = vadd.f32 0.0, %v4012
    %4014 = vmatmul.bf16.gmra.mxu0 %v180
    %v4015 = vpop.f32.mrf.mxu0
    %v4016 = vadd.f32 0.0, %v4015
    %v4017 = vpop.f32.mrf.mxu0
    %v4018 = vadd.f32 0.0, %v4017
    %4019 = vmatmul.bf16.gmra.mxu0 %v181
    %v4020 = vpop.f32.mrf.mxu0
    %v4021 = vadd.f32 0.0, %v4020
    %v4022 = vpop.f32.mrf.mxu0
    %v4023 = vadd.f32 0.0, %v4022
    %4024 = vmatmul.bf16.gmra.mxu0 %v182
    %v4025 = vpop.f32.mrf.mxu0
    %v4026 = vadd.f32 0.0, %v4025
    %v4027 = vpop.f32.mrf.mxu0
    %4028 = vdwg.mxu0
    %4029 = vmatpush.bf16.msra.mxu0 %v2098
    %4030 = vmatpush.bf16.msra.mxu0 %v2050
    %4031 = vmatpush.bf16.msra.mxu0 %v2002
    %4032 = vmatpush.bf16.msra.mxu0 %v1954
    %4033 = vmatpush.bf16.msra.mxu0 %v1906
    %4034 = vmatpush.bf16.msra.mxu0 %v1858
    %4035 = vmatpush.bf16.msra.mxu0 %v1810
    %4036 = vmatpush.bf16.msra.mxu0 %v1762
    %4037 = vmatmul.bf16.gmra.mxu0 %v177
    %v4038 = vpop.f32.mrf.mxu0
    %v4039 = vpop.f32.mrf.mxu0
    %4040 = vmatmul.bf16.gmra.mxu0 %v178
    %v4041 = vpop.f32.mrf.mxu0
    %v4042 = vadd.f32 0.0, %v4041
    %v4043 = vpop.f32.mrf.mxu0
    %v4044 = vadd.f32 0.0, %v4043
    %4045 = vmatmul.bf16.gmra.mxu0 %v179
    %v4046 = vpop.f32.mrf.mxu0
    %v4047 = vadd.f32 0.0, %v4046
    %v4048 = vpop.f32.mrf.mxu0
    %v4049 = vadd.f32 0.0, %v4048
    %4050 = vmatmul.bf16.gmra.mxu0 %v180
    %v4051 = vpop.f32.mrf.mxu0
    %v4052 = vadd.f32 0.0, %v4051
    %v4053 = vpop.f32.mrf.mxu0
    %v4054 = vadd.f32 0.0, %v4053
    %4055 = vmatmul.bf16.gmra.mxu0 %v181
    %v4056 = vpop.f32.mrf.mxu0
    %v4057 = vadd.f32 0.0, %v4056
    %v4058 = vpop.f32.mrf.mxu0
    %v4059 = vadd.f32 0.0, %v4058
    %4060 = vmatmul.bf16.gmra.mxu0 %v182
    %v4061 = vpop.f32.mrf.mxu0
    %v4062 = vadd.f32 0.0, %v4061
    %v4063 = vpop.f32.mrf.mxu0
    %4064 = vdwg.mxu0
    %4065 = vmatpush.bf16.msra.mxu0 %v2099
    %4066 = vmatpush.bf16.msra.mxu0 %v2051
    %4067 = vmatpush.bf16.msra.mxu0 %v2003
    %4068 = vmatpush.bf16.msra.mxu0 %v1955
    %4069 = vmatpush.bf16.msra.mxu0 %v1907
    %4070 = vmatpush.bf16.msra.mxu0 %v1859
    %4071 = vmatpush.bf16.msra.mxu0 %v1811
    %4072 = vmatpush.bf16.msra.mxu0 %v1763
    %4073 = vmatmul.bf16.gmra.mxu0 %v177
    %v4074 = vpop.f32.mrf.mxu0
    %v4075 = vpop.f32.mrf.mxu0
    %4076 = vmatmul.bf16.gmra.mxu0 %v178
    %v4077 = vpop.f32.mrf.mxu0
    %v4078 = vadd.f32 0.0, %v4077
    %v4079 = vpop.f32.mrf.mxu0
    %v4080 = vadd.f32 0.0, %v4079
    %4081 = vmatmul.bf16.gmra.mxu0 %v179
    %v4082 = vpop.f32.mrf.mxu0
    %v4083 = vadd.f32 0.0, %v4082
    %v4084 = vpop.f32.mrf.mxu0
    %v4085 = vadd.f32 0.0, %v4084
    %4086 = vmatmul.bf16.gmra.mxu0 %v180
    %v4087 = vpop.f32.mrf.mxu0
    %v4088 = vadd.f32 0.0, %v4087
    %v4089 = vpop.f32.mrf.mxu0
    %v4090 = vadd.f32 0.0, %v4089
    %4091 = vmatmul.bf16.gmra.mxu0 %v181
    %v4092 = vpop.f32.mrf.mxu0
    %v4093 = vadd.f32 0.0, %v4092
    %v4094 = vpop.f32.mrf.mxu0
    %v4095 = vadd.f32 0.0, %v4094
    %4096 = vmatmul.bf16.gmra.mxu0 %v182
    %v4097 = vpop.f32.mrf.mxu0
    %v4098 = vadd.f32 0.0, %v4097
    %v4099 = vpop.f32.mrf.mxu0
    %4100 = vdwg.mxu0
    %4101 = vmatpush.bf16.msra.mxu0 %v2100
    %4102 = vmatpush.bf16.msra.mxu0 %v2052
    %4103 = vmatpush.bf16.msra.mxu0 %v2004
    %4104 = vmatpush.bf16.msra.mxu0 %v1956
    %4105 = vmatpush.bf16.msra.mxu0 %v1908
    %4106 = vmatpush.bf16.msra.mxu0 %v1860
    %4107 = vmatpush.bf16.msra.mxu0 %v1812
    %4108 = vmatpush.bf16.msra.mxu0 %v1764
    %4109 = vmatmul.bf16.gmra.mxu0 %v177
    %v4110 = vpop.f32.mrf.mxu0
    %v4111 = vpop.f32.mrf.mxu0
    %4112 = vmatmul.bf16.gmra.mxu0 %v178
    %v4113 = vpop.f32.mrf.mxu0
    %v4114 = vadd.f32 0.0, %v4113
    %v4115 = vpop.f32.mrf.mxu0
    %v4116 = vadd.f32 0.0, %v4115
    %4117 = vmatmul.bf16.gmra.mxu0 %v179
    %v4118 = vpop.f32.mrf.mxu0
    %v4119 = vadd.f32 0.0, %v4118
    %v4120 = vpop.f32.mrf.mxu0
    %v4121 = vadd.f32 0.0, %v4120
    %4122 = vmatmul.bf16.gmra.mxu0 %v180
    %v4123 = vpop.f32.mrf.mxu0
    %v4124 = vadd.f32 0.0, %v4123
    %v4125 = vpop.f32.mrf.mxu0
    %v4126 = vadd.f32 0.0, %v4125
    %4127 = vmatmul.bf16.gmra.mxu0 %v181
    %v4128 = vpop.f32.mrf.mxu0
    %v4129 = vadd.f32 0.0, %v4128
    %v4130 = vpop.f32.mrf.mxu0
    %v4131 = vadd.f32 0.0, %v4130
    %4132 = vmatmul.bf16.gmra.mxu0 %v182
    %v4133 = vpop.f32.mrf.mxu0
    %v4134 = vadd.f32 0.0, %v4133
    %v4135 = vpop.f32.mrf.mxu0
    %4136 = vdwg.mxu0
    %4137 = vmatpush.bf16.msra.mxu0 %v2101
    %4138 = vmatpush.bf16.msra.mxu0 %v2053
    %4139 = vmatpush.bf16.msra.mxu0 %v2005
    %4140 = vmatpush.bf16.msra.mxu0 %v1957
    %4141 = vmatpush.bf16.msra.mxu0 %v1909
    %4142 = vmatpush.bf16.msra.mxu0 %v1861
    %4143 = vmatpush.bf16.msra.mxu0 %v1813
    %4144 = vmatpush.bf16.msra.mxu0 %v1765
    %4145 = vmatmul.bf16.gmra.mxu0 %v177
    %v4146 = vpop.f32.mrf.mxu0
    %v4147 = vpop.f32.mrf.mxu0
    %4148 = vmatmul.bf16.gmra.mxu0 %v178
    %v4149 = vpop.f32.mrf.mxu0
    %v4150 = vadd.f32 0.0, %v4149
    %v4151 = vpop.f32.mrf.mxu0
    %v4152 = vadd.f32 0.0, %v4151
    %4153 = vmatmul.bf16.gmra.mxu0 %v179
    %v4154 = vpop.f32.mrf.mxu0
    %v4155 = vadd.f32 0.0, %v4154
    %v4156 = vpop.f32.mrf.mxu0
    %v4157 = vadd.f32 0.0, %v4156
    %4158 = vmatmul.bf16.gmra.mxu0 %v180
    %v4159 = vpop.f32.mrf.mxu0
    %v4160 = vadd.f32 0.0, %v4159
    %v4161 = vpop.f32.mrf.mxu0
    %v4162 = vadd.f32 0.0, %v4161
    %4163 = vmatmul.bf16.gmra.mxu0 %v181
    %v4164 = vpop.f32.mrf.mxu0
    %v4165 = vadd.f32 0.0, %v4164
    %v4166 = vpop.f32.mrf.mxu0
    %v4167 = vadd.f32 0.0, %v4166
    %4168 = vmatmul.bf16.gmra.mxu0 %v182
    %v4169 = vpop.f32.mrf.mxu0
    %v4170 = vadd.f32 0.0, %v4169
    %v4171 = vpop.f32.mrf.mxu0
    %4172 = vdwg.mxu0
    %4173 = vmatpush.bf16.msra.mxu0 %v2102
    %4174 = vmatpush.bf16.msra.mxu0 %v2054
    %4175 = vmatpush.bf16.msra.mxu0 %v2006
    %4176 = vmatpush.bf16.msra.mxu0 %v1958
    %4177 = vmatpush.bf16.msra.mxu0 %v1910
    %4178 = vmatpush.bf16.msra.mxu0 %v1862
    %4179 = vmatpush.bf16.msra.mxu0 %v1814
    %4180 = vmatpush.bf16.msra.mxu0 %v1766
    %4181 = vmatmul.bf16.gmra.mxu0 %v177
    %v4182 = vpop.f32.mrf.mxu0
    %v4183 = vpop.f32.mrf.mxu0
    %4184 = vmatmul.bf16.gmra.mxu0 %v178
    %v4185 = vpop.f32.mrf.mxu0
    %v4186 = vadd.f32 0.0, %v4185
    %v4187 = vpop.f32.mrf.mxu0
    %v4188 = vadd.f32 0.0, %v4187
    %4189 = vmatmul.bf16.gmra.mxu0 %v179
    %v4190 = vpop.f32.mrf.mxu0
    %v4191 = vadd.f32 0.0, %v4190
    %v4192 = vpop.f32.mrf.mxu0
    %v4193 = vadd.f32 0.0, %v4192
    %4194 = vmatmul.bf16.gmra.mxu0 %v180
    %v4195 = vpop.f32.mrf.mxu0
    %v4196 = vadd.f32 0.0, %v4195
    %v4197 = vpop.f32.mrf.mxu0
    %v4198 = vadd.f32 0.0, %v4197
    %4199 = vmatmul.bf16.gmra.mxu0 %v181
    %v4200 = vpop.f32.mrf.mxu0
    %v4201 = vadd.f32 0.0, %v4200
    %v4202 = vpop.f32.mrf.mxu0
    %v4203 = vadd.f32 0.0, %v4202
    %4204 = vmatmul.bf16.gmra.mxu0 %v182
    %v4205 = vpop.f32.mrf.mxu0
    %v4206 = vadd.f32 0.0, %v4205
    %v4207 = vpop.f32.mrf.mxu0
    %4208 = vdwg.mxu0
    %vm4227 = vcmask 1046528
    %v4228 = vrot.slane %v2567, 1
    %v4229 = vrot.slane %v2569, 1
    %v4230 = vsel %vm4227, %v4228, %v4229
    %v4231 = vrot.slane %v2603, 1
    %v4232 = vrot.slane %v2605, 1
    %v4233 = vsel %vm4227, %v4231, %v4232
    %v4234 = vrot.slane %v2572, 1
    %v4235 = vsel %vm4227, %v4229, %v4234
    %v4236 = vrot.slane %v2608, 1
    %v4237 = vsel %vm4227, %v4232, %v4236
    %v4238 = vrot.slane %v2574, 1
    %v4239 = vsel %vm4227, %v4234, %v4238
    %v4240 = vrot.slane %v2610, 1
    %v4241 = vsel %vm4227, %v4236, %v4240
    %v4242 = vrot.slane %v2577, 1
    %v4243 = vsel %vm4227, %v4238, %v4242
    %v4244 = vrot.slane %v2613, 1
    %v4245 = vsel %vm4227, %v4240, %v4244
    %v4246 = vrot.slane %v2579, 1
    %v4247 = vsel %vm4227, %v4242, %v4246
    %v4248 = vrot.slane %v2615, 1
    %v4249 = vsel %vm4227, %v4244, %v4248
    %v4250 = vrot.slane %v2582, 1
    %v4251 = vsel %vm4227, %v4246, %v4250
    %v4252 = vrot.slane %v2618, 1
    %v4253 = vsel %vm4227, %v4248, %v4252
    %v4254 = vrot.slane %v2584, 1
    %v4255 = vsel %vm4227, %v4250, %v4254
    %v4256 = vrot.slane %v2620, 1
    %v4257 = vsel %vm4227, %v4252, %v4256
    %v4258 = vrot.slane %v2587, 1
    %v4259 = vsel %vm4227, %v4254, %v4258
    %v4260 = vrot.slane %v2623, 1
    %v4261 = vsel %vm4227, %v4256, %v4260
    %v4278 = vadd.f32 %v2497, %v4230
    %v4279 = vadd.f32 %v2532, %v4233
    %v4280 = vadd.f32 %v2499, %v4235
    %v4281 = vadd.f32 %v2534, %v4237
    %v4282 = vadd.f32 %v2502, %v4239
    %v4283 = vadd.f32 %v2537, %v4241
    %v4284 = vadd.f32 %v2504, %v4243
    %v4285 = vadd.f32 %v2539, %v4245
    %v4286 = vadd.f32 %v2507, %v4247
    %v4287 = vadd.f32 %v2542, %v4249
    %v4288 = vadd.f32 %v2509, %v4251
    %v4289 = vadd.f32 %v2544, %v4253
    %v4290 = vadd.f32 %v2512, %v4255
    %v4291 = vadd.f32 %v2547, %v4257
    %v4292 = vadd.f32 %v2514, %v4259
    %v4293 = vadd.f32 %v2549, %v4261
    %vm4312 = vcmask 1045504
    %v4313 = vrot.slane %v2639, 2
    %v4314 = vrot.slane %v2641, 2
    %v4315 = vsel %vm4312, %v4313, %v4314
    %v4316 = vrot.slane %v2675, 2
    %v4317 = vrot.slane %v2677, 2
    %v4318 = vsel %vm4312, %v4316, %v4317
    %v4319 = vrot.slane %v2644, 2
    %v4320 = vsel %vm4312, %v4314, %v4319
    %v4321 = vrot.slane %v2680, 2
    %v4322 = vsel %vm4312, %v4317, %v4321
    %v4323 = vrot.slane %v2646, 2
    %v4324 = vsel %vm4312, %v4319, %v4323
    %v4325 = vrot.slane %v2682, 2
    %v4326 = vsel %vm4312, %v4321, %v4325
    %v4327 = vrot.slane %v2649, 2
    %v4328 = vsel %vm4312, %v4323, %v4327
    %v4329 = vrot.slane %v2685, 2
    %v4330 = vsel %vm4312, %v4325, %v4329
    %v4331 = vrot.slane %v2651, 2
    %v4332 = vsel %vm4312, %v4327, %v4331
    %v4333 = vrot.slane %v2687, 2
    %v4334 = vsel %vm4312, %v4329, %v4333
    %v4335 = vrot.slane %v2654, 2
    %v4336 = vsel %vm4312, %v4331, %v4335
    %v4337 = vrot.slane %v2690, 2
    %v4338 = vsel %vm4312, %v4333, %v4337
    %v4339 = vrot.slane %v2656, 2
    %v4340 = vsel %vm4312, %v4335, %v4339
    %v4341 = vrot.slane %v2692, 2
    %v4342 = vsel %vm4312, %v4337, %v4341
    %v4343 = vrot.slane %v2659, 2
    %v4344 = vsel %vm4312, %v4339, %v4343
    %v4345 = vrot.slane %v2695, 2
    %v4346 = vsel %vm4312, %v4341, %v4345
    %v4363 = vadd.f32 %v4278, %v4315
    %v4364 = vadd.f32 %v4279, %v4318
    %v4365 = vadd.f32 %v4280, %v4320
    %v4366 = vadd.f32 %v4281, %v4322
    %v4367 = vadd.f32 %v4282, %v4324
    %v4368 = vadd.f32 %v4283, %v4326
    %v4369 = vadd.f32 %v4284, %v4328
    %v4370 = vadd.f32 %v4285, %v4330
    %v4371 = vadd.f32 %v4286, %v4332
    %v4372 = vadd.f32 %v4287, %v4334
    %v4373 = vadd.f32 %v4288, %v4336
    %v4374 = vadd.f32 %v4289, %v4338
    %v4375 = vadd.f32 %v4290, %v4340
    %v4376 = vadd.f32 %v4291, %v4342
    %v4377 = vadd.f32 %v4292, %v4344
    %v4378 = vadd.f32 %v4293, %v4346
    %vm4397 = vcmask 1044480
    %v4398 = vrot.slane %v2711, 3
    %v4399 = vrot.slane %v2713, 3
    %v4400 = vsel %vm4397, %v4398, %v4399
    %v4401 = vrot.slane %v2747, 3
    %v4402 = vrot.slane %v2749, 3
    %v4403 = vsel %vm4397, %v4401, %v4402
    %v4404 = vrot.slane %v2716, 3
    %v4405 = vsel %vm4397, %v4399, %v4404
    %v4406 = vrot.slane %v2752, 3
    %v4407 = vsel %vm4397, %v4402, %v4406
    %v4408 = vrot.slane %v2718, 3
    %v4409 = vsel %vm4397, %v4404, %v4408
    %v4410 = vrot.slane %v2754, 3
    %v4411 = vsel %vm4397, %v4406, %v4410
    %v4412 = vrot.slane %v2721, 3
    %v4413 = vsel %vm4397, %v4408, %v4412
    %v4414 = vrot.slane %v2757, 3
    %v4415 = vsel %vm4397, %v4410, %v4414
    %v4416 = vrot.slane %v2723, 3
    %v4417 = vsel %vm4397, %v4412, %v4416
    %v4418 = vrot.slane %v2759, 3
    %v4419 = vsel %vm4397, %v4414, %v4418
    %v4420 = vrot.slane %v2726, 3
    %v4421 = vsel %vm4397, %v4416, %v4420
    %v4422 = vrot.slane %v2762, 3
    %v4423 = vsel %vm4397, %v4418, %v4422
    %v4424 = vrot.slane %v2728, 3
    %v4425 = vsel %vm4397, %v4420, %v4424
    %v4426 = vrot.slane %v2764, 3
    %v4427 = vsel %vm4397, %v4422, %v4426
    %v4428 = vrot.slane %v2731, 3
    %v4429 = vsel %vm4397, %v4424, %v4428
    %v4430 = vrot.slane %v2767, 3
    %v4431 = vsel %vm4397, %v4426, %v4430
    %v4448 = vadd.f32 %v4363, %v4400
    %v4449 = vadd.f32 %v4364, %v4403
    %v4450 = vadd.f32 %v4365, %v4405
    %v4451 = vadd.f32 %v4366, %v4407
    %v4452 = vadd.f32 %v4367, %v4409
    %v4453 = vadd.f32 %v4368, %v4411
    %v4454 = vadd.f32 %v4369, %v4413
    %v4455 = vadd.f32 %v4370, %v4415
    %v4456 = vadd.f32 %v4371, %v4417
    %v4457 = vadd.f32 %v4372, %v4419
    %v4458 = vadd.f32 %v4373, %v4421
    %v4459 = vadd.f32 %v4374, %v4423
    %v4460 = vadd.f32 %v4375, %v4425
    %v4461 = vadd.f32 %v4376, %v4427
    %v4462 = vadd.f32 %v4377, %v4429
    %v4463 = vadd.f32 %v4378, %v4431
    %vm4482 = vcmask 1043456
    %v4483 = vrot.slane %v2783, 4
    %v4484 = vrot.slane %v2785, 4
    %v4485 = vsel %vm4482, %v4483, %v4484
    %v4486 = vrot.slane %v2819, 4
    %v4487 = vrot.slane %v2821, 4
    %v4488 = vsel %vm4482, %v4486, %v4487
    %v4489 = vrot.slane %v2788, 4
    %v4490 = vsel %vm4482, %v4484, %v4489
    %v4491 = vrot.slane %v2824, 4
    %v4492 = vsel %vm4482, %v4487, %v4491
    %v4493 = vrot.slane %v2790, 4
    %v4494 = vsel %vm4482, %v4489, %v4493
    %v4495 = vrot.slane %v2826, 4
    %v4496 = vsel %vm4482, %v4491, %v4495
    %v4497 = vrot.slane %v2793, 4
    %v4498 = vsel %vm4482, %v4493, %v4497
    %v4499 = vrot.slane %v2829, 4
    %v4500 = vsel %vm4482, %v4495, %v4499
    %v4501 = vrot.slane %v2795, 4
    %v4502 = vsel %vm4482, %v4497, %v4501
    %v4503 = vrot.slane %v2831, 4
    %v4504 = vsel %vm4482, %v4499, %v4503
    %v4505 = vrot.slane %v2798, 4
    %v4506 = vsel %vm4482, %v4501, %v4505
    %v4507 = vrot.slane %v2834, 4
    %v4508 = vsel %vm4482, %v4503, %v4507
    %v4509 = vrot.slane %v2800, 4
    %v4510 = vsel %vm4482, %v4505, %v4509
    %v4511 = vrot.slane %v2836, 4
    %v4512 = vsel %vm4482, %v4507, %v4511
    %v4513 = vrot.slane %v2803, 4
    %v4514 = vsel %vm4482, %v4509, %v4513
    %v4515 = vrot.slane %v2839, 4
    %v4516 = vsel %vm4482, %v4511, %v4515
    %v4533 = vadd.f32 %v4448, %v4485
    %v4534 = vadd.f32 %v4449, %v4488
    %v4535 = vadd.f32 %v4450, %v4490
    %v4536 = vadd.f32 %v4451, %v4492
    %v4537 = vadd.f32 %v4452, %v4494
    %v4538 = vadd.f32 %v4453, %v4496
    %v4539 = vadd.f32 %v4454, %v4498
    %v4540 = vadd.f32 %v4455, %v4500
    %v4541 = vadd.f32 %v4456, %v4502
    %v4542 = vadd.f32 %v4457, %v4504
    %v4543 = vadd.f32 %v4458, %v4506
    %v4544 = vadd.f32 %v4459, %v4508
    %v4545 = vadd.f32 %v4460, %v4510
    %v4546 = vadd.f32 %v4461, %v4512
    %v4547 = vadd.f32 %v4462, %v4514
    %v4548 = vadd.f32 %v4463, %v4516
    %vm4567 = vcmask 1042432
    %v4568 = vrot.slane %v2855, 5
    %v4569 = vrot.slane %v2857, 5
    %v4570 = vsel %vm4567, %v4568, %v4569
    %v4571 = vrot.slane %v2891, 5
    %v4572 = vrot.slane %v2893, 5
    %v4573 = vsel %vm4567, %v4571, %v4572
    %v4574 = vrot.slane %v2860, 5
    %v4575 = vsel %vm4567, %v4569, %v4574
    %v4576 = vrot.slane %v2896, 5
    %v4577 = vsel %vm4567, %v4572, %v4576
    %v4578 = vrot.slane %v2862, 5
    %v4579 = vsel %vm4567, %v4574, %v4578
    %v4580 = vrot.slane %v2898, 5
    %v4581 = vsel %vm4567, %v4576, %v4580
    %v4582 = vrot.slane %v2865, 5
    %v4583 = vsel %vm4567, %v4578, %v4582
    %v4584 = vrot.slane %v2901, 5
    %v4585 = vsel %vm4567, %v4580, %v4584
    %v4586 = vrot.slane %v2867, 5
    %v4587 = vsel %vm4567, %v4582, %v4586
    %v4588 = vrot.slane %v2903, 5
    %v4589 = vsel %vm4567, %v4584, %v4588
    %v4590 = vrot.slane %v2870, 5
    %v4591 = vsel %vm4567, %v4586, %v4590
    %v4592 = vrot.slane %v2906, 5
    %v4593 = vsel %vm4567, %v4588, %v4592
    %v4594 = vrot.slane %v2872, 5
    %v4595 = vsel %vm4567, %v4590, %v4594
    %v4596 = vrot.slane %v2908, 5
    %v4597 = vsel %vm4567, %v4592, %v4596
    %v4598 = vrot.slane %v2875, 5
    %v4599 = vsel %vm4567, %v4594, %v4598
    %v4600 = vrot.slane %v2911, 5
    %v4601 = vsel %vm4567, %v4596, %v4600
    %v4618 = vadd.f32 %v4533, %v4570
    %v4619 = vadd.f32 %v4534, %v4573
    %v4620 = vadd.f32 %v4535, %v4575
    %v4621 = vadd.f32 %v4536, %v4577
    %v4622 = vadd.f32 %v4537, %v4579
    %v4623 = vadd.f32 %v4538, %v4581
    %v4624 = vadd.f32 %v4539, %v4583
    %v4625 = vadd.f32 %v4540, %v4585
    %v4626 = vadd.f32 %v4541, %v4587
    %v4627 = vadd.f32 %v4542, %v4589
    %v4628 = vadd.f32 %v4543, %v4591
    %v4629 = vadd.f32 %v4544, %v4593
    %v4630 = vadd.f32 %v4545, %v4595
    %v4631 = vadd.f32 %v4546, %v4597
    %v4632 = vadd.f32 %v4547, %v4599
    %v4633 = vadd.f32 %v4548, %v4601
    %vm4652 = vcmask 1041408
    %v4653 = vrot.slane %v2927, 6
    %v4654 = vrot.slane %v2929, 6
    %v4655 = vsel %vm4652, %v4653, %v4654
    %v4656 = vrot.slane %v2963, 6
    %v4657 = vrot.slane %v2965, 6
    %v4658 = vsel %vm4652, %v4656, %v4657
    %v4659 = vrot.slane %v2932, 6
    %v4660 = vsel %vm4652, %v4654, %v4659
    %v4661 = vrot.slane %v2968, 6
    %v4662 = vsel %vm4652, %v4657, %v4661
    %v4663 = vrot.slane %v2934, 6
    %v4664 = vsel %vm4652, %v4659, %v4663
    %v4665 = vrot.slane %v2970, 6
    %v4666 = vsel %vm4652, %v4661, %v4665
    %v4667 = vrot.slane %v2937, 6
    %v4668 = vsel %vm4652, %v4663, %v4667
    %v4669 = vrot.slane %v2973, 6
    %v4670 = vsel %vm4652, %v4665, %v4669
    %v4671 = vrot.slane %v2939, 6
    %v4672 = vsel %vm4652, %v4667, %v4671
    %v4673 = vrot.slane %v2975, 6
    %v4674 = vsel %vm4652, %v4669, %v4673
    %v4675 = vrot.slane %v2942, 6
    %v4676 = vsel %vm4652, %v4671, %v4675
    %v4677 = vrot.slane %v2978, 6
    %v4678 = vsel %vm4652, %v4673, %v4677
    %v4679 = vrot.slane %v2944, 6
    %v4680 = vsel %vm4652, %v4675, %v4679
    %v4681 = vrot.slane %v2980, 6
    %v4682 = vsel %vm4652, %v4677, %v4681
    %v4683 = vrot.slane %v2947, 6
    %v4684 = vsel %vm4652, %v4679, %v4683
    %v4685 = vrot.slane %v2983, 6
    %v4686 = vsel %vm4652, %v4681, %v4685
    %v4703 = vadd.f32 %v4618, %v4655
    %v4704 = vadd.f32 %v4619, %v4658
    %v4705 = vadd.f32 %v4620, %v4660
    %v4706 = vadd.f32 %v4621, %v4662
    %v4707 = vadd.f32 %v4622, %v4664
    %v4708 = vadd.f32 %v4623, %v4666
    %v4709 = vadd.f32 %v4624, %v4668
    %v4710 = vadd.f32 %v4625, %v4670
    %v4711 = vadd.f32 %v4626, %v4672
    %v4712 = vadd.f32 %v4627, %v4674
    %v4713 = vadd.f32 %v4628, %v4676
    %v4714 = vadd.f32 %v4629, %v4678
    %v4715 = vadd.f32 %v4630, %v4680
    %v4716 = vadd.f32 %v4631, %v4682
    %v4717 = vadd.f32 %v4632, %v4684
    %v4718 = vadd.f32 %v4633, %v4686
    %vm4737 = vcmask 1040384
    %v4738 = vrot.slane %v2999, 7
    %v4739 = vrot.slane %v3001, 7
    %v4740 = vsel %vm4737, %v4738, %v4739
    %v4741 = vrot.slane %v3035, 7
    %v4742 = vrot.slane %v3037, 7
    %v4743 = vsel %vm4737, %v4741, %v4742
    %v4744 = vrot.slane %v3004, 7
    %v4745 = vsel %vm4737, %v4739, %v4744
    %v4746 = vrot.slane %v3040, 7
    %v4747 = vsel %vm4737, %v4742, %v4746
    %v4748 = vrot.slane %v3006, 7
    %v4749 = vsel %vm4737, %v4744, %v4748
    %v4750 = vrot.slane %v3042, 7
    %v4751 = vsel %vm4737, %v4746, %v4750
    %v4752 = vrot.slane %v3009, 7
    %v4753 = vsel %vm4737, %v4748, %v4752
    %v4754 = vrot.slane %v3045, 7
    %v4755 = vsel %vm4737, %v4750, %v4754
    %v4756 = vrot.slane %v3011, 7
    %v4757 = vsel %vm4737, %v4752, %v4756
    %v4758 = vrot.slane %v3047, 7
    %v4759 = vsel %vm4737, %v4754, %v4758
    %v4760 = vrot.slane %v3014, 7
    %v4761 = vsel %vm4737, %v4756, %v4760
    %v4762 = vrot.slane %v3050, 7
    %v4763 = vsel %vm4737, %v4758, %v4762
    %v4764 = vrot.slane %v3016, 7
    %v4765 = vsel %vm4737, %v4760, %v4764
    %v4766 = vrot.slane %v3052, 7
    %v4767 = vsel %vm4737, %v4762, %v4766
    %v4768 = vrot.slane %v3019, 7
    %v4769 = vsel %vm4737, %v4764, %v4768
    %v4770 = vrot.slane %v3055, 7
    %v4771 = vsel %vm4737, %v4766, %v4770
    %v4788 = vadd.f32 %v4703, %v4740
    %v4789 = vadd.f32 %v4704, %v4743
    %v4790 = vadd.f32 %v4705, %v4745
    %v4791 = vadd.f32 %v4706, %v4747
    %v4792 = vadd.f32 %v4707, %v4749
    %v4793 = vadd.f32 %v4708, %v4751
    %v4794 = vadd.f32 %v4709, %v4753
    %v4795 = vadd.f32 %v4710, %v4755
    %v4796 = vadd.f32 %v4711, %v4757
    %v4797 = vadd.f32 %v4712, %v4759
    %v4798 = vadd.f32 %v4713, %v4761
    %v4799 = vadd.f32 %v4714, %v4763
    %v4800 = vadd.f32 %v4715, %v4765
    %v4801 = vadd.f32 %v4716, %v4767
    %v4802 = vadd.f32 %v4717, %v4769
    %v4803 = vadd.f32 %v4718, %v4771
    %v4804 = vadd.f32 %v4788, %v3072
    %v4805 = vadd.f32 %v4789, %v3107
    %v4806 = vadd.f32 %v4790, %v3075
    %v4807 = vadd.f32 %v4791, %v3110
    %v4808 = vadd.f32 %v4792, %v3077
    %v4809 = vadd.f32 %v4793, %v3112
    %v4810 = vadd.f32 %v4794, %v3080
    %v4811 = vadd.f32 %v4795, %v3115
    %v4812 = vadd.f32 %v4796, %v3082
    %v4813 = vadd.f32 %v4797, %v3117
    %v4814 = vadd.f32 %v4798, %v3085
    %v4815 = vadd.f32 %v4799, %v3120
    %v4816 = vadd.f32 %v4800, %v3087
    %v4817 = vadd.f32 %v4801, %v3122
    %v4818 = vadd.f32 %v4802, %v3090
    %v4819 = vadd.f32 %v4803, %v3125
    %v4838 = vrot.slane %v3142, 1
    %v4839 = vrot.slane %v3145, 1
    %v4840 = vsel %vm4227, %v4838, %v4839
    %v4841 = vrot.slane %v3178, 1
    %v4842 = vrot.slane %v3181, 1
    %v4843 = vsel %vm4227, %v4841, %v4842
    %v4844 = vrot.slane %v3147, 1
    %v4845 = vsel %vm4227, %v4839, %v4844
    %v4846 = vrot.slane %v3183, 1
    %v4847 = vsel %vm4227, %v4842, %v4846
    %v4848 = vrot.slane %v3150, 1
    %v4849 = vsel %vm4227, %v4844, %v4848
    %v4850 = vrot.slane %v3186, 1
    %v4851 = vsel %vm4227, %v4846, %v4850
    %v4852 = vrot.slane %v3152, 1
    %v4853 = vsel %vm4227, %v4848, %v4852
    %v4854 = vrot.slane %v3188, 1
    %v4855 = vsel %vm4227, %v4850, %v4854
    %v4856 = vrot.slane %v3155, 1
    %v4857 = vsel %vm4227, %v4852, %v4856
    %v4858 = vrot.slane %v3191, 1
    %v4859 = vsel %vm4227, %v4854, %v4858
    %v4860 = vrot.slane %v3157, 1
    %v4861 = vsel %vm4227, %v4856, %v4860
    %v4862 = vrot.slane %v3193, 1
    %v4863 = vsel %vm4227, %v4858, %v4862
    %v4864 = vrot.slane %v3160, 1
    %v4865 = vsel %vm4227, %v4860, %v4864
    %v4866 = vrot.slane %v3196, 1
    %v4867 = vsel %vm4227, %v4862, %v4866
    %v4868 = vrot.slane %v3162, 1
    %v4869 = vsel %vm4227, %v4864, %v4868
    %v4870 = vrot.slane %v3198, 1
    %v4871 = vsel %vm4227, %v4866, %v4870
    %v4888 = vadd.f32 %v4804, %v4840
    %v4889 = vadd.f32 %v4805, %v4843
    %v4890 = vadd.f32 %v4806, %v4845
    %v4891 = vadd.f32 %v4807, %v4847
    %v4892 = vadd.f32 %v4808, %v4849
    %v4893 = vadd.f32 %v4809, %v4851
    %v4894 = vadd.f32 %v4810, %v4853
    %v4895 = vadd.f32 %v4811, %v4855
    %v4896 = vadd.f32 %v4812, %v4857
    %v4897 = vadd.f32 %v4813, %v4859
    %v4898 = vadd.f32 %v4814, %v4861
    %v4899 = vadd.f32 %v4815, %v4863
    %v4900 = vadd.f32 %v4816, %v4865
    %v4901 = vadd.f32 %v4817, %v4867
    %v4902 = vadd.f32 %v4818, %v4869
    %v4903 = vadd.f32 %v4819, %v4871
    %v4922 = vrot.slane %v3214, 2
    %v4923 = vrot.slane %v3217, 2
    %v4924 = vsel %vm4312, %v4922, %v4923
    %v4925 = vrot.slane %v3250, 2
    %v4926 = vrot.slane %v3253, 2
    %v4927 = vsel %vm4312, %v4925, %v4926
    %v4928 = vrot.slane %v3219, 2
    %v4929 = vsel %vm4312, %v4923, %v4928
    %v4930 = vrot.slane %v3255, 2
    %v4931 = vsel %vm4312, %v4926, %v4930
    %v4932 = vrot.slane %v3222, 2
    %v4933 = vsel %vm4312, %v4928, %v4932
    %v4934 = vrot.slane %v3258, 2
    %v4935 = vsel %vm4312, %v4930, %v4934
    %v4936 = vrot.slane %v3224, 2
    %v4937 = vsel %vm4312, %v4932, %v4936
    %v4938 = vrot.slane %v3260, 2
    %v4939 = vsel %vm4312, %v4934, %v4938
    %v4940 = vrot.slane %v3227, 2
    %v4941 = vsel %vm4312, %v4936, %v4940
    %v4942 = vrot.slane %v3263, 2
    %v4943 = vsel %vm4312, %v4938, %v4942
    %v4944 = vrot.slane %v3229, 2
    %v4945 = vsel %vm4312, %v4940, %v4944
    %v4946 = vrot.slane %v3265, 2
    %v4947 = vsel %vm4312, %v4942, %v4946
    %v4948 = vrot.slane %v3232, 2
    %v4949 = vsel %vm4312, %v4944, %v4948
    %v4950 = vrot.slane %v3268, 2
    %v4951 = vsel %vm4312, %v4946, %v4950
    %v4952 = vrot.slane %v3234, 2
    %v4953 = vsel %vm4312, %v4948, %v4952
    %v4954 = vrot.slane %v3270, 2
    %v4955 = vsel %vm4312, %v4950, %v4954
    %v4972 = vadd.f32 %v4888, %v4924
    %v4973 = vadd.f32 %v4889, %v4927
    %v4974 = vadd.f32 %v4890, %v4929
    %v4975 = vadd.f32 %v4891, %v4931
    %v4976 = vadd.f32 %v4892, %v4933
    %v4977 = vadd.f32 %v4893, %v4935
    %v4978 = vadd.f32 %v4894, %v4937
    %v4979 = vadd.f32 %v4895, %v4939
    %v4980 = vadd.f32 %v4896, %v4941
    %v4981 = vadd.f32 %v4897, %v4943
    %v4982 = vadd.f32 %v4898, %v4945
    %v4983 = vadd.f32 %v4899, %v4947
    %v4984 = vadd.f32 %v4900, %v4949
    %v4985 = vadd.f32 %v4901, %v4951
    %v4986 = vadd.f32 %v4902, %v4953
    %v4987 = vadd.f32 %v4903, %v4955
    %v5006 = vrot.slane %v3286, 3
    %v5007 = vrot.slane %v3289, 3
    %v5008 = vsel %vm4397, %v5006, %v5007
    %v5009 = vrot.slane %v3322, 3
    %v5010 = vrot.slane %v3325, 3
    %v5011 = vsel %vm4397, %v5009, %v5010
    %v5012 = vrot.slane %v3291, 3
    %v5013 = vsel %vm4397, %v5007, %v5012
    %v5014 = vrot.slane %v3327, 3
    %v5015 = vsel %vm4397, %v5010, %v5014
    %v5016 = vrot.slane %v3294, 3
    %v5017 = vsel %vm4397, %v5012, %v5016
    %v5018 = vrot.slane %v3330, 3
    %v5019 = vsel %vm4397, %v5014, %v5018
    %v5020 = vrot.slane %v3296, 3
    %v5021 = vsel %vm4397, %v5016, %v5020
    %v5022 = vrot.slane %v3332, 3
    %v5023 = vsel %vm4397, %v5018, %v5022
    %v5024 = vrot.slane %v3299, 3
    %v5025 = vsel %vm4397, %v5020, %v5024
    %v5026 = vrot.slane %v3335, 3
    %v5027 = vsel %vm4397, %v5022, %v5026
    %v5028 = vrot.slane %v3301, 3
    %v5029 = vsel %vm4397, %v5024, %v5028
    %v5030 = vrot.slane %v3337, 3
    %v5031 = vsel %vm4397, %v5026, %v5030
    %v5032 = vrot.slane %v3304, 3
    %v5033 = vsel %vm4397, %v5028, %v5032
    %v5034 = vrot.slane %v3340, 3
    %v5035 = vsel %vm4397, %v5030, %v5034
    %v5036 = vrot.slane %v3306, 3
    %v5037 = vsel %vm4397, %v5032, %v5036
    %v5038 = vrot.slane %v3342, 3
    %v5039 = vsel %vm4397, %v5034, %v5038
    %v5056 = vadd.f32 %v4972, %v5008
    %v5057 = vadd.f32 %v4973, %v5011
    %v5058 = vadd.f32 %v4974, %v5013
    %v5059 = vadd.f32 %v4975, %v5015
    %v5060 = vadd.f32 %v4976, %v5017
    %v5061 = vadd.f32 %v4977, %v5019
    %v5062 = vadd.f32 %v4978, %v5021
    %v5063 = vadd.f32 %v4979, %v5023
    %v5064 = vadd.f32 %v4980, %v5025
    %v5065 = vadd.f32 %v4981, %v5027
    %v5066 = vadd.f32 %v4982, %v5029
    %v5067 = vadd.f32 %v4983, %v5031
    %v5068 = vadd.f32 %v4984, %v5033
    %v5069 = vadd.f32 %v4985, %v5035
    %v5070 = vadd.f32 %v4986, %v5037
    %v5071 = vadd.f32 %v4987, %v5039
    %v5090 = vrot.slane %v3358, 4
    %v5091 = vrot.slane %v3361, 4
    %v5092 = vsel %vm4482, %v5090, %v5091
    %v5093 = vrot.slane %v3394, 4
    %v5094 = vrot.slane %v3397, 4
    %v5095 = vsel %vm4482, %v5093, %v5094
    %v5096 = vrot.slane %v3363, 4
    %v5097 = vsel %vm4482, %v5091, %v5096
    %v5098 = vrot.slane %v3399, 4
    %v5099 = vsel %vm4482, %v5094, %v5098
    %v5100 = vrot.slane %v3366, 4
    %v5101 = vsel %vm4482, %v5096, %v5100
    %v5102 = vrot.slane %v3402, 4
    %v5103 = vsel %vm4482, %v5098, %v5102
    %v5104 = vrot.slane %v3368, 4
    %v5105 = vsel %vm4482, %v5100, %v5104
    %v5106 = vrot.slane %v3404, 4
    %v5107 = vsel %vm4482, %v5102, %v5106
    %v5108 = vrot.slane %v3371, 4
    %v5109 = vsel %vm4482, %v5104, %v5108
    %v5110 = vrot.slane %v3407, 4
    %v5111 = vsel %vm4482, %v5106, %v5110
    %v5112 = vrot.slane %v3373, 4
    %v5113 = vsel %vm4482, %v5108, %v5112
    %v5114 = vrot.slane %v3409, 4
    %v5115 = vsel %vm4482, %v5110, %v5114
    %v5116 = vrot.slane %v3376, 4
    %v5117 = vsel %vm4482, %v5112, %v5116
    %v5118 = vrot.slane %v3412, 4
    %v5119 = vsel %vm4482, %v5114, %v5118
    %v5120 = vrot.slane %v3378, 4
    %v5121 = vsel %vm4482, %v5116, %v5120
    %v5122 = vrot.slane %v3414, 4
    %v5123 = vsel %vm4482, %v5118, %v5122
    %v5140 = vadd.f32 %v5056, %v5092
    %v5141 = vadd.f32 %v5057, %v5095
    %v5142 = vadd.f32 %v5058, %v5097
    %v5143 = vadd.f32 %v5059, %v5099
    %v5144 = vadd.f32 %v5060, %v5101
    %v5145 = vadd.f32 %v5061, %v5103
    %v5146 = vadd.f32 %v5062, %v5105
    %v5147 = vadd.f32 %v5063, %v5107
    %v5148 = vadd.f32 %v5064, %v5109
    %v5149 = vadd.f32 %v5065, %v5111
    %v5150 = vadd.f32 %v5066, %v5113
    %v5151 = vadd.f32 %v5067, %v5115
    %v5152 = vadd.f32 %v5068, %v5117
    %v5153 = vadd.f32 %v5069, %v5119
    %v5154 = vadd.f32 %v5070, %v5121
    %v5155 = vadd.f32 %v5071, %v5123
    %v5174 = vrot.slane %v3430, 5
    %v5175 = vrot.slane %v3433, 5
    %v5176 = vsel %vm4567, %v5174, %v5175
    %v5177 = vrot.slane %v3466, 5
    %v5178 = vrot.slane %v3469, 5
    %v5179 = vsel %vm4567, %v5177, %v5178
    %v5180 = vrot.slane %v3435, 5
    %v5181 = vsel %vm4567, %v5175, %v5180
    %v5182 = vrot.slane %v3471, 5
    %v5183 = vsel %vm4567, %v5178, %v5182
    %v5184 = vrot.slane %v3438, 5
    %v5185 = vsel %vm4567, %v5180, %v5184
    %v5186 = vrot.slane %v3474, 5
    %v5187 = vsel %vm4567, %v5182, %v5186
    %v5188 = vrot.slane %v3440, 5
    %v5189 = vsel %vm4567, %v5184, %v5188
    %v5190 = vrot.slane %v3476, 5
    %v5191 = vsel %vm4567, %v5186, %v5190
    %v5192 = vrot.slane %v3443, 5
    %v5193 = vsel %vm4567, %v5188, %v5192
    %v5194 = vrot.slane %v3479, 5
    %v5195 = vsel %vm4567, %v5190, %v5194
    %v5196 = vrot.slane %v3445, 5
    %v5197 = vsel %vm4567, %v5192, %v5196
    %v5198 = vrot.slane %v3481, 5
    %v5199 = vsel %vm4567, %v5194, %v5198
    %v5200 = vrot.slane %v3448, 5
    %v5201 = vsel %vm4567, %v5196, %v5200
    %v5202 = vrot.slane %v3484, 5
    %v5203 = vsel %vm4567, %v5198, %v5202
    %v5204 = vrot.slane %v3450, 5
    %v5205 = vsel %vm4567, %v5200, %v5204
    %v5206 = vrot.slane %v3486, 5
    %v5207 = vsel %vm4567, %v5202, %v5206
    %v5224 = vadd.f32 %v5140, %v5176
    %v5225 = vadd.f32 %v5141, %v5179
    %v5226 = vadd.f32 %v5142, %v5181
    %v5227 = vadd.f32 %v5143, %v5183
    %v5228 = vadd.f32 %v5144, %v5185
    %v5229 = vadd.f32 %v5145, %v5187
    %v5230 = vadd.f32 %v5146, %v5189
    %v5231 = vadd.f32 %v5147, %v5191
    %v5232 = vadd.f32 %v5148, %v5193
    %v5233 = vadd.f32 %v5149, %v5195
    %v5234 = vadd.f32 %v5150, %v5197
    %v5235 = vadd.f32 %v5151, %v5199
    %v5236 = vadd.f32 %v5152, %v5201
    %v5237 = vadd.f32 %v5153, %v5203
    %v5238 = vadd.f32 %v5154, %v5205
    %v5239 = vadd.f32 %v5155, %v5207
    %v5258 = vrot.slane %v3502, 6
    %v5259 = vrot.slane %v3505, 6
    %v5260 = vsel %vm4652, %v5258, %v5259
    %v5261 = vrot.slane %v3538, 6
    %v5262 = vrot.slane %v3541, 6
    %v5263 = vsel %vm4652, %v5261, %v5262
    %v5264 = vrot.slane %v3507, 6
    %v5265 = vsel %vm4652, %v5259, %v5264
    %v5266 = vrot.slane %v3543, 6
    %v5267 = vsel %vm4652, %v5262, %v5266
    %v5268 = vrot.slane %v3510, 6
    %v5269 = vsel %vm4652, %v5264, %v5268
    %v5270 = vrot.slane %v3546, 6
    %v5271 = vsel %vm4652, %v5266, %v5270
    %v5272 = vrot.slane %v3512, 6
    %v5273 = vsel %vm4652, %v5268, %v5272
    %v5274 = vrot.slane %v3548, 6
    %v5275 = vsel %vm4652, %v5270, %v5274
    %v5276 = vrot.slane %v3515, 6
    %v5277 = vsel %vm4652, %v5272, %v5276
    %v5278 = vrot.slane %v3551, 6
    %v5279 = vsel %vm4652, %v5274, %v5278
    %v5280 = vrot.slane %v3517, 6
    %v5281 = vsel %vm4652, %v5276, %v5280
    %v5282 = vrot.slane %v3553, 6
    %v5283 = vsel %vm4652, %v5278, %v5282
    %v5284 = vrot.slane %v3520, 6
    %v5285 = vsel %vm4652, %v5280, %v5284
    %v5286 = vrot.slane %v3556, 6
    %v5287 = vsel %vm4652, %v5282, %v5286
    %v5288 = vrot.slane %v3522, 6
    %v5289 = vsel %vm4652, %v5284, %v5288
    %v5290 = vrot.slane %v3558, 6
    %v5291 = vsel %vm4652, %v5286, %v5290
    %v5308 = vadd.f32 %v5224, %v5260
    %v5309 = vadd.f32 %v5225, %v5263
    %v5310 = vadd.f32 %v5226, %v5265
    %v5311 = vadd.f32 %v5227, %v5267
    %v5312 = vadd.f32 %v5228, %v5269
    %v5313 = vadd.f32 %v5229, %v5271
    %v5314 = vadd.f32 %v5230, %v5273
    %v5315 = vadd.f32 %v5231, %v5275
    %v5316 = vadd.f32 %v5232, %v5277
    %v5317 = vadd.f32 %v5233, %v5279
    %v5318 = vadd.f32 %v5234, %v5281
    %v5319 = vadd.f32 %v5235, %v5283
    %v5320 = vadd.f32 %v5236, %v5285
    %v5321 = vadd.f32 %v5237, %v5287
    %v5322 = vadd.f32 %v5238, %v5289
    %v5323 = vadd.f32 %v5239, %v5291
    %v5342 = vrot.slane %v3574, 7
    %v5343 = vrot.slane %v3577, 7
    %v5344 = vsel %vm4737, %v5342, %v5343
    %v5345 = vrot.slane %v3610, 7
    %v5346 = vrot.slane %v3613, 7
    %v5347 = vsel %vm4737, %v5345, %v5346
    %v5348 = vrot.slane %v3579, 7
    %v5349 = vsel %vm4737, %v5343, %v5348
    %v5350 = vrot.slane %v3615, 7
    %v5351 = vsel %vm4737, %v5346, %v5350
    %v5352 = vrot.slane %v3582, 7
    %v5353 = vsel %vm4737, %v5348, %v5352
    %v5354 = vrot.slane %v3618, 7
    %v5355 = vsel %vm4737, %v5350, %v5354
    %v5356 = vrot.slane %v3584, 7
    %v5357 = vsel %vm4737, %v5352, %v5356
    %v5358 = vrot.slane %v3620, 7
    %v5359 = vsel %vm4737, %v5354, %v5358
    %v5360 = vrot.slane %v3587, 7
    %v5361 = vsel %vm4737, %v5356, %v5360
    %v5362 = vrot.slane %v3623, 7
    %v5363 = vsel %vm4737, %v5358, %v5362
    %v5364 = vrot.slane %v3589, 7
    %v5365 = vsel %vm4737, %v5360, %v5364
    %v5366 = vrot.slane %v3625, 7
    %v5367 = vsel %vm4737, %v5362, %v5366
    %v5368 = vrot.slane %v3592, 7
    %v5369 = vsel %vm4737, %v5364, %v5368
    %v5370 = vrot.slane %v3628, 7
    %v5371 = vsel %vm4737, %v5366, %v5370
    %v5372 = vrot.slane %v3594, 7
    %v5373 = vsel %vm4737, %v5368, %v5372
    %v5374 = vrot.slane %v3630, 7
    %v5375 = vsel %vm4737, %v5370, %v5374
    %v5392 = vadd.f32 %v5308, %v5344
    %v5393 = vadd.f32 %v5309, %v5347
    %v5394 = vadd.f32 %v5310, %v5349
    %v5395 = vadd.f32 %v5311, %v5351
    %v5396 = vadd.f32 %v5312, %v5353
    %v5397 = vadd.f32 %v5313, %v5355
    %v5398 = vadd.f32 %v5314, %v5357
    %v5399 = vadd.f32 %v5315, %v5359
    %v5400 = vadd.f32 %v5316, %v5361
    %v5401 = vadd.f32 %v5317, %v5363
    %v5402 = vadd.f32 %v5318, %v5365
    %v5403 = vadd.f32 %v5319, %v5367
    %v5404 = vadd.f32 %v5320, %v5369
    %v5405 = vadd.f32 %v5321, %v5371
    %v5406 = vadd.f32 %v5322, %v5373
    %v5407 = vadd.f32 %v5323, %v5375
    %v5408 = vadd.f32 %v5392, %v3648
    %v5409 = vadd.f32 %v5393, %v3683
    %v5410 = vadd.f32 %v5394, %v3650
    %v5411 = vadd.f32 %v5395, %v3685
    %v5412 = vadd.f32 %v5396, %v3653
    %v5413 = vadd.f32 %v5397, %v3688
    %v5414 = vadd.f32 %v5398, %v3655
    %v5415 = vadd.f32 %v5399, %v3690
    %v5416 = vadd.f32 %v5400, %v3658
    %v5417 = vadd.f32 %v5401, %v3693
    %v5418 = vadd.f32 %v5402, %v3660
    %v5419 = vadd.f32 %v5403, %v3695
    %v5420 = vadd.f32 %v5404, %v3663
    %v5421 = vadd.f32 %v5405, %v3698
    %v5422 = vadd.f32 %v5406, %v3665
    %v5423 = vadd.f32 %v5407, %v3700
    %v5442 = vrot.slane %v3718, 1
    %v5443 = vrot.slane %v3720, 1
    %v5444 = vsel %vm4227, %v5442, %v5443
    %v5445 = vrot.slane %v3754, 1
    %v5446 = vrot.slane %v3756, 1
    %v5447 = vsel %vm4227, %v5445, %v5446
    %v5448 = vrot.slane %v3723, 1
    %v5449 = vsel %vm4227, %v5443, %v5448
    %v5450 = vrot.slane %v3759, 1
    %v5451 = vsel %vm4227, %v5446, %v5450
    %v5452 = vrot.slane %v3725, 1
    %v5453 = vsel %vm4227, %v5448, %v5452
    %v5454 = vrot.slane %v3761, 1
    %v5455 = vsel %vm4227, %v5450, %v5454
    %v5456 = vrot.slane %v3728, 1
    %v5457 = vsel %vm4227, %v5452, %v5456
    %v5458 = vrot.slane %v3764, 1
    %v5459 = vsel %vm4227, %v5454, %v5458
    %v5460 = vrot.slane %v3730, 1
    %v5461 = vsel %vm4227, %v5456, %v5460
    %v5462 = vrot.slane %v3766, 1
    %v5463 = vsel %vm4227, %v5458, %v5462
    %v5464 = vrot.slane %v3733, 1
    %v5465 = vsel %vm4227, %v5460, %v5464
    %v5466 = vrot.slane %v3769, 1
    %v5467 = vsel %vm4227, %v5462, %v5466
    %v5468 = vrot.slane %v3735, 1
    %v5469 = vsel %vm4227, %v5464, %v5468
    %v5470 = vrot.slane %v3771, 1
    %v5471 = vsel %vm4227, %v5466, %v5470
    %v5472 = vrot.slane %v3738, 1
    %v5473 = vsel %vm4227, %v5468, %v5472
    %v5474 = vrot.slane %v3774, 1
    %v5475 = vsel %vm4227, %v5470, %v5474
    %v5492 = vadd.f32 %v5408, %v5444
    %v5493 = vadd.f32 %v5409, %v5447
    %v5494 = vadd.f32 %v5410, %v5449
    %v5495 = vadd.f32 %v5411, %v5451
    %v5496 = vadd.f32 %v5412, %v5453
    %v5497 = vadd.f32 %v5413, %v5455
    %v5498 = vadd.f32 %v5414, %v5457
    %v5499 = vadd.f32 %v5415, %v5459
    %v5500 = vadd.f32 %v5416, %v5461
    %v5501 = vadd.f32 %v5417, %v5463
    %v5502 = vadd.f32 %v5418, %v5465
    %v5503 = vadd.f32 %v5419, %v5467
    %v5504 = vadd.f32 %v5420, %v5469
    %v5505 = vadd.f32 %v5421, %v5471
    %v5506 = vadd.f32 %v5422, %v5473
    %v5507 = vadd.f32 %v5423, %v5475
    %v5526 = vrot.slane %v3790, 2
    %v5527 = vrot.slane %v3792, 2
    %v5528 = vsel %vm4312, %v5526, %v5527
    %v5529 = vrot.slane %v3826, 2
    %v5530 = vrot.slane %v3828, 2
    %v5531 = vsel %vm4312, %v5529, %v5530
    %v5532 = vrot.slane %v3795, 2
    %v5533 = vsel %vm4312, %v5527, %v5532
    %v5534 = vrot.slane %v3831, 2
    %v5535 = vsel %vm4312, %v5530, %v5534
    %v5536 = vrot.slane %v3797, 2
    %v5537 = vsel %vm4312, %v5532, %v5536
    %v5538 = vrot.slane %v3833, 2
    %v5539 = vsel %vm4312, %v5534, %v5538
    %v5540 = vrot.slane %v3800, 2
    %v5541 = vsel %vm4312, %v5536, %v5540
    %v5542 = vrot.slane %v3836, 2
    %v5543 = vsel %vm4312, %v5538, %v5542
    %v5544 = vrot.slane %v3802, 2
    %v5545 = vsel %vm4312, %v5540, %v5544
    %v5546 = vrot.slane %v3838, 2
    %v5547 = vsel %vm4312, %v5542, %v5546
    %v5548 = vrot.slane %v3805, 2
    %v5549 = vsel %vm4312, %v5544, %v5548
    %v5550 = vrot.slane %v3841, 2
    %v5551 = vsel %vm4312, %v5546, %v5550
    %v5552 = vrot.slane %v3807, 2
    %v5553 = vsel %vm4312, %v5548, %v5552
    %v5554 = vrot.slane %v3843, 2
    %v5555 = vsel %vm4312, %v5550, %v5554
    %v5556 = vrot.slane %v3810, 2
    %v5557 = vsel %vm4312, %v5552, %v5556
    %v5558 = vrot.slane %v3846, 2
    %v5559 = vsel %vm4312, %v5554, %v5558
    %v5576 = vadd.f32 %v5492, %v5528
    %v5577 = vadd.f32 %v5493, %v5531
    %v5578 = vadd.f32 %v5494, %v5533
    %v5579 = vadd.f32 %v5495, %v5535
    %v5580 = vadd.f32 %v5496, %v5537
    %v5581 = vadd.f32 %v5497, %v5539
    %v5582 = vadd.f32 %v5498, %v5541
    %v5583 = vadd.f32 %v5499, %v5543
    %v5584 = vadd.f32 %v5500, %v5545
    %v5585 = vadd.f32 %v5501, %v5547
    %v5586 = vadd.f32 %v5502, %v5549
    %v5587 = vadd.f32 %v5503, %v5551
    %v5588 = vadd.f32 %v5504, %v5553
    %v5589 = vadd.f32 %v5505, %v5555
    %v5590 = vadd.f32 %v5506, %v5557
    %v5591 = vadd.f32 %v5507, %v5559
    %v5610 = vrot.slane %v3862, 3
    %v5611 = vrot.slane %v3864, 3
    %v5612 = vsel %vm4397, %v5610, %v5611
    %v5613 = vrot.slane %v3898, 3
    %v5614 = vrot.slane %v3900, 3
    %v5615 = vsel %vm4397, %v5613, %v5614
    %v5616 = vrot.slane %v3867, 3
    %v5617 = vsel %vm4397, %v5611, %v5616
    %v5618 = vrot.slane %v3903, 3
    %v5619 = vsel %vm4397, %v5614, %v5618
    %v5620 = vrot.slane %v3869, 3
    %v5621 = vsel %vm4397, %v5616, %v5620
    %v5622 = vrot.slane %v3905, 3
    %v5623 = vsel %vm4397, %v5618, %v5622
    %v5624 = vrot.slane %v3872, 3
    %v5625 = vsel %vm4397, %v5620, %v5624
    %v5626 = vrot.slane %v3908, 3
    %v5627 = vsel %vm4397, %v5622, %v5626
    %v5628 = vrot.slane %v3874, 3
    %v5629 = vsel %vm4397, %v5624, %v5628
    %v5630 = vrot.slane %v3910, 3
    %v5631 = vsel %vm4397, %v5626, %v5630
    %v5632 = vrot.slane %v3877, 3
    %v5633 = vsel %vm4397, %v5628, %v5632
    %v5634 = vrot.slane %v3913, 3
    %v5635 = vsel %vm4397, %v5630, %v5634
    %v5636 = vrot.slane %v3879, 3
    %v5637 = vsel %vm4397, %v5632, %v5636
    %v5638 = vrot.slane %v3915, 3
    %v5639 = vsel %vm4397, %v5634, %v5638
    %v5640 = vrot.slane %v3882, 3
    %v5641 = vsel %vm4397, %v5636, %v5640
    %v5642 = vrot.slane %v3918, 3
    %v5643 = vsel %vm4397, %v5638, %v5642
    %v5660 = vadd.f32 %v5576, %v5612
    %v5661 = vadd.f32 %v5577, %v5615
    %v5662 = vadd.f32 %v5578, %v5617
    %v5663 = vadd.f32 %v5579, %v5619
    %v5664 = vadd.f32 %v5580, %v5621
    %v5665 = vadd.f32 %v5581, %v5623
    %v5666 = vadd.f32 %v5582, %v5625
    %v5667 = vadd.f32 %v5583, %v5627
    %v5668 = vadd.f32 %v5584, %v5629
    %v5669 = vadd.f32 %v5585, %v5631
    %v5670 = vadd.f32 %v5586, %v5633
    %v5671 = vadd.f32 %v5587, %v5635
    %v5672 = vadd.f32 %v5588, %v5637
    %v5673 = vadd.f32 %v5589, %v5639
    %v5674 = vadd.f32 %v5590, %v5641
    %v5675 = vadd.f32 %v5591, %v5643
    %v5694 = vrot.slane %v3934, 4
    %v5695 = vrot.slane %v3936, 4
    %v5696 = vsel %vm4482, %v5694, %v5695
    %v5697 = vrot.slane %v3970, 4
    %v5698 = vrot.slane %v3972, 4
    %v5699 = vsel %vm4482, %v5697, %v5698
    %v5700 = vrot.slane %v3939, 4
    %v5701 = vsel %vm4482, %v5695, %v5700
    %v5702 = vrot.slane %v3975, 4
    %v5703 = vsel %vm4482, %v5698, %v5702
    %v5704 = vrot.slane %v3941, 4
    %v5705 = vsel %vm4482, %v5700, %v5704
    %v5706 = vrot.slane %v3977, 4
    %v5707 = vsel %vm4482, %v5702, %v5706
    %v5708 = vrot.slane %v3944, 4
    %v5709 = vsel %vm4482, %v5704, %v5708
    %v5710 = vrot.slane %v3980, 4
    %v5711 = vsel %vm4482, %v5706, %v5710
    %v5712 = vrot.slane %v3946, 4
    %v5713 = vsel %vm4482, %v5708, %v5712
    %v5714 = vrot.slane %v3982, 4
    %v5715 = vsel %vm4482, %v5710, %v5714
    %v5716 = vrot.slane %v3949, 4
    %v5717 = vsel %vm4482, %v5712, %v5716
    %v5718 = vrot.slane %v3985, 4
    %v5719 = vsel %vm4482, %v5714, %v5718
    %v5720 = vrot.slane %v3951, 4
    %v5721 = vsel %vm4482, %v5716, %v5720
    %v5722 = vrot.slane %v3987, 4
    %v5723 = vsel %vm4482, %v5718, %v5722
    %v5724 = vrot.slane %v3954, 4
    %v5725 = vsel %vm4482, %v5720, %v5724
    %v5726 = vrot.slane %v3990, 4
    %v5727 = vsel %vm4482, %v5722, %v5726
    %v5744 = vadd.f32 %v5660, %v5696
    %v5745 = vadd.f32 %v5661, %v5699
    %v5746 = vadd.f32 %v5662, %v5701
    %v5747 = vadd.f32 %v5663, %v5703
    %v5748 = vadd.f32 %v5664, %v5705
    %v5749 = vadd.f32 %v5665, %v5707
    %v5750 = vadd.f32 %v5666, %v5709
    %v5751 = vadd.f32 %v5667, %v5711
    %v5752 = vadd.f32 %v5668, %v5713
    %v5753 = vadd.f32 %v5669, %v5715
    %v5754 = vadd.f32 %v5670, %v5717
    %v5755 = vadd.f32 %v5671, %v5719
    %v5756 = vadd.f32 %v5672, %v5721
    %v5757 = vadd.f32 %v5673, %v5723
    %v5758 = vadd.f32 %v5674, %v5725
    %v5759 = vadd.f32 %v5675, %v5727
    %v5778 = vrot.slane %v4006, 5
    %v5779 = vrot.slane %v4008, 5
    %v5780 = vsel %vm4567, %v5778, %v5779
    %v5781 = vrot.slane %v4042, 5
    %v5782 = vrot.slane %v4044, 5
    %v5783 = vsel %vm4567, %v5781, %v5782
    %v5784 = vrot.slane %v4011, 5
    %v5785 = vsel %vm4567, %v5779, %v5784
    %v5786 = vrot.slane %v4047, 5
    %v5787 = vsel %vm4567, %v5782, %v5786
    %v5788 = vrot.slane %v4013, 5
    %v5789 = vsel %vm4567, %v5784, %v5788
    %v5790 = vrot.slane %v4049, 5
    %v5791 = vsel %vm4567, %v5786, %v5790
    %v5792 = vrot.slane %v4016, 5
    %v5793 = vsel %vm4567, %v5788, %v5792
    %v5794 = vrot.slane %v4052, 5
    %v5795 = vsel %vm4567, %v5790, %v5794
    %v5796 = vrot.slane %v4018, 5
    %v5797 = vsel %vm4567, %v5792, %v5796
    %v5798 = vrot.slane %v4054, 5
    %v5799 = vsel %vm4567, %v5794, %v5798
    %v5800 = vrot.slane %v4021, 5
    %v5801 = vsel %vm4567, %v5796, %v5800
    %v5802 = vrot.slane %v4057, 5
    %v5803 = vsel %vm4567, %v5798, %v5802
    %v5804 = vrot.slane %v4023, 5
    %v5805 = vsel %vm4567, %v5800, %v5804
    %v5806 = vrot.slane %v4059, 5
    %v5807 = vsel %vm4567, %v5802, %v5806
    %v5808 = vrot.slane %v4026, 5
    %v5809 = vsel %vm4567, %v5804, %v5808
    %v5810 = vrot.slane %v4062, 5
    %v5811 = vsel %vm4567, %v5806, %v5810
    %v5828 = vadd.f32 %v5744, %v5780
    %v5829 = vadd.f32 %v5745, %v5783
    %v5830 = vadd.f32 %v5746, %v5785
    %v5831 = vadd.f32 %v5747, %v5787
    %v5832 = vadd.f32 %v5748, %v5789
    %v5833 = vadd.f32 %v5749, %v5791
    %v5834 = vadd.f32 %v5750, %v5793
    %v5835 = vadd.f32 %v5751, %v5795
    %v5836 = vadd.f32 %v5752, %v5797
    %v5837 = vadd.f32 %v5753, %v5799
    %v5838 = vadd.f32 %v5754, %v5801
    %v5839 = vadd.f32 %v5755, %v5803
    %v5840 = vadd.f32 %v5756, %v5805
    %v5841 = vadd.f32 %v5757, %v5807
    %v5842 = vadd.f32 %v5758, %v5809
    %v5843 = vadd.f32 %v5759, %v5811
    %v5862 = vrot.slane %v4078, 6
    %v5863 = vrot.slane %v4080, 6
    %v5864 = vsel %vm4652, %v5862, %v5863
    %v5865 = vrot.slane %v4114, 6
    %v5866 = vrot.slane %v4116, 6
    %v5867 = vsel %vm4652, %v5865, %v5866
    %v5868 = vrot.slane %v4083, 6
    %v5869 = vsel %vm4652, %v5863, %v5868
    %v5870 = vrot.slane %v4119, 6
    %v5871 = vsel %vm4652, %v5866, %v5870
    %v5872 = vrot.slane %v4085, 6
    %v5873 = vsel %vm4652, %v5868, %v5872
    %v5874 = vrot.slane %v4121, 6
    %v5875 = vsel %vm4652, %v5870, %v5874
    %v5876 = vrot.slane %v4088, 6
    %v5877 = vsel %vm4652, %v5872, %v5876
    %v5878 = vrot.slane %v4124, 6
    %v5879 = vsel %vm4652, %v5874, %v5878
    %v5880 = vrot.slane %v4090, 6
    %v5881 = vsel %vm4652, %v5876, %v5880
    %v5882 = vrot.slane %v4126, 6
    %v5883 = vsel %vm4652, %v5878, %v5882
    %v5884 = vrot.slane %v4093, 6
    %v5885 = vsel %vm4652, %v5880, %v5884
    %v5886 = vrot.slane %v4129, 6
    %v5887 = vsel %vm4652, %v5882, %v5886
    %v5888 = vrot.slane %v4095, 6
    %v5889 = vsel %vm4652, %v5884, %v5888
    %v5890 = vrot.slane %v4131, 6
    %v5891 = vsel %vm4652, %v5886, %v5890
    %v5892 = vrot.slane %v4098, 6
    %v5893 = vsel %vm4652, %v5888, %v5892
    %v5894 = vrot.slane %v4134, 6
    %v5895 = vsel %vm4652, %v5890, %v5894
    %v5912 = vadd.f32 %v5828, %v5864
    %v5913 = vadd.f32 %v5829, %v5867
    %v5914 = vadd.f32 %v5830, %v5869
    %v5915 = vadd.f32 %v5831, %v5871
    %v5916 = vadd.f32 %v5832, %v5873
    %v5917 = vadd.f32 %v5833, %v5875
    %v5918 = vadd.f32 %v5834, %v5877
    %v5919 = vadd.f32 %v5835, %v5879
    %v5920 = vadd.f32 %v5836, %v5881
    %v5921 = vadd.f32 %v5837, %v5883
    %v5922 = vadd.f32 %v5838, %v5885
    %v5923 = vadd.f32 %v5839, %v5887
    %v5924 = vadd.f32 %v5840, %v5889
    %v5925 = vadd.f32 %v5841, %v5891
    %v5926 = vadd.f32 %v5842, %v5893
    %v5927 = vadd.f32 %v5843, %v5895
    %v5946 = vrot.slane %v4150, 7
    %v5947 = vrot.slane %v4152, 7
    %v5948 = vsel %vm4737, %v5946, %v5947
    %v5949 = vrot.slane %v4186, 7
    %v5950 = vrot.slane %v4188, 7
    %v5951 = vsel %vm4737, %v5949, %v5950
    %v5952 = vrot.slane %v4155, 7
    %v5953 = vsel %vm4737, %v5947, %v5952
    %v5954 = vrot.slane %v4191, 7
    %v5955 = vsel %vm4737, %v5950, %v5954
    %v5956 = vrot.slane %v4157, 7
    %v5957 = vsel %vm4737, %v5952, %v5956
    %v5958 = vrot.slane %v4193, 7
    %v5959 = vsel %vm4737, %v5954, %v5958
    %v5960 = vrot.slane %v4160, 7
    %v5961 = vsel %vm4737, %v5956, %v5960
    %v5962 = vrot.slane %v4196, 7
    %v5963 = vsel %vm4737, %v5958, %v5962
    %v5964 = vrot.slane %v4162, 7
    %v5965 = vsel %vm4737, %v5960, %v5964
    %v5966 = vrot.slane %v4198, 7
    %v5967 = vsel %vm4737, %v5962, %v5966
    %v5968 = vrot.slane %v4165, 7
    %v5969 = vsel %vm4737, %v5964, %v5968
    %v5970 = vrot.slane %v4201, 7
    %v5971 = vsel %vm4737, %v5966, %v5970
    %v5972 = vrot.slane %v4167, 7
    %v5973 = vsel %vm4737, %v5968, %v5972
    %v5974 = vrot.slane %v4203, 7
    %v5975 = vsel %vm4737, %v5970, %v5974
    %v5976 = vrot.slane %v4170, 7
    %v5977 = vsel %vm4737, %v5972, %v5976
    %v5978 = vrot.slane %v4206, 7
    %v5979 = vsel %vm4737, %v5974, %v5978
    %v5996 = vadd.f32 %v5912, %v5948
    %v5997 = vadd.f32 %v5913, %v5951
    %v5998 = vadd.f32 %v5914, %v5953
    %v5999 = vadd.f32 %v5915, %v5955
    %v6000 = vadd.f32 %v5916, %v5957
    %v6001 = vadd.f32 %v5917, %v5959
    %v6002 = vadd.f32 %v5918, %v5961
    %v6003 = vadd.f32 %v5919, %v5963
    %v6004 = vadd.f32 %v5920, %v5965
    %v6005 = vadd.f32 %v5921, %v5967
    %v6006 = vadd.f32 %v5922, %v5969
    %v6007 = vadd.f32 %v5923, %v5971
    %v6008 = vadd.f32 %v5924, %v5973
    %v6009 = vadd.f32 %v5925, %v5975
    %v6010 = vadd.f32 %v5926, %v5977
    %v6011 = vadd.f32 %v5927, %v5979
    %v6012 = vld [vmem:[#allocation5] sm:$0xff]
    %v6013 = vld [vmem:[#allocation5 + $0x8] sm:$0xff]
    %v6014 = vld [vmem:[#allocation5 + $0x10] sm:$0xff]
    %v6015 = vld [vmem:[#allocation5 + $0x18] sm:$0xff]
    %v6016 = vld [vmem:[#allocation5 + $0x20] sm:$0xff]
    %v6017 = vld [vmem:[#allocation5 + $0x28] sm:$0xff]
    %v6018 = vld [vmem:[#allocation5 + $0x30] sm:$0xff]
    %v6019 = vld [vmem:[#allocation5 + $0x38] sm:$0xff]
    %v6020 = vld [vmem:[#allocation5 + $0x40] sm:$0xff]
    %v6021 = vld [vmem:[#allocation5 + $0x48] sm:$0xff]
    %v6022 = vld [vmem:[#allocation5 + $0x50] sm:$0xff]
    %v6023 = vld [vmem:[#allocation5 + $0x58] sm:$0xff]
    %v6024 = vld [vmem:[#allocation5 + $0x60] sm:$0xff]
    %v6025 = vld [vmem:[#allocation5 + $0x68] sm:$0xff]
    %v6026 = vld [vmem:[#allocation5 + $0x70] sm:$0xff]
    %v6027 = vld [vmem:[#allocation5 + $0x78] sm:$0xff]
    %v6028 = vadd.f32 %v5996, %v6012
    %v6029 = vadd.f32 %v5997, %v6013
    %v6030 = vadd.f32 %v5998, %v6014
    %v6031 = vadd.f32 %v5999, %v6015
    %v6032 = vadd.f32 %v6000, %v6016
    %v6033 = vadd.f32 %v6001, %v6017
    %v6034 = vadd.f32 %v6002, %v6018
    %v6035 = vadd.f32 %v6003, %v6019
    %v6036 = vadd.f32 %v6004, %v6020
    %v6037 = vadd.f32 %v6005, %v6021
    %v6038 = vadd.f32 %v6006, %v6022
    %v6039 = vadd.f32 %v6007, %v6023
    %v6040 = vadd.f32 %v6008, %v6024
    %v6041 = vadd.f32 %v6009, %v6025
    %v6042 = vadd.f32 %v6010, %v6026
    %v6043 = vadd.f32 %v6011, %v6027
    %v6044 = vmax.f32 %v6028, %v6032
    %v6045 = vmax.f32 %v6030, %v6034
    %v6046 = vmax.f32 %v6044, %v6045
    %v6047 = vrot.slane %v6046, 4
    %v6048 = vmax.f32 %v6046, %v6047
    %v6049 = vrot.slane %v6048, 2
    %v6050 = vmax.f32 %v6048, %v6049
    %v6051 = vrot.slane %v6050, 1
    %v6052 = vmax.f32 %v6050, %v6051
    %v6053 = vmax.f32 %v6029, %v6033
    %v6054 = vmax.f32 %v6031, %v6035
    %v6055 = vmax.f32 %v6053, %v6054
    %v6056 = vrot.slane %v6055, 4
    %v6057 = vmax.f32 %v6055, %v6056
    %v6058 = vrot.slane %v6057, 2
    %v6059 = vmax.f32 %v6057, %v6058
    %v6060 = vrot.slane %v6059, 1
    %v6061 = vmax.f32 %v6059, %v6060
    %v6062 = vmax.f32 %v6036, %v6040
    %v6063 = vmax.f32 %v6038, %v6042
    %v6064 = vmax.f32 %v6062, %v6063
    %v6065 = vrot.slane %v6064, 4
    %v6066 = vmax.f32 %v6064, %v6065
    %v6067 = vrot.slane %v6066, 2
    %v6068 = vmax.f32 %v6066, %v6067
    %v6069 = vrot.slane %v6068, 1
    %v6070 = vmax.f32 %v6068, %v6069
    %v6071 = vmax.f32 %v6037, %v6041
    %v6072 = vmax.f32 %v6039, %v6043
    %v6073 = vmax.f32 %v6071, %v6072
    %v6074 = vrot.slane %v6073, 4
    %v6075 = vmax.f32 %v6073, %v6074
    %v6076 = vrot.slane %v6075, 2
    %v6077 = vmax.f32 %v6075, %v6076
    %v6078 = vrot.slane %v6077, 1
    %v6079 = vmax.f32 %v6077, %v6078
    %v6080 = vsel %vm4737, %v6052, %v6070
    %v6081 = vsel %vm4737, %v6061, %v6079
    %v6082 = vld [vmem:[#allocation7] sm:$0x3]
    %v6084 = vperm.slane %v6082, 0
    %v6085 = vperm.slane %v6082, 1
    %v6088 = vadd.f32 %v6080, %v6084
    %v6089 = vadd.f32 %v6081, %v6085
    %v6090 = vmax.f32 %v6088, 0.0
    %v6091 = vmax.f32 %v6089, 0.0
    %v6092 = vld [vmem:[#allocation8] sm:$0xff]
    %v6093 = vld [vmem:[#allocation8 + $0x8] sm:$0xff]
    %v6094 = vld [vmem:[#allocation8 + $0x10] sm:$0xff]
    %v6095 = vld [vmem:[#allocation8 + $0x18] sm:$0xff]
    %v6096 = vld [vmem:[#allocation8 + $0x20] sm:$0xff]
    %v6097 = vld [vmem:[#allocation8 + $0x28] sm:$0xff]
    %v6098 = vld [vmem:[#allocation8 + $0x30] sm:$0xff]
    %v6099 = vld [vmem:[#allocation8 + $0x38] sm:$0xff]
    %v6100 = vld [vmem:[#allocation8 + $0x40] sm:$0xff]
    %v6101 = vld [vmem:[#allocation8 + $0x48] sm:$0xff]
    %v6102 = vld [vmem:[#allocation8 + $0x50] sm:$0xff]
    %v6103 = vld [vmem:[#allocation8 + $0x58] sm:$0xff]
    %v6104 = vld [vmem:[#allocation8 + $0x60] sm:$0xff]
    %v6105 = vld [vmem:[#allocation8 + $0x68] sm:$0xff]
    %v6106 = vld [vmem:[#allocation8 + $0x70] sm:$0xff]
    %v6107 = vld [vmem:[#allocation8 + $0x78] sm:$0xff]
    %v6108 = vld [vmem:[#allocation8 + $0x80] sm:$0xff]
    %v6109 = vld [vmem:[#allocation8 + $0x88] sm:$0xff]
    %v6110 = vld [vmem:[#allocation8 + $0x90] sm:$0xff]
    %v6111 = vld [vmem:[#allocation8 + $0x98] sm:$0xff]
    %v6112 = vld [vmem:[#allocation8 + $0xa0] sm:$0xff]
    %v6113 = vld [vmem:[#allocation8 + $0xa8] sm:$0xff]
    %v6114 = vld [vmem:[#allocation8 + $0xb0] sm:$0xff]
    %v6115 = vld [vmem:[#allocation8 + $0xb8] sm:$0xff]
    %v6116 = vld [vmem:[#allocation8 + $0xc0] sm:$0xff]
    %v6117 = vld [vmem:[#allocation8 + $0xc8] sm:$0xff]
    %v6118 = vld [vmem:[#allocation8 + $0xd0] sm:$0xff]
    %v6119 = vld [vmem:[#allocation8 + $0xd8] sm:$0xff]
    %v6120 = vld [vmem:[#allocation8 + $0xe0] sm:$0xff]
    %v6121 = vld [vmem:[#allocation8 + $0xe8] sm:$0xff]
    %v6122 = vld [vmem:[#allocation8 + $0xf0] sm:$0xff]
    %v6123 = vld [vmem:[#allocation8 + $0xf8] sm:$0xff]
    %v6124 = vld [vmem:[#allocation10] sm:$0x1]
    %v6126 = vperm.slane %v6124, 0
    %6128 = vmatpush.msra.mxu0 %v6107
    %6129 = vmatpush.msra.mxu0 %v6106
    %6130 = vmatpush.msra.mxu0 %v6105
    %6131 = vmatpush.msra.mxu0 %v6104
    %6132 = vmatpush.msra.mxu0 %v6103
    %6133 = vmatpush.msra.mxu0 %v6102
    %6134 = vmatpush.msra.mxu0 %v6101
    %6135 = vmatpush.msra.mxu0 %v6100
    %6136 = vmatpush.msra.mxu0 %v6099
    %6137 = vmatpush.msra.mxu0 %v6098
    %6138 = vmatpush.msra.mxu0 %v6097
    %6139 = vmatpush.msra.mxu0 %v6096
    %6140 = vmatpush.msra.mxu0 %v6095
    %6141 = vmatpush.msra.mxu0 %v6094
    %6142 = vmatpush.msra.mxu0 %v6093
    %6143 = vmatpush.msra.mxu0 %v6092
    %6144 = vmatmul.f32.gmra.mxu0 %v6090
    %v6145 = vpop.f32.mrf.mxu0
    %v6146 = vadd.f32 %v6126, %v6145
    %6147 = vdwg.mxu0
    %6148 = vmatpush.msra.mxu0 %v6123
    %6149 = vmatpush.msra.mxu0 %v6122
    %6150 = vmatpush.msra.mxu0 %v6121
    %6151 = vmatpush.msra.mxu0 %v6120
    %6152 = vmatpush.msra.mxu0 %v6119
    %6153 = vmatpush.msra.mxu0 %v6118
    %6154 = vmatpush.msra.mxu0 %v6117
    %6155 = vmatpush.msra.mxu0 %v6116
    %6156 = vmatpush.msra.mxu0 %v6115
    %6157 = vmatpush.msra.mxu0 %v6114
    %6158 = vmatpush.msra.mxu0 %v6113
    %6159 = vmatpush.msra.mxu0 %v6112
    %6160 = vmatpush.msra.mxu0 %v6111
    %6161 = vmatpush.msra.mxu0 %v6110
    %6162 = vmatpush.msra.mxu0 %v6109
    %6163 = vmatpush.msra.mxu0 %v6108
    %6164 = vmatmul.f32.gmra.mxu0 %v6091
    %v6165 = vpop.f32.mrf.mxu0
    %v6166 = vadd.f32 %v6146, %v6165
    %6167 = vdwg.mxu0
    %6168 = vst [vmem:[#allocation11] sm:$0x3] %v6166
    // Predicated region
    $region46: #{textcnn_forward.1} parent=1 // pred_check
      _
    $region47: #{textcnn_forward.1} parent=1 // pred_check_branch
      %6170 = sbr.rel (0) target = $region49
    $region48: #{textcnn_forward.1} parent=1 // pred_region
      %6172 = vsyncadd [#allocation4], 0
      %s6174 = sshll.u32 [#allocation11], 4
      %s6175 = int_to_ptr.vmem [resolvable:$true] %s6174
      %s6176 = sshll.u32 %s6, 4
      %s6177 = int_to_ptr.hbm [resolvable:$true] %s6176
      %6179 = dma.vmem_to_hbm [thread:$0]  %s6175, 32, %s6177, [#allocation4]
    $region49: #{textcnn_forward.1} parent=1 // pred_fallthru
      _
    // Predicated region
    $region50: #{textcnn_forward.1} parent=1 // pred_check
      _
    $region51: #{textcnn_forward.1} parent=1 // pred_check_branch
      %6181 = sbr.rel (0) target = $region53
    $region52: #{textcnn_forward.1} parent=1 // pred_region
      %6183 = dma.done [#allocation4], 32
    $region53: #{textcnn_forward.1} parent=1 // pred_fallthru
      _
    %6184 = vsyncpa [#allocation3], 1
    %6185 = vsyncpa [#allocation6], 1
    %6186 = vsyncpa [#allocation9], 1
    %6187 = vsyncpa [#allocation4], 1

</llo_original>
